<compile_context>
chip_gen: v5e
topology: v5e:2x2
jax: 0.10.0
libtpu: 0.0.40
codegen_flags: <defaults>
</compile_context>

<pallas_src>
import functools

import jax
import jax.numpy as jnp
from jax.experimental import pallas as pl
from jax.experimental.pallas import tpu as pltpu

EPS = 1e-5  # nn.BatchNorm2d default eps


def _pick_th(h_out, w_out, max_rows):
    """Largest row-block height TH dividing h_out such that TH*w_out rows fit the budget
    and stay sublane-aligned (multiple of 8), unless the full extent is used."""
    best = None
    for cand in range(1, h_out + 1):
        if h_out % cand:
            continue
        rows = cand * w_out
        if rows > max_rows:
            continue
        if rows % 8 != 0 and cand != h_out:
            continue
        best = cand
    if best is None:
        best = h_out  # full extent: block == full array dim, exempt from the (8,128) rule
    return best


def con_block_forward(x_nchw, weight, bias, gamma, beta, *, padding=1, max_block_rows=512):
    """relu(batchnorm(conv(x))) with stride-1 'same'-style conv and training-mode batch stats.

    `bias` is accepted for API parity with nn.Conv2d but never used: training-mode
    BatchNorm subtracts the per-channel batch mean, which cancels the conv bias exactly.
    """
    del bias  # dead compute / dead DMA under training-mode BN

    n, c_in, h, w = x_nchw.shape
    c_out, c_in2, kh, kw = weight.shape
    assert c_in2 == c_in
    h_out = h + 2 * padding - kh + 1
    w_out = w + 2 * padding - kw + 1
    assert h_out >= 1 and w_out >= 1
    # TODO(synk): stride/dilation/groups other than Conv2d defaults are not implemented.

    hp, wp = h + 2 * padding, w + 2 * padding
    c_pad = ((c_out + 127) // 128) * 128           # lane-dense output channels
    th = _pick_th(h_out, w_out, max_block_rows)    # output rows (of height) per grid step
    hb = h_out // th                               # number of row blocks per image
    rows = th * w_out                              # tile row count (multiple of 8)
    m = n * h_out * w_out                          # BN population per channel

    # ---- wrapper glue: layout + dtype prep (1x HBM traffic; no im2col materialization) ----
    x_nhwc = jnp.transpose(x_nchw, (0, 2, 3, 1)).astype(jnp.bfloat16)
    x_pad = jnp.pad(x_nhwc, ((0, 0), (padding, padding), (padding, padding), (0, 0)))

    # (Cout, Cin, KH, KW) -> (KH*KW, Cin, Cpad): tap-major, zero-padded channels, bf16 MXU operand.
    w_taps = jnp.transpose(weight, (2, 3, 1, 0)).reshape(kh * kw, c_in, c_out)
    w_taps = jnp.pad(w_taps, ((0, 0), (0, 0), (0, c_pad - c_out))).astype(jnp.bfloat16)

    gamma_p = jnp.pad(gamma.astype(jnp.float32), (0, c_pad - c_out))
    beta_p = jnp.pad(beta.astype(jnp.float32), (0, c_pad - c_out))

    # ---- phase 1: conv tiles + per-tile per-channel statistics ----
    def conv_stats_kernel(x_ref, w_ref, y_ref, psum_ref, psumsq_ref, lhs_ref, acc_ref):
        # x_ref:   (Hp, Wp, Cin)      bf16, padded image, resident per n (DMA'd once)
        # w_ref:   (KH*KW, Cin, Cpad) bf16, resident
        # y_ref:   (rows, Cpad)       f32 conv output tile
        # psum/psumsq: (1, Cpad)      f32 per-tile channel stats
        # lhs_ref: (rows, Cin)        bf16 scratch (one tap's gathered window)
        # acc_ref: (rows, Cpad)       f32 scratch accumulator
        h0 = pl.multiple_of(pl.program_id(1) * th, th)
        acc_ref[...] = jnp.zeros_like(acc_ref)
        for dh in range(kh):
            for dw in range(kw):
                # In-VMEM gather of this tap's shifted window into a row-major (rows, Cin)
                # slab: the KH*KW-inflated patch matrix never touches HBM.
                for r in range(th):
                    lhs_ref[pl.ds(r * w_out, w_out), :] = (
                        x_ref[h0 + r + dh, pl.ds(dw, w_out), :])
                acc_ref[...] += jnp.dot(lhs_ref[...], w_ref[dh * kw + dw],
                                        preferred_element_type=jnp.float32)
        acc = acc_ref[...]
        y_ref[...] = acc
        # single-pass statistics: sum and sum-of-squares (f32)
        psum_ref[...] = jnp.sum(acc, axis=0, keepdims=True)
        psumsq_ref[...] = jnp.sum(acc * acc, axis=0, keepdims=True)

    flops1 = 2 * m * kh * kw * c_in * c_pad
    bytes1 = (x_pad.size * 2 + w_taps.size * 2 + m * c_pad * 4 + 2 * n * hb * c_pad * 4)

    y, psum, psumsq = pl.pallas_call(
        conv_stats_kernel,
        grid=(n, hb),
        in_specs=[
            pl.BlockSpec((None, hp, wp, c_in), lambda ni, hi: (ni, 0, 0, 0)),
            pl.BlockSpec((kh * kw, c_in, c_pad), lambda ni, hi: (0, 0, 0)),
        ],
        out_specs=(
            pl.BlockSpec((None, rows, c_pad), lambda ni, hi: (ni, hi, 0)),
            pl.BlockSpec((None, None, 1, c_pad), lambda ni, hi: (ni, hi, 0, 0)),
            pl.BlockSpec((None, None, 1, c_pad), lambda ni, hi: (ni, hi, 0, 0)),
        ),
        out_shape=(
            jax.ShapeDtypeStruct((n, h_out * w_out, c_pad), jnp.float32),
            jax.ShapeDtypeStruct((n, hb, 1, c_pad), jnp.float32),
            jax.ShapeDtypeStruct((n, hb, 1, c_pad), jnp.float32),
        ),
        scratch_shapes=[
            pltpu.VMEM((rows, c_in), jnp.bfloat16),   # one tap's gathered window
            pltpu.VMEM((rows, c_pad), jnp.float32),   # f32 conv accumulator
        ],
        compiler_params=pltpu.CompilerParams(
            dimension_semantics=("parallel", "parallel"),
            vmem_limit_bytes=32 * 1024 * 1024,
        ),
        cost_estimate=pl.CostEstimate(flops=flops1, transcendentals=0,
                                      bytes_accessed=bytes1),
    )(x_pad, w_taps)

    # ---- tiny per-channel combine + BN affine fold (O(num_tiles * C) wrapper glue) ----
    tot = jnp.sum(psum, axis=(0, 1, 2))          # (c_pad,)
    tot_sq = jnp.sum(psumsq, axis=(0, 1, 2))     # (c_pad,)
    mean = tot / m
    var = jnp.maximum(tot_sq / m - mean * mean, 0.0)   # biased (training-mode) variance
    scale = gamma_p * jax.lax.rsqrt(var + EPS)   # fused gamma * rsqrt(var + eps)
    shift = beta_p - mean * scale
    scale2 = scale.reshape(1, c_pad)
    shift2 = shift.reshape(1, c_pad)

    # ---- phase 2: y * scale + shift, ReLU, in place over the conv buffer ----
    def bn_relu_kernel(scale_ref, shift_ref, y_ref, o_ref):
        o_ref[...] = jnp.maximum(y_ref[...] * scale_ref[...] + shift_ref[...], 0.0)

    bytes2 = 2 * m * c_pad * 4 + 2 * c_pad * 4
    out = pl.pallas_call(
        bn_relu_kernel,
        grid=(n, hb),
        in_specs=[
            pl.BlockSpec((1, c_pad), lambda ni, hi: (0, 0)),
            pl.BlockSpec((1, c_pad), lambda ni, hi: (0, 0)),
            pl.BlockSpec((None, rows, c_pad), lambda ni, hi: (ni, hi, 0)),
        ],
        out_specs=pl.BlockSpec((None, rows, c_pad), lambda ni, hi: (ni, hi, 0)),
        out_shape=jax.ShapeDtypeStruct((n, h_out * w_out, c_pad), jnp.float32),
        input_output_aliases={2: 0},
        compiler_params=pltpu.CompilerParams(
            dimension_semantics=("parallel", "parallel"),
            vmem_limit_bytes=32 * 1024 * 1024,
        ),
        cost_estimate=pl.CostEstimate(flops=2 * m * c_pad, transcendentals=0,
                                      bytes_accessed=bytes2),
    )(scale2, shift2, y)

    # ---- drop channel padding, back to NCHW ----
    out = out[:, :, :c_out].reshape(n, h_out, w_out, c_out)
    return jnp.transpose(out, (0, 3, 1, 2))


def con_block_reference(x_nchw, weight, bias, gamma, beta, *, padding=1):
    """Pure-JAX reference matching PyTorch con_block.forward (training-mode BN)."""
    c_out = weight.shape[0]
    y = jax.lax.conv_general_dilated(
        x_nchw, weight, window_strides=(1, 1),
        padding=((padding, padding), (padding, padding)),
        dimension_numbers=("NCHW", "OIHW", "NCHW"),
        precision=jax.lax.Precision.HIGHEST)
    y = y + bias.reshape(1, c_out, 1, 1)
    mean = y.mean(axis=(0, 2, 3), keepdims=True)
    var = ((y - mean) ** 2).mean(axis=(0, 2, 3), keepdims=True)
    y_hat = (y - mean) / jnp.sqrt(var + EPS)
    out = y_hat * gamma.reshape(1, c_out, 1, 1) + beta.reshape(1, c_out, 1, 1)
    return jnp.maximum(out, 0.0)


if __name__ == "__main__":
    # Shapes consistent with con_block(in_channels=4, out_channels=8, kernel_size=3, padding=1).
    N, C_IN, C_OUT, H, W, KH, KW = 2, 4, 8, 16, 16, 3, 3

    key = jax.random.PRNGKey(0)
    kx, kw_, kb, kg, kbt = jax.random.split(key, 5)
    # Round conv operands to bf16 (what the MXU consumes) so the f32 reference sees
    # bit-identical operands and the comparison isolates kernel correctness.
    x = jax.random.normal(kx, (N, C_IN, H, W), jnp.float32)
    x = x.astype(jnp.bfloat16).astype(jnp.float32)
    weight = 0.1 * jax.random.normal(kw_, (C_OUT, C_IN, KH, KW), jnp.float32)
    weight = weight.astype(jnp.bfloat16).astype(jnp.float32)
    bias = 0.1 * jax.random.normal(kb, (C_OUT,), jnp.float32)  # cancelled by training-mode BN
    gamma = 1.0 + 0.1 * jax.random.normal(kg, (C_OUT,), jnp.float32)
    beta = 0.1 * jax.random.normal(kbt, (C_OUT,), jnp.float32)

    fwd = jax.jit(functools.partial(con_block_forward, padding=1, max_block_rows=128))
    out = jax.block_until_ready(fwd(x, weight, bias, gamma, beta))

    ref = con_block_reference(x, weight, bias, gamma, beta, padding=1)
    assert out.shape == (N, C_OUT, H, W), out.shape
    assert bool(jnp.allclose(out, ref, atol=1e-3, rtol=1e-3)), (
        "max abs diff = %s" % float(jnp.max(jnp.abs(out - ref))))

    print("KERNEL_OK")
</pallas_src>

<mosaic_0001>
module attributes {stable_mosaic.version = 11 : i64} {
  func.func @bn_relu_kernel(%arg0: i32, %arg1: i32, %arg2: memref<1x128xf32, #tpu.memory_space<vmem>>, %arg3: memref<1x128xf32, #tpu.memory_space<vmem>>, %arg4: memref<1x128x128xf32, #tpu.memory_space<vmem>>, %arg5: memref<1x128x128xf32, #tpu.memory_space<vmem>>) attributes {dimension_semantics = [#tpu.dimension_semantics<parallel>, #tpu.dimension_semantics<parallel>], iteration_bounds = array<i64: 2, 2>, scalar_prefetch = 0 : i64, scratch_operands = 0 : i64, tpu.core_type = #tpu.core_type<tc>, window_params = [{pipeline_mode = #tpu.pipeline_mode<synchronous>, transform_indices = @transform_0, window_bounds = array<i64: 1, 128>}, {pipeline_mode = #tpu.pipeline_mode<synchronous>, transform_indices = @transform_1, window_bounds = array<i64: 1, 128>}, {transform_indices = @transform_2, window_bounds = array<i64: 1, 128, 128>}, {transform_indices = @transform_3, window_bounds = array<i64: 1, 128, 128>}]} {
    %c0 = arith.constant 0 : index
    %c0_0 = arith.constant 0 : index
    %c0_1 = arith.constant 0 : index
    %0 = vector.load %arg4[%c0, %c0_0, %c0_1] : memref<1x128x128xf32, #tpu.memory_space<vmem>>, vector<1x128x128xf32>
    %1 = vector.shape_cast %0 : vector<1x128x128xf32> to vector<128x128xf32>
    %c0_2 = arith.constant 0 : index
    %c0_3 = arith.constant 0 : index
    %2 = vector.load %arg2[%c0_2, %c0_3] : memref<1x128xf32, #tpu.memory_space<vmem>>, vector<1x128xf32>
    %3 = vector.broadcast %2 : vector<1x128xf32> to vector<128x128xf32>
    %4 = arith.mulf %1, %3 : vector<128x128xf32>
    %c0_4 = arith.constant 0 : index
    %c0_5 = arith.constant 0 : index
    %5 = vector.load %arg3[%c0_4, %c0_5] : memref<1x128xf32, #tpu.memory_space<vmem>>, vector<1x128xf32>
    %6 = vector.broadcast %5 : vector<1x128xf32> to vector<128x128xf32>
    %7 = arith.addf %4, %6 : vector<128x128xf32>
    %cst = arith.constant 0.000000e+00 : f32
    %8 = vector.broadcast %cst : f32 to vector<128x128xf32>
    %9 = arith.maximumf %7, %8 : vector<128x128xf32>
    %c0_6 = arith.constant 0 : index
    %c0_7 = arith.constant 0 : index
    %c0_8 = arith.constant 0 : index
    %10 = vector.load %arg5[%c0_6, %c0_7, %c0_8] : memref<1x128x128xf32, #tpu.memory_space<vmem>>, vector<1x128x128xf32>
    %11 = vector.shape_cast %10 : vector<1x128x128xf32> to vector<128x128xf32>
    %12 = vector.shape_cast %9 : vector<128x128xf32> to vector<1x128x128xf32>
    tpu.vector_store %arg5[%c0_6, %c0_7, %c0_8], %12 {strides = array<i32>} : memref<1x128x128xf32, #tpu.memory_space<vmem>>, vector<1x128x128xf32>,
    return
  }
  func.func @transform_0(%arg0: i32, %arg1: i32) -> (i32, i32) {
    %c0_i32 = arith.constant 0 : i32
    %c0_i32_0 = arith.constant 0 : i32
    %c0_i32_1 = arith.constant 0 : i32
    return %c0_i32, %c0_i32_0 : i32, i32
  }
  func.func @transform_1(%arg0: i32, %arg1: i32) -> (i32, i32) {
    %c0_i32 = arith.constant 0 : i32
    %c0_i32_0 = arith.constant 0 : i32
    %c0_i32_1 = arith.constant 0 : i32
    return %c0_i32, %c0_i32_0 : i32, i32
  }
  func.func @transform_2(%arg0: i32, %arg1: i32) -> (i32, i32, i32) {
    %c0_i32 = arith.constant 0 : i32
    %c0_i32_0 = arith.constant 0 : i32
    return %arg0, %arg1, %c0_i32 : i32, i32, i32
  }
  func.func @transform_3(%arg0: i32, %arg1: i32) -> (i32, i32, i32) {
    %c0_i32 = arith.constant 0 : i32
    %c0_i32_0 = arith.constant 0 : i32
    return %arg0, %arg1, %c0_i32 : i32, i32, i32
  }
}

module attributes {stable_mosaic.version = 11 : i64} {
  func.func @conv_stats_kernel(%arg0: i32, %arg1: i32, %arg2: memref<1x18x18x4xbf16, #tpu.memory_space<vmem>>, %arg3: memref<9x4x128xbf16, #tpu.memory_space<vmem>>, %arg4: memref<1x128x128xf32, #tpu.memory_space<vmem>>, %arg5: memref<1x1x1x128xf32, #tpu.memory_space<vmem>>, %arg6: memref<1x1x1x128xf32, #tpu.memory_space<vmem>>, %arg7: memref<128x4xbf16, #tpu.memory_space<vmem>>, %arg8: memref<128x128xf32, #tpu.memory_space<vmem>>) attributes {dimension_semantics = [#tpu.dimension_semantics<parallel>, #tpu.dimension_semantics<parallel>], iteration_bounds = array<i64: 2, 2>, scalar_prefetch = 0 : i64, scratch_operands = 2 : i64, tpu.core_type = #tpu.core_type<tc>, window_params = [{transform_indices = @transform_0, window_bounds = array<i64: 1, 18, 18, 4>}, {pipeline_mode = #tpu.pipeline_mode<synchronous>, transform_indices = @transform_1, window_bounds = array<i64: 9, 4, 128>}, {transform_indices = @transform_2, window_bounds = array<i64: 1, 128, 128>}, {transform_indices = @transform_3, window_bounds = array<i64: 1, 1, 1, 128>}, {transform_indices = @transform_4, window_bounds = array<i64: 1, 1, 1, 128>}]} {
    %c8_i32 = arith.constant 8 : i32
    %0 = arith.muli %arg1, %c8_i32 : i32
    %1 = tpu.assume_multiple %0, 8 : i32
    %cst = arith.constant 0.000000e+00 : f32
    %2 = vector.broadcast %cst : f32 to vector<128x128xf32>
    %c0 = arith.constant 0 : index
    %c0_0 = arith.constant 0 : index
    %3 = vector.load %arg8[%c0, %c0_0] : memref<128x128xf32, #tpu.memory_space<vmem>>, vector<128x128xf32>
    tpu.vector_store %arg8[%c0, %c0_0], %2 {strides = array<i32>} : memref<128x128xf32, #tpu.memory_space<vmem>>, vector<128x128xf32>,
    %c0_i32 = arith.constant 0 : i32
    %4 = arith.addi %1, %c0_i32 : i32
    %c0_i32_1 = arith.constant 0 : i32
    %5 = arith.addi %4, %c0_i32_1 : i32
    %c0_2 = arith.constant 0 : index
    %6 = arith.index_cast %5 : i32 to index
    %c0_3 = arith.constant 0 : index
    %c0_4 = arith.constant 0 : index
    %7 = vector.load %arg2[%c0_2, %6, %c0_3, %c0_4] : memref<1x18x18x4xbf16, #tpu.memory_space<vmem>>, vector<1x1x16x4xbf16>
    %8 = vector.shape_cast %7 : vector<1x1x16x4xbf16> to vector<16x4xbf16>
    %c0_5 = arith.constant 0 : index
    %c0_6 = arith.constant 0 : index
    %9 = vector.load %arg7[%c0_5, %c0_6] : memref<128x4xbf16, #tpu.memory_space<vmem>>, vector<16x4xbf16>
    tpu.vector_store %arg7[%c0_5, %c0_6], %8 {strides = array<i32>} : memref<128x4xbf16, #tpu.memory_space<vmem>>, vector<16x4xbf16>,
    %c1_i32 = arith.constant 1 : i32
    %10 = arith.addi %1, %c1_i32 : i32
    %c0_i32_7 = arith.constant 0 : i32
    %11 = arith.addi %10, %c0_i32_7 : i32
    %c0_8 = arith.constant 0 : index
    %12 = arith.index_cast %11 : i32 to index
    %c0_9 = arith.constant 0 : index
    %c0_10 = arith.constant 0 : index
    %13 = vector.load %arg2[%c0_8, %12, %c0_9, %c0_10] : memref<1x18x18x4xbf16, #tpu.memory_space<vmem>>, vector<1x1x16x4xbf16>
    %14 = vector.shape_cast %13 : vector<1x1x16x4xbf16> to vector<16x4xbf16>
    %c16 = arith.constant 16 : index
    %c0_11 = arith.constant 0 : index
    %15 = vector.load %arg7[%c16, %c0_11] : memref<128x4xbf16, #tpu.memory_space<vmem>>, vector<16x4xbf16>
    tpu.vector_store %arg7[%c16, %c0_11], %14 {strides = array<i32>} : memref<128x4xbf16, #tpu.memory_space<vmem>>, vector<16x4xbf16>,
    %c2_i32 = arith.constant 2 : i32
    %16 = arith.addi %1, %c2_i32 : i32
    %c0_i32_12 = arith.constant 0 : i32
    %17 = arith.addi %16, %c0_i32_12 : i32
    %c0_13 = arith.constant 0 : index
    %18 = arith.index_cast %17 : i32 to index
    %c0_14 = arith.constant 0 : index
    %c0_15 = arith.constant 0 : index
    %19 = vector.load %arg2[%c0_13, %18, %c0_14, %c0_15] : memref<1x18x18x4xbf16, #tpu.memory_space<vmem>>, vector<1x1x16x4xbf16>
    %20 = vector.shape_cast %19 : vector<1x1x16x4xbf16> to vector<16x4xbf16>
    %c32 = arith.constant 32 : index
    %c0_16 = arith.constant 0 : index
    %21 = vector.load %arg7[%c32, %c0_16] : memref<128x4xbf16, #tpu.memory_space<vmem>>, vector<16x4xbf16>
    tpu.vector_store %arg7[%c32, %c0_16], %20 {strides = array<i32>} : memref<128x4xbf16, #tpu.memory_space<vmem>>, vector<16x4xbf16>,
    %c3_i32 = arith.constant 3 : i32
    %22 = arith.addi %1, %c3_i32 : i32
    %c0_i32_17 = arith.constant 0 : i32
    %23 = arith.addi %22, %c0_i32_17 : i32
    %c0_18 = arith.constant 0 : index
    %24 = arith.index_cast %23 : i32 to index
    %c0_19 = arith.constant 0 : index
    %c0_20 = arith.constant 0 : index
    %25 = vector.load %arg2[%c0_18, %24, %c0_19, %c0_20] : memref<1x18x18x4xbf16, #tpu.memory_space<vmem>>, vector<1x1x16x4xbf16>
    %26 = vector.shape_cast %25 : vector<1x1x16x4xbf16> to vector<16x4xbf16>
    %c48 = arith.constant 48 : index
    %c0_21 = arith.constant 0 : index
    %27 = vector.load %arg7[%c48, %c0_21] : memref<128x4xbf16, #tpu.memory_space<vmem>>, vector<16x4xbf16>
    tpu.vector_store %arg7[%c48, %c0_21], %26 {strides = array<i32>} : memref<128x4xbf16, #tpu.memory_space<vmem>>, vector<16x4xbf16>,
    %c4_i32 = arith.constant 4 : i32
    %28 = arith.addi %1, %c4_i32 : i32
    %c0_i32_22 = arith.constant 0 : i32
    %29 = arith.addi %28, %c0_i32_22 : i32
    %c0_23 = arith.constant 0 : index
    %30 = arith.index_cast %29 : i32 to index
    %c0_24 = arith.constant 0 : index
    %c0_25 = arith.constant 0 : index
    %31 = vector.load %arg2[%c0_23, %30, %c0_24, %c0_25] : memref<1x18x18x4xbf16, #tpu.memory_space<vmem>>, vector<1x1x16x4xbf16>
    %32 = vector.shape_cast %31 : vector<1x1x16x4xbf16> to vector<16x4xbf16>
    %c64 = arith.constant 64 : index
    %c0_26 = arith.constant 0 : index
    %33 = vector.load %arg7[%c64, %c0_26] : memref<128x4xbf16, #tpu.memory_space<vmem>>, vector<16x4xbf16>
    tpu.vector_store %arg7[%c64, %c0_26], %32 {strides = array<i32>} : memref<128x4xbf16, #tpu.memory_space<vmem>>, vector<16x4xbf16>,
    %c5_i32 = arith.constant 5 : i32
    %34 = arith.addi %1, %c5_i32 : i32
    %c0_i32_27 = arith.constant 0 : i32
    %35 = arith.addi %34, %c0_i32_27 : i32
    %c0_28 = arith.constant 0 : index
    %36 = arith.index_cast %35 : i32 to index
    %c0_29 = arith.constant 0 : index
    %c0_30 = arith.constant 0 : index
    %37 = vector.load %arg2[%c0_28, %36, %c0_29, %c0_30] : memref<1x18x18x4xbf16, #tpu.memory_space<vmem>>, vector<1x1x16x4xbf16>
    %38 = vector.shape_cast %37 : vector<1x1x16x4xbf16> to vector<16x4xbf16>
    %c80 = arith.constant 80 : index
    %c0_31 = arith.constant 0 : index
    %39 = vector.load %arg7[%c80, %c0_31] : memref<128x4xbf16, #tpu.memory_space<vmem>>, vector<16x4xbf16>
    tpu.vector_store %arg7[%c80, %c0_31], %38 {strides = array<i32>} : memref<128x4xbf16, #tpu.memory_space<vmem>>, vector<16x4xbf16>,
    %c6_i32 = arith.constant 6 : i32
    %40 = arith.addi %1, %c6_i32 : i32
    %c0_i32_32 = arith.constant 0 : i32
    %41 = arith.addi %40, %c0_i32_32 : i32
    %c0_33 = arith.constant 0 : index
    %42 = arith.index_cast %41 : i32 to index
    %c0_34 = arith.constant 0 : index
    %c0_35 = arith.constant 0 : index
    %43 = vector.load %arg2[%c0_33, %42, %c0_34, %c0_35] : memref<1x18x18x4xbf16, #tpu.memory_space<vmem>>, vector<1x1x16x4xbf16>
    %44 = vector.shape_cast %43 : vector<1x1x16x4xbf16> to vector<16x4xbf16>
    %c96 = arith.constant 96 : index
    %c0_36 = arith.constant 0 : index
    %45 = vector.load %arg7[%c96, %c0_36] : memref<128x4xbf16, #tpu.memory_space<vmem>>, vector<16x4xbf16>
    tpu.vector_store %arg7[%c96, %c0_36], %44 {strides = array<i32>} : memref<128x4xbf16, #tpu.memory_space<vmem>>, vector<16x4xbf16>,
    %c7_i32 = arith.constant 7 : i32
    %46 = arith.addi %1, %c7_i32 : i32
    %c0_i32_37 = arith.constant 0 : i32
    %47 = arith.addi %46, %c0_i32_37 : i32
    %c0_38 = arith.constant 0 : index
    %48 = arith.index_cast %47 : i32 to index
    %c0_39 = arith.constant 0 : index
    %c0_40 = arith.constant 0 : index
    %49 = vector.load %arg2[%c0_38, %48, %c0_39, %c0_40] : memref<1x18x18x4xbf16, #tpu.memory_space<vmem>>, vector<1x1x16x4xbf16>
    %50 = vector.shape_cast %49 : vector<1x1x16x4xbf16> to vector<16x4xbf16>
    %c112 = arith.constant 112 : index
    %c0_41 = arith.constant 0 : index
    %51 = vector.load %arg7[%c112, %c0_41] : memref<128x4xbf16, #tpu.memory_space<vmem>>, vector<16x4xbf16>
    tpu.vector_store %arg7[%c112, %c0_41], %50 {strides = array<i32>} : memref<128x4xbf16, #tpu.memory_space<vmem>>, vector<16x4xbf16>,
    %c0_42 = arith.constant 0 : index
    %c0_43 = arith.constant 0 : index
    %52 = vector.load %arg8[%c0_42, %c0_43] : memref<128x128xf32, #tpu.memory_space<vmem>>, vector<128x128xf32>
    %c0_44 = arith.constant 0 : index
    %c0_45 = arith.constant 0 : index
    %53 = vector.load %arg7[%c0_44, %c0_45] : memref<128x4xbf16, #tpu.memory_space<vmem>>, vector<128x4xbf16>
    %c0_46 = arith.constant 0 : index
    %c0_47 = arith.constant 0 : index
    %c0_48 = arith.constant 0 : index
    %54 = vector.load %arg3[%c0_46, %c0_47, %c0_48] : memref<9x4x128xbf16, #tpu.memory_space<vmem>>, vector<1x4x128xbf16>
    %55 = vector.shape_cast %54 : vector<1x4x128xbf16> to vector<4x128xbf16>
    %cst_49 = arith.constant dense<0.000000e+00> : vector<128x128xf32>
    %56 = tpu.matmul %53, %55, %cst_49 {dimension_numbers = #tpu.dot_dimension_numbers<[1], [0], [0], [1], [0, 0, 1, 1], [], []>} : vector<128x4xbf16>, vector<4x128xbf16>, vector<128x128xf32> -> vector<128x128xf32>
    %57 = arith.addf %52, %56 : vector<128x128xf32>
    %c0_50 = arith.constant 0 : index
    %c0_51 = arith.constant 0 : index
    %58 = vector.load %arg8[%c0_50, %c0_51] : memref<128x128xf32, #tpu.memory_space<vmem>>, vector<128x128xf32>
    tpu.vector_store %arg8[%c0_50, %c0_51], %57 {strides = array<i32>} : memref<128x128xf32, #tpu.memory_space<vmem>>, vector<128x128xf32>,
    %c0_i32_52 = arith.constant 0 : i32
    %59 = arith.addi %1, %c0_i32_52 : i32
    %c0_i32_53 = arith.constant 0 : i32
    %60 = arith.addi %59, %c0_i32_53 : i32
    %c0_54 = arith.constant 0 : index
    %61 = arith.index_cast %60 : i32 to index
    %c1 = arith.constant 1 : index
    %c0_55 = arith.constant 0 : index
    %62 = vector.load %arg2[%c0_54, %61, %c1, %c0_55] : memref<1x18x18x4xbf16, #tpu.memory_space<vmem>>, vector<1x1x16x4xbf16>
    %63 = vector.shape_cast %62 : vector<1x1x16x4xbf16> to vector<16x4xbf16>
    %c0_56 = arith.constant 0 : index
    %c0_57 = arith.constant 0 : index
    %64 = vector.load %arg7[%c0_56, %c0_57] : memref<128x4xbf16, #tpu.memory_space<vmem>>, vector<16x4xbf16>
    tpu.vector_store %arg7[%c0_56, %c0_57], %63 {strides = array<i32>} : memref<128x4xbf16, #tpu.memory_space<vmem>>, vector<16x4xbf16>,
    %c1_i32_58 = arith.constant 1 : i32
    %65 = arith.addi %1, %c1_i32_58 : i32
    %c0_i32_59 = arith.constant 0 : i32
    %66 = arith.addi %65, %c0_i32_59 : i32
    %c0_60 = arith.constant 0 : index
    %67 = arith.index_cast %66 : i32 to index
    %c1_61 = arith.constant 1 : index
    %c0_62 = arith.constant 0 : index
    %68 = vector.load %arg2[%c0_60, %67, %c1_61, %c0_62] : memref<1x18x18x4xbf16, #tpu.memory_space<vmem>>, vector<1x1x16x4xbf16>
    %69 = vector.shape_cast %68 : vector<1x1x16x4xbf16> to vector<16x4xbf16>
    %c16_63 = arith.constant 16 : index
    %c0_64 = arith.constant 0 : index
    %70 = vector.load %arg7[%c16_63, %c0_64] : memref<128x4xbf16, #tpu.memory_space<vmem>>, vector<16x4xbf16>
    tpu.vector_store %arg7[%c16_63, %c0_64], %69 {strides = array<i32>} : memref<128x4xbf16, #tpu.memory_space<vmem>>, vector<16x4xbf16>,
    %c2_i32_65 = arith.constant 2 : i32
    %71 = arith.addi %1, %c2_i32_65 : i32
    %c0_i32_66 = arith.constant 0 : i32
    %72 = arith.addi %71, %c0_i32_66 : i32
    %c0_67 = arith.constant 0 : index
    %73 = arith.index_cast %72 : i32 to index
    %c1_68 = arith.constant 1 : index
    %c0_69 = arith.constant 0 : index
    %74 = vector.load %arg2[%c0_67, %73, %c1_68, %c0_69] : memref<1x18x18x4xbf16, #tpu.memory_space<vmem>>, vector<1x1x16x4xbf16>
    %75 = vector.shape_cast %74 : vector<1x1x16x4xbf16> to vector<16x4xbf16>
    %c32_70 = arith.constant 32 : index
    %c0_71 = arith.constant 0 : index
    %76 = vector.load %arg7[%c32_70, %c0_71] : memref<128x4xbf16, #tpu.memory_space<vmem>>, vector<16x4xbf16>
    tpu.vector_store %arg7[%c32_70, %c0_71], %75 {strides = array<i32>} : memref<128x4xbf16, #tpu.memory_space<vmem>>, vector<16x4xbf16>,
    %c3_i32_72 = arith.constant 3 : i32
    %77 = arith.addi %1, %c3_i32_72 : i32
    %c0_i32_73 = arith.constant 0 : i32
    %78 = arith.addi %77, %c0_i32_73 : i32
    %c0_74 = arith.constant 0 : index
    %79 = arith.index_cast %78 : i32 to index
    %c1_75 = arith.constant 1 : index
    %c0_76 = arith.constant 0 : index
    %80 = vector.load %arg2[%c0_74, %79, %c1_75, %c0_76] : memref<1x18x18x4xbf16, #tpu.memory_space<vmem>>, vector<1x1x16x4xbf16>
    %81 = vector.shape_cast %80 : vector<1x1x16x4xbf16> to vector<16x4xbf16>
    %c48_77 = arith.constant 48 : index
    %c0_78 = arith.constant 0 : index
    %82 = vector.load %arg7[%c48_77, %c0_78] : memref<128x4xbf16, #tpu.memory_space<vmem>>, vector<16x4xbf16>
    tpu.vector_store %arg7[%c48_77, %c0_78], %81 {strides = array<i32>} : memref<128x4xbf16, #tpu.memory_space<vmem>>, vector<16x4xbf16>,
    %c4_i32_79 = arith.constant 4 : i32
    %83 = arith.addi %1, %c4_i32_79 : i32
    %c0_i32_80 = arith.constant 0 : i32
    %84 = arith.addi %83, %c0_i32_80 : i32
    %c0_81 = arith.constant 0 : index
    %85 = arith.index_cast %84 : i32 to index
    %c1_82 = arith.constant 1 : index
    %c0_83 = arith.constant 0 : index
    %86 = vector.load %arg2[%c0_81, %85, %c1_82, %c0_83] : memref<1x18x18x4xbf16, #tpu.memory_space<vmem>>, vector<1x1x16x4xbf16>
    %87 = vector.shape_cast %86 : vector<1x1x16x4xbf16> to vector<16x4xbf16>
    %c64_84 = arith.constant 64 : index
    %c0_85 = arith.constant 0 : index
    %88 = vector.load %arg7[%c64_84, %c0_85] : memref<128x4xbf16, #tpu.memory_space<vmem>>, vector<16x4xbf16>
    tpu.vector_store %arg7[%c64_84, %c0_85], %87 {strides = array<i32>} : memref<128x4xbf16, #tpu.memory_space<vmem>>, vector<16x4xbf16>,
    %c5_i32_86 = arith.constant 5 : i32
    %89 = arith.addi %1, %c5_i32_86 : i32
    %c0_i32_87 = arith.constant 0 : i32
    %90 = arith.addi %89, %c0_i32_87 : i32
    %c0_88 = arith.constant 0 : index
    %91 = arith.index_cast %90 : i32 to index
    %c1_89 = arith.constant 1 : index
    %c0_90 = arith.constant 0 : index
    %92 = vector.load %arg2[%c0_88, %91, %c1_89, %c0_90] : memref<1x18x18x4xbf16, #tpu.memory_space<vmem>>, vector<1x1x16x4xbf16>
    %93 = vector.shape_cast %92 : vector<1x1x16x4xbf16> to vector<16x4xbf16>
    %c80_91 = arith.constant 80 : index
    %c0_92 = arith.constant 0 : index
    %94 = vector.load %arg7[%c80_91, %c0_92] : memref<128x4xbf16, #tpu.memory_space<vmem>>, vector<16x4xbf16>
    tpu.vector_store %arg7[%c80_91, %c0_92], %93 {strides = array<i32>} : memref<128x4xbf16, #tpu.memory_space<vmem>>, vector<16x4xbf16>,
    %c6_i32_93 = arith.constant 6 : i32
    %95 = arith.addi %1, %c6_i32_93 : i32
    %c0_i32_94 = arith.constant 0 : i32
    %96 = arith.addi %95, %c0_i32_94 : i32
    %c0_95 = arith.constant 0 : index
    %97 = arith.index_cast %96 : i32 to index
    %c1_96 = arith.constant 1 : index
    %c0_97 = arith.constant 0 : index
    %98 = vector.load %arg2[%c0_95, %97, %c1_96, %c0_97] : memref<1x18x18x4xbf16, #tpu.memory_space<vmem>>, vector<1x1x16x4xbf16>
    %99 = vector.shape_cast %98 : vector<1x1x16x4xbf16> to vector<16x4xbf16>
    %c96_98 = arith.constant 96 : index
    %c0_99 = arith.constant 0 : index
    %100 = vector.load %arg7[%c96_98, %c0_99] : memref<128x4xbf16, #tpu.memory_space<vmem>>, vector<16x4xbf16>
    tpu.vector_store %arg7[%c96_98, %c0_99], %99 {strides = array<i32>} : memref<128x4xbf16, #tpu.memory_space<vmem>>, vector<16x4xbf16>,
    %c7_i32_100 = arith.constant 7 : i32
    %101 = arith.addi %1, %c7_i32_100 : i32
    %c0_i32_101 = arith.constant 0 : i32
    %102 = arith.addi %101, %c0_i32_101 : i32
    %c0_102 = arith.constant 0 : index
    %103 = arith.index_cast %102 : i32 to index
    %c1_103 = arith.constant 1 : index
    %c0_104 = arith.constant 0 : index
    %104 = vector.load %arg2[%c0_102, %103, %c1_103, %c0_104] : memref<1x18x18x4xbf16, #tpu.memory_space<vmem>>, vector<1x1x16x4xbf16>
    %105 = vector.shape_cast %104 : vector<1x1x16x4xbf16> to vector<16x4xbf16>
    %c112_105 = arith.constant 112 : index
    %c0_106 = arith.constant 0 : index
    %106 = vector.load %arg7[%c112_105, %c0_106] : memref<128x4xbf16, #tpu.memory_space<vmem>>, vector<16x4xbf16>
    tpu.vector_store %arg7[%c112_105, %c0_106], %105 {strides = array<i32>} : memref<128x4xbf16, #tpu.memory_space<vmem>>, vector<16x4xbf16>,
    %c0_107 = arith.constant 0 : index
    %c0_108 = arith.constant 0 : index
    %107 = vector.load %arg8[%c0_107, %c0_108] : memref<128x128xf32, #tpu.memory_space<vmem>>, vector<128x128xf32>
    %c0_109 = arith.constant 0 : index
    %c0_110 = arith.constant 0 : index
    %108 = vector.load %arg7[%c0_109, %c0_110] : memref<128x4xbf16, #tpu.memory_space<vmem>>, vector<128x4xbf16>
    %c1_111 = arith.constant 1 : index
    %c0_112 = arith.constant 0 : index
    %c0_113 = arith.constant 0 : index
    %109 = vector.load %arg3[%c1_111, %c0_112, %c0_113] : memref<9x4x128xbf16, #tpu.memory_space<vmem>>, vector<1x4x128xbf16>
    %110 = vector.shape_cast %109 : vector<1x4x128xbf16> to vector<4x128xbf16>
    %cst_114 = arith.constant dense<0.000000e+00> : vector<128x128xf32>
    %111 = tpu.matmul %108, %110, %cst_114 {dimension_numbers = #tpu.dot_dimension_numbers<[1], [0], [0], [1], [0, 0, 1, 1], [], []>} : vector<128x4xbf16>, vector<4x128xbf16>, vector<128x128xf32> -> vector<128x128xf32>
    %112 = arith.addf %107, %111 : vector<128x128xf32>
    %c0_115 = arith.constant 0 : index
    %c0_116 = arith.constant 0 : index
    %113 = vector.load %arg8[%c0_115, %c0_116] : memref<128x128xf32, #tpu.memory_space<vmem>>, vector<128x128xf32>
    tpu.vector_store %arg8[%c0_115, %c0_116], %112 {strides = array<i32>} : memref<128x128xf32, #tpu.memory_space<vmem>>, vector<128x128xf32>,
    %c0_i32_117 = arith.constant 0 : i32
    %114 = arith.addi %1, %c0_i32_117 : i32
    %c0_i32_118 = arith.constant 0 : i32
    %115 = arith.addi %114, %c0_i32_118 : i32
    %c0_119 = arith.constant 0 : index
    %116 = arith.index_cast %115 : i32 to index
    %c2 = arith.constant 2 : index
    %c0_120 = arith.constant 0 : index
    %117 = vector.load %arg2[%c0_119, %116, %c2, %c0_120] : memref<1x18x18x4xbf16, #tpu.memory_space<vmem>>, vector<1x1x16x4xbf16>
    %118 = vector.shape_cast %117 : vector<1x1x16x4xbf16> to vector<16x4xbf16>
    %c0_121 = arith.constant 0 : index
    %c0_122 = arith.constant 0 : index
    %119 = vector.load %arg7[%c0_121, %c0_122] : memref<128x4xbf16, #tpu.memory_space<vmem>>, vector<16x4xbf16>
    tpu.vector_store %arg7[%c0_121, %c0_122], %118 {strides = array<i32>} : memref<128x4xbf16, #tpu.memory_space<vmem>>, vector<16x4xbf16>,
    %c1_i32_123 = arith.constant 1 : i32
    %120 = arith.addi %1, %c1_i32_123 : i32
    %c0_i32_124 = arith.constant 0 : i32
    %121 = arith.addi %120, %c0_i32_124 : i32
    %c0_125 = arith.constant 0 : index
    %122 = arith.index_cast %121 : i32 to index
    %c2_126 = arith.constant 2 : index
    %c0_127 = arith.constant 0 : index
    %123 = vector.load %arg2[%c0_125, %122, %c2_126, %c0_127] : memref<1x18x18x4xbf16, #tpu.memory_space<vmem>>, vector<1x1x16x4xbf16>
    %124 = vector.shape_cast %123 : vector<1x1x16x4xbf16> to vector<16x4xbf16>
    %c16_128 = arith.constant 16 : index
    %c0_129 = arith.constant 0 : index
    %125 = vector.load %arg7[%c16_128, %c0_129] : memref<128x4xbf16, #tpu.memory_space<vmem>>, vector<16x4xbf16>
    tpu.vector_store %arg7[%c16_128, %c0_129], %124 {strides = array<i32>} : memref<128x4xbf16, #tpu.memory_space<vmem>>, vector<16x4xbf16>,
    %c2_i32_130 = arith.constant 2 : i32
    %126 = arith.addi %1, %c2_i32_130 : i32
    %c0_i32_131 = arith.constant 0 : i32
    %127 = arith.addi %126, %c0_i32_131 : i32
    %c0_132 = arith.constant 0 : index
    %128 = arith.index_cast %127 : i32 to index
    %c2_133 = arith.constant 2 : index
    %c0_134 = arith.constant 0 : index
    %129 = vector.load %arg2[%c0_132, %128, %c2_133, %c0_134] : memref<1x18x18x4xbf16, #tpu.memory_space<vmem>>, vector<1x1x16x4xbf16>
    %130 = vector.shape_cast %129 : vector<1x1x16x4xbf16> to vector<16x4xbf16>
    %c32_135 = arith.constant 32 : index
    %c0_136 = arith.constant 0 : index
    %131 = vector.load %arg7[%c32_135, %c0_136] : memref<128x4xbf16, #tpu.memory_space<vmem>>, vector<16x4xbf16>
    tpu.vector_store %arg7[%c32_135, %c0_136], %130 {strides = array<i32>} : memref<128x4xbf16, #tpu.memory_space<vmem>>, vector<16x4xbf16>,
    %c3_i32_137 = arith.constant 3 : i32
    %132 = arith.addi %1, %c3_i32_137 : i32
    %c0_i32_138 = arith.constant 0 : i32
    %133 = arith.addi %132, %c0_i32_138 : i32
    %c0_139 = arith.constant 0 : index
    %134 = arith.index_cast %133 : i32 to index
    %c2_140 = arith.constant 2 : index
    %c0_141 = arith.constant 0 : index
    %135 = vector.load %arg2[%c0_139, %134, %c2_140, %c0_141] : memref<1x18x18x4xbf16, #tpu.memory_space<vmem>>, vector<1x1x16x4xbf16>
    %136 = vector.shape_cast %135 : vector<1x1x16x4xbf16> to vector<16x4xbf16>
    %c48_142 = arith.constant 48 : index
    %c0_143 = arith.constant 0 : index
    %137 = vector.load %arg7[%c48_142, %c0_143] : memref<128x4xbf16, #tpu.memory_space<vmem>>, vector<16x4xbf16>
    tpu.vector_store %arg7[%c48_142, %c0_143], %136 {strides = array<i32>} : memref<128x4xbf16, #tpu.memory_space<vmem>>, vector<16x4xbf16>,
    %c4_i32_144 = arith.constant 4 : i32
    %138 = arith.addi %1, %c4_i32_144 : i32
    %c0_i32_145 = arith.constant 0 : i32
    %139 = arith.addi %138, %c0_i32_145 : i32
    %c0_146 = arith.constant 0 : index
    %140 = arith.index_cast %139 : i32 to index
    %c2_147 = arith.constant 2 : index
    %c0_148 = arith.constant 0 : index
    %141 = vector.load %arg2[%c0_146, %140, %c2_147, %c0_148] : memref<1x18x18x4xbf16, #tpu.memory_space<vmem>>, vector<1x1x16x4xbf16>
    %142 = vector.shape_cast %141 : vector<1x1x16x4xbf16> to vector<16x4xbf16>
    %c64_149 = arith.constant 64 : index
    %c0_150 = arith.constant 0 : index
    %143 = vector.load %arg7[%c64_149, %c0_150] : memref<128x4xbf16, #tpu.memory_space<vmem>>, vector<16x4xbf16>
    tpu.vector_store %arg7[%c64_149, %c0_150], %142 {strides = array<i32>} : memref<128x4xbf16, #tpu.memory_space<vmem>>, vector<16x4xbf16>,
    %c5_i32_151 = arith.constant 5 : i32
    %144 = arith.addi %1, %c5_i32_151 : i32
    %c0_i32_152 = arith.constant 0 : i32
    %145 = arith.addi %144, %c0_i32_152 : i32
    %c0_153 = arith.constant 0 : index
    %146 = arith.index_cast %145 : i32 to index
    %c2_154 = arith.constant 2 : index
    %c0_155 = arith.constant 0 : index
    %147 = vector.load %arg2[%c0_153, %146, %c2_154, %c0_155] : memref<1x18x18x4xbf16, #tpu.memory_space<vmem>>, vector<1x1x16x4xbf16>
    %148 = vector.shape_cast %147 : vector<1x1x16x4xbf16> to vector<16x4xbf16>
    %c80_156 = arith.constant 80 : index
    %c0_157 = arith.constant 0 : index
    %149 = vector.load %arg7[%c80_156, %c0_157] : memref<128x4xbf16, #tpu.memory_space<vmem>>, vector<16x4xbf16>
    tpu.vector_store %arg7[%c80_156, %c0_157], %148 {strides = array<i32>} : memref<128x4xbf16, #tpu.memory_space<vmem>>, vector<16x4xbf16>,
    %c6_i32_158 = arith.constant 6 : i32
    %150 = arith.addi %1, %c6_i32_158 : i32
    %c0_i32_159 = arith.constant 0 : i32
    %151 = arith.addi %150, %c0_i32_159 : i32
    %c0_160 = arith.constant 0 : index
    %152 = arith.index_cast %151 : i32 to index
    %c2_161 = arith.constant 2 : index
    %c0_162 = arith.constant 0 : index
    %153 = vector.load %arg2[%c0_160, %152, %c2_161, %c0_162] : memref<1x18x18x4xbf16, #tpu.memory_space<vmem>>, vector<1x1x16x4xbf16>
    %154 = vector.shape_cast %153 : vector<1x1x16x4xbf16> to vector<16x4xbf16>
    %c96_163 = arith.constant 96 : index
    %c0_164 = arith.constant 0 : index
    %155 = vector.load %arg7[%c96_163, %c0_164] : memref<128x4xbf16, #tpu.memory_space<vmem>>, vector<16x4xbf16>
    tpu.vector_store %arg7[%c96_163, %c0_164], %154 {strides = array<i32>} : memref<128x4xbf16, #tpu.memory_space<vmem>>, vector<16x4xbf16>,
    %c7_i32_165 = arith.constant 7 : i32
    %156 = arith.addi %1, %c7_i32_165 : i32
    %c0_i32_166 = arith.constant 0 : i32
    %157 = arith.addi %156, %c0_i32_166 : i32
    %c0_167 = arith.constant 0 : index
    %158 = arith.index_cast %157 : i32 to index
    %c2_168 = arith.constant 2 : index
    %c0_169 = arith.constant 0 : index
    %159 = vector.load %arg2[%c0_167, %158, %c2_168, %c0_169] : memref<1x18x18x4xbf16, #tpu.memory_space<vmem>>, vector<1x1x16x4xbf16>
    %160 = vector.shape_cast %159 : vector<1x1x16x4xbf16> to vector<16x4xbf16>
    %c112_170 = arith.constant 112 : index
    %c0_171 = arith.constant 0 : index
    %161 = vector.load %arg7[%c112_170, %c0_171] : memref<128x4xbf16, #tpu.memory_space<vmem>>, vector<16x4xbf16>
    tpu.vector_store %arg7[%c112_170, %c0_171], %160 {strides = array<i32>} : memref<128x4xbf16, #tpu.memory_space<vmem>>, vector<16x4xbf16>,
    %c0_172 = arith.constant 0 : index
    %c0_173 = arith.constant 0 : index
    %162 = vector.load %arg8[%c0_172, %c0_173] : memref<128x128xf32, #tpu.memory_space<vmem>>, vector<128x128xf32>
    %c0_174 = arith.constant 0 : index
    %c0_175 = arith.constant 0 : index
    %163 = vector.load %arg7[%c0_174, %c0_175] : memref<128x4xbf16, #tpu.memory_space<vmem>>, vector<128x4xbf16>
    %c2_176 = arith.constant 2 : index
    %c0_177 = arith.constant 0 : index
    %c0_178 = arith.constant 0 : index
    %164 = vector.load %arg3[%c2_176, %c0_177, %c0_178] : memref<9x4x128xbf16, #tpu.memory_space<vmem>>, vector<1x4x128xbf16>
    %165 = vector.shape_cast %164 : vector<1x4x128xbf16> to vector<4x128xbf16>
    %cst_179 = arith.constant dense<0.000000e+00> : vector<128x128xf32>
    %166 = tpu.matmul %163, %165, %cst_179 {dimension_numbers = #tpu.dot_dimension_numbers<[1], [0], [0], [1], [0, 0, 1, 1], [], []>} : vector<128x4xbf16>, vector<4x128xbf16>, vector<128x128xf32> -> vector<128x128xf32>
    %167 = arith.addf %162, %166 : vector<128x128xf32>
    %c0_180 = arith.constant 0 : index
    %c0_181 = arith.constant 0 : index
    %168 = vector.load %arg8[%c0_180, %c0_181] : memref<128x128xf32, #tpu.memory_space<vmem>>, vector<128x128xf32>
    tpu.vector_store %arg8[%c0_180, %c0_181], %167 {strides = array<i32>} : memref<128x128xf32, #tpu.memory_space<vmem>>, vector<128x128xf32>,
    %c0_i32_182 = arith.constant 0 : i32
    %169 = arith.addi %1, %c0_i32_182 : i32
    %c1_i32_183 = arith.constant 1 : i32
    %170 = arith.addi %169, %c1_i32_183 : i32
    %c0_184 = arith.constant 0 : index
    %171 = arith.index_cast %170 : i32 to index
    %c0_185 = arith.constant 0 : index
    %c0_186 = arith.constant 0 : index
    %172 = vector.load %arg2[%c0_184, %171, %c0_185, %c0_186] : memref<1x18x18x4xbf16, #tpu.memory_space<vmem>>, vector<1x1x16x4xbf16>
    %173 = vector.shape_cast %172 : vector<1x1x16x4xbf16> to vector<16x4xbf16>
    %c0_187 = arith.constant 0 : index
    %c0_188 = arith.constant 0 : index
    %174 = vector.load %arg7[%c0_187, %c0_188] : memref<128x4xbf16, #tpu.memory_space<vmem>>, vector<16x4xbf16>
    tpu.vector_store %arg7[%c0_187, %c0_188], %173 {strides = array<i32>} : memref<128x4xbf16, #tpu.memory_space<vmem>>, vector<16x4xbf16>,
    %c1_i32_189 = arith.constant 1 : i32
    %175 = arith.addi %1, %c1_i32_189 : i32
    %c1_i32_190 = arith.constant 1 : i32
    %176 = arith.addi %175, %c1_i32_190 : i32
    %c0_191 = arith.constant 0 : index
    %177 = arith.index_cast %176 : i32 to index
    %c0_192 = arith.constant 0 : index
    %c0_193 = arith.constant 0 : index
    %178 = vector.load %arg2[%c0_191, %177, %c0_192, %c0_193] : memref<1x18x18x4xbf16, #tpu.memory_space<vmem>>, vector<1x1x16x4xbf16>
    %179 = vector.shape_cast %178 : vector<1x1x16x4xbf16> to vector<16x4xbf16>
    %c16_194 = arith.constant 16 : index
    %c0_195 = arith.constant 0 : index
    %180 = vector.load %arg7[%c16_194, %c0_195] : memref<128x4xbf16, #tpu.memory_space<vmem>>, vector<16x4xbf16>
    tpu.vector_store %arg7[%c16_194, %c0_195], %179 {strides = array<i32>} : memref<128x4xbf16, #tpu.memory_space<vmem>>, vector<16x4xbf16>,
    %c2_i32_196 = arith.constant 2 : i32
    %181 = arith.addi %1, %c2_i32_196 : i32
    %c1_i32_197 = arith.constant 1 : i32
    %182 = arith.addi %181, %c1_i32_197 : i32
    %c0_198 = arith.constant 0 : index
    %183 = arith.index_cast %182 : i32 to index
    %c0_199 = arith.constant 0 : index
    %c0_200 = arith.constant 0 : index
    %184 = vector.load %arg2[%c0_198, %183, %c0_199, %c0_200] : memref<1x18x18x4xbf16, #tpu.memory_space<vmem>>, vector<1x1x16x4xbf16>
    %185 = vector.shape_cast %184 : vector<1x1x16x4xbf16> to vector<16x4xbf16>
    %c32_201 = arith.constant 32 : index
    %c0_202 = arith.constant 0 : index
    %186 = vector.load %arg7[%c32_201, %c0_202] : memref<128x4xbf16, #tpu.memory_space<vmem>>, vector<16x4xbf16>
    tpu.vector_store %arg7[%c32_201, %c0_202], %185 {strides = array<i32>} : memref<128x4xbf16, #tpu.memory_space<vmem>>, vector<16x4xbf16>,
    %c3_i32_203 = arith.constant 3 : i32
    %187 = arith.addi %1, %c3_i32_203 : i32
    %c1_i32_204 = arith.constant 1 : i32
    %188 = arith.addi %187, %c1_i32_204 : i32
    %c0_205 = arith.constant 0 : index
    %189 = arith.index_cast %188 : i32 to index
    %c0_206 = arith.constant 0 : index
    %c0_207 = arith.constant 0 : index
    %190 = vector.load %arg2[%c0_205, %189, %c0_206, %c0_207] : memref<1x18x18x4xbf16, #tpu.memory_space<vmem>>, vector<1x1x16x4xbf16>
    %191 = vector.shape_cast %190 : vector<1x1x16x4xbf16> to vector<16x4xbf16>
    %c48_208 = arith.constant 48 : index
    %c0_209 = arith.constant 0 : index
    %192 = vector.load %arg7[%c48_208, %c0_209] : memref<128x4xbf16, #tpu.memory_space<vmem>>, vector<16x4xbf16>
    tpu.vector_store %arg7[%c48_208, %c0_209], %191 {strides = array<i32>} : memref<128x4xbf16, #tpu.memory_space<vmem>>, vector<16x4xbf16>,
    %c4_i32_210 = arith.constant 4 : i32
    %193 = arith.addi %1, %c4_i32_210 : i32
    %c1_i32_211 = arith.constant 1 : i32
    %194 = arith.addi %193, %c1_i32_211 : i32
    %c0_212 = arith.constant 0 : index
    %195 = arith.index_cast %194 : i32 to index
    %c0_213 = arith.constant 0 : index
    %c0_214 = arith.constant 0 : index
    %196 = vector.load %arg2[%c0_212, %195, %c0_213, %c0_214] : memref<1x18x18x4xbf16, #tpu.memory_space<vmem>>, vector<1x1x16x4xbf16>
    %197 = vector.shape_cast %196 : vector<1x1x16x4xbf16> to vector<16x4xbf16>
    %c64_215 = arith.constant 64 : index
    %c0_216 = arith.constant 0 : index
    %198 = vector.load %arg7[%c64_215, %c0_216] : memref<128x4xbf16, #tpu.memory_space<vmem>>, vector<16x4xbf16>
    tpu.vector_store %arg7[%c64_215, %c0_216], %197 {strides = array<i32>} : memref<128x4xbf16, #tpu.memory_space<vmem>>, vector<16x4xbf16>,
    %c5_i32_217 = arith.constant 5 : i32
    %199 = arith.addi %1, %c5_i32_217 : i32
    %c1_i32_218 = arith.constant 1 : i32
    %200 = arith.addi %199, %c1_i32_218 : i32
    %c0_219 = arith.constant 0 : index
    %201 = arith.index_cast %200 : i32 to index
    %c0_220 = arith.constant 0 : index
    %c0_221 = arith.constant 0 : index
    %202 = vector.load %arg2[%c0_219, %201, %c0_220, %c0_221] : memref<1x18x18x4xbf16, #tpu.memory_space<vmem>>, vector<1x1x16x4xbf16>
    %203 = vector.shape_cast %202 : vector<1x1x16x4xbf16> to vector<16x4xbf16>
    %c80_222 = arith.constant 80 : index
    %c0_223 = arith.constant 0 : index
    %204 = vector.load %arg7[%c80_222, %c0_223] : memref<128x4xbf16, #tpu.memory_space<vmem>>, vector<16x4xbf16>
    tpu.vector_store %arg7[%c80_222, %c0_223], %203 {strides = array<i32>} : memref<128x4xbf16, #tpu.memory_space<vmem>>, vector<16x4xbf16>,
    %c6_i32_224 = arith.constant 6 : i32
    %205 = arith.addi %1, %c6_i32_224 : i32
    %c1_i32_225 = arith.constant 1 : i32
    %206 = arith.addi %205, %c1_i32_225 : i32
    %c0_226 = arith.constant 0 : index
    %207 = arith.index_cast %206 : i32 to index
    %c0_227 = arith.constant 0 : index
    %c0_228 = arith.constant 0 : index
    %208 = vector.load %arg2[%c0_226, %207, %c0_227, %c0_228] : memref<1x18x18x4xbf16, #tpu.memory_space<vmem>>, vector<1x1x16x4xbf16>
    %209 = vector.shape_cast %208 : vector<1x1x16x4xbf16> to vector<16x4xbf16>
    %c96_229 = arith.constant 96 : index
    %c0_230 = arith.constant 0 : index
    %210 = vector.load %arg7[%c96_229, %c0_230] : memref<128x4xbf16, #tpu.memory_space<vmem>>, vector<16x4xbf16>
    tpu.vector_store %arg7[%c96_229, %c0_230], %209 {strides = array<i32>} : memref<128x4xbf16, #tpu.memory_space<vmem>>, vector<16x4xbf16>,
    %c7_i32_231 = arith.constant 7 : i32
    %211 = arith.addi %1, %c7_i32_231 : i32
    %c1_i32_232 = arith.constant 1 : i32
    %212 = arith.addi %211, %c1_i32_232 : i32
    %c0_233 = arith.constant 0 : index
    %213 = arith.index_cast %212 : i32 to index
    %c0_234 = arith.constant 0 : index
    %c0_235 = arith.constant 0 : index
    %214 = vector.load %arg2[%c0_233, %213, %c0_234, %c0_235] : memref<1x18x18x4xbf16, #tpu.memory_space<vmem>>, vector<1x1x16x4xbf16>
    %215 = vector.shape_cast %214 : vector<1x1x16x4xbf16> to vector<16x4xbf16>
    %c112_236 = arith.constant 112 : index
    %c0_237 = arith.constant 0 : index
    %216 = vector.load %arg7[%c112_236, %c0_237] : memref<128x4xbf16, #tpu.memory_space<vmem>>, vector<16x4xbf16>
    tpu.vector_store %arg7[%c112_236, %c0_237], %215 {strides = array<i32>} : memref<128x4xbf16, #tpu.memory_space<vmem>>, vector<16x4xbf16>,
    %c0_238 = arith.constant 0 : index
    %c0_239 = arith.constant 0 : index
    %217 = vector.load %arg8[%c0_238, %c0_239] : memref<128x128xf32, #tpu.memory_space<vmem>>, vector<128x128xf32>
    %c0_240 = arith.constant 0 : index
    %c0_241 = arith.constant 0 : index
    %218 = vector.load %arg7[%c0_240, %c0_241] : memref<128x4xbf16, #tpu.memory_space<vmem>>, vector<128x4xbf16>
    %c3 = arith.constant 3 : index
    %c0_242 = arith.constant 0 : index
    %c0_243 = arith.constant 0 : index
    %219 = vector.load %arg3[%c3, %c0_242, %c0_243] : memref<9x4x128xbf16, #tpu.memory_space<vmem>>, vector<1x4x128xbf16>
    %220 = vector.shape_cast %219 : vector<1x4x128xbf16> to vector<4x128xbf16>
    %cst_244 = arith.constant dense<0.000000e+00> : vector<128x128xf32>
    %221 = tpu.matmul %218, %220, %cst_244 {dimension_numbers = #tpu.dot_dimension_numbers<[1], [0], [0], [1], [0, 0, 1, 1], [], []>} : vector<128x4xbf16>, vector<4x128xbf16>, vector<128x128xf32> -> vector<128x128xf32>
    %222 = arith.addf %217, %221 : vector<128x128xf32>
    %c0_245 = arith.constant 0 : index
    %c0_246 = arith.constant 0 : index
    %223 = vector.load %arg8[%c0_245, %c0_246] : memref<128x128xf32, #tpu.memory_space<vmem>>, vector<128x128xf32>
    tpu.vector_store %arg8[%c0_245, %c0_246], %222 {strides = array<i32>} : memref<128x128xf32, #tpu.memory_space<vmem>>, vector<128x128xf32>,
    %c0_i32_247 = arith.constant 0 : i32
    %224 = arith.addi %1, %c0_i32_247 : i32
    %c1_i32_248 = arith.constant 1 : i32
    %225 = arith.addi %224, %c1_i32_248 : i32
    %c0_249 = arith.constant 0 : index
    %226 = arith.index_cast %225 : i32 to index
    %c1_250 = arith.constant 1 : index
    %c0_251 = arith.constant 0 : index
    %227 = vector.load %arg2[%c0_249, %226, %c1_250, %c0_251] : memref<1x18x18x4xbf16, #tpu.memory_space<vmem>>, vector<1x1x16x4xbf16>
    %228 = vector.shape_cast %227 : vector<1x1x16x4xbf16> to vector<16x4xbf16>
    %c0_252 = arith.constant 0 : index
    %c0_253 = arith.constant 0 : index
    %229 = vector.load %arg7[%c0_252, %c0_253] : memref<128x4xbf16, #tpu.memory_space<vmem>>, vector<16x4xbf16>
    tpu.vector_store %arg7[%c0_252, %c0_253], %228 {strides = array<i32>} : memref<128x4xbf16, #tpu.memory_space<vmem>>, vector<16x4xbf16>,
    %c1_i32_254 = arith.constant 1 : i32
    %230 = arith.addi %1, %c1_i32_254 : i32
    %c1_i32_255 = arith.constant 1 : i32
    %231 = arith.addi %230, %c1_i32_255 : i32
    %c0_256 = arith.constant 0 : index
    %232 = arith.index_cast %231 : i32 to index
    %c1_257 = arith.constant 1 : index
    %c0_258 = arith.constant 0 : index
    %233 = vector.load %arg2[%c0_256, %232, %c1_257, %c0_258] : memref<1x18x18x4xbf16, #tpu.memory_space<vmem>>, vector<1x1x16x4xbf16>
    %234 = vector.shape_cast %233 : vector<1x1x16x4xbf16> to vector<16x4xbf16>
    %c16_259 = arith.constant 16 : index
    %c0_260 = arith.constant 0 : index
    %235 = vector.load %arg7[%c16_259, %c0_260] : memref<128x4xbf16, #tpu.memory_space<vmem>>, vector<16x4xbf16>
    tpu.vector_store %arg7[%c16_259, %c0_260], %234 {strides = array<i32>} : memref<128x4xbf16, #tpu.memory_space<vmem>>, vector<16x4xbf16>,
    %c2_i32_261 = arith.constant 2 : i32
    %236 = arith.addi %1, %c2_i32_261 : i32
    %c1_i32_262 = arith.constant 1 : i32
    %237 = arith.addi %236, %c1_i32_262 : i32
    %c0_263 = arith.constant 0 : index
    %238 = arith.index_cast %237 : i32 to index
    %c1_264 = arith.constant 1 : index
    %c0_265 = arith.constant 0 : index
    %239 = vector.load %arg2[%c0_263, %238, %c1_264, %c0_265] : memref<1x18x18x4xbf16, #tpu.memory_space<vmem>>, vector<1x1x16x4xbf16>
    %240 = vector.shape_cast %239 : vector<1x1x16x4xbf16> to vector<16x4xbf16>
    %c32_266 = arith.constant 32 : index
    %c0_267 = arith.constant 0 : index
    %241 = vector.load %arg7[%c32_266, %c0_267] : memref<128x4xbf16, #tpu.memory_space<vmem>>, vector<16x4xbf16>
    tpu.vector_store %arg7[%c32_266, %c0_267], %240 {strides = array<i32>} : memref<128x4xbf16, #tpu.memory_space<vmem>>, vector<16x4xbf16>,
    %c3_i32_268 = arith.constant 3 : i32
    %242 = arith.addi %1, %c3_i32_268 : i32
    %c1_i32_269 = arith.constant 1 : i32
    %243 = arith.addi %242, %c1_i32_269 : i32
    %c0_270 = arith.constant 0 : index
    %244 = arith.index_cast %243 : i32 to index
    %c1_271 = arith.constant 1 : index
    %c0_272 = arith.constant 0 : index
    %245 = vector.load %arg2[%c0_270, %244, %c1_271, %c0_272] : memref<1x18x18x4xbf16, #tpu.memory_space<vmem>>, vector<1x1x16x4xbf16>
    %246 = vector.shape_cast %245 : vector<1x1x16x4xbf16> to vector<16x4xbf16>
    %c48_273 = arith.constant 48 : index
    %c0_274 = arith.constant 0 : index
    %247 = vector.load %arg7[%c48_273, %c0_274] : memref<128x4xbf16, #tpu.memory_space<vmem>>, vector<16x4xbf16>
    tpu.vector_store %arg7[%c48_273, %c0_274], %246 {strides = array<i32>} : memref<128x4xbf16, #tpu.memory_space<vmem>>, vector<16x4xbf16>,
    %c4_i32_275 = arith.constant 4 : i32
    %248 = arith.addi %1, %c4_i32_275 : i32
    %c1_i32_276 = arith.constant 1 : i32
    %249 = arith.addi %248, %c1_i32_276 : i32
    %c0_277 = arith.constant 0 : index
    %250 = arith.index_cast %249 : i32 to index
    %c1_278 = arith.constant 1 : index
    %c0_279 = arith.constant 0 : index
    %251 = vector.load %arg2[%c0_277, %250, %c1_278, %c0_279] : memref<1x18x18x4xbf16, #tpu.memory_space<vmem>>, vector<1x1x16x4xbf16>
    %252 = vector.shape_cast %251 : vector<1x1x16x4xbf16> to vector<16x4xbf16>
    %c64_280 = arith.constant 64 : index
    %c0_281 = arith.constant 0 : index
    %253 = vector.load %arg7[%c64_280, %c0_281] : memref<128x4xbf16, #tpu.memory_space<vmem>>, vector<16x4xbf16>
    tpu.vector_store %arg7[%c64_280, %c0_281], %252 {strides = array<i32>} : memref<128x4xbf16, #tpu.memory_space<vmem>>, vector<16x4xbf16>,
    %c5_i32_282 = arith.constant 5 : i32
    %254 = arith.addi %1, %c5_i32_282 : i32
    %c1_i32_283 = arith.constant 1 : i32
    %255 = arith.addi %254, %c1_i32_283 : i32
    %c0_284 = arith.constant 0 : index
    %256 = arith.index_cast %255 : i32 to index
    %c1_285 = arith.constant 1 : index
    %c0_286 = arith.constant 0 : index
    %257 = vector.load %arg2[%c0_284, %256, %c1_285, %c0_286] : memref<1x18x18x4xbf16, #tpu.memory_space<vmem>>, vector<1x1x16x4xbf16>
    %258 = vector.shape_cast %257 : vector<1x1x16x4xbf16> to vector<16x4xbf16>
    %c80_287 = arith.constant 80 : index
    %c0_288 = arith.constant 0 : index
    %259 = vector.load %arg7[%c80_287, %c0_288] : memref<128x4xbf16, #tpu.memory_space<vmem>>, vector<16x4xbf16>
    tpu.vector_store %arg7[%c80_287, %c0_288], %258 {strides = array<i32>} : memref<128x4xbf16, #tpu.memory_space<vmem>>, vector<16x4xbf16>,
    %c6_i32_289 = arith.constant 6 : i32
    %260 = arith.addi %1, %c6_i32_289 : i32
    %c1_i32_290 = arith.constant 1 : i32
    %261 = arith.addi %260, %c1_i32_290 : i32
    %c0_291 = arith.constant 0 : index
    %262 = arith.index_cast %261 : i32 to index
    %c1_292 = arith.constant 1 : index
    %c0_293 = arith.constant 0 : index
    %263 = vector.load %arg2[%c0_291, %262, %c1_292, %c0_293] : memref<1x18x18x4xbf16, #tpu.memory_space<vmem>>, vector<1x1x16x4xbf16>
    %264 = vector.shape_cast %263 : vector<1x1x16x4xbf16> to vector<16x4xbf16>
    %c96_294 = arith.constant 96 : index
    %c0_295 = arith.constant 0 : index
    %265 = vector.load %arg7[%c96_294, %c0_295] : memref<128x4xbf16, #tpu.memory_space<vmem>>, vector<16x4xbf16>
    tpu.vector_store %arg7[%c96_294, %c0_295], %264 {strides = array<i32>} : memref<128x4xbf16, #tpu.memory_space<vmem>>, vector<16x4xbf16>,
    %c7_i32_296 = arith.constant 7 : i32
    %266 = arith.addi %1, %c7_i32_296 : i32
    %c1_i32_297 = arith.constant 1 : i32
    %267 = arith.addi %266, %c1_i32_297 : i32
    %c0_298 = arith.constant 0 : index
    %268 = arith.index_cast %267 : i32 to index
    %c1_299 = arith.constant 1 : index
    %c0_300 = arith.constant 0 : index
    %269 = vector.load %arg2[%c0_298, %268, %c1_299, %c0_300] : memref<1x18x18x4xbf16, #tpu.memory_space<vmem>>, vector<1x1x16x4xbf16>
    %270 = vector.shape_cast %269 : vector<1x1x16x4xbf16> to vector<16x4xbf16>
    %c112_301 = arith.constant 112 : index
    %c0_302 = arith.constant 0 : index
    %271 = vector.load %arg7[%c112_301, %c0_302] : memref<128x4xbf16, #tpu.memory_space<vmem>>, vector<16x4xbf16>
    tpu.vector_store %arg7[%c112_301, %c0_302], %270 {strides = array<i32>} : memref<128x4xbf16, #tpu.memory_space<vmem>>, vector<16x4xbf16>,
    %c0_303 = arith.constant 0 : index
    %c0_304 = arith.constant 0 : index
    %272 = vector.load %arg8[%c0_303, %c0_304] : memref<128x128xf32, #tpu.memory_space<vmem>>, vector<128x128xf32>
    %c0_305 = arith.constant 0 : index
    %c0_306 = arith.constant 0 : index
    %273 = vector.load %arg7[%c0_305, %c0_306] : memref<128x4xbf16, #tpu.memory_space<vmem>>, vector<128x4xbf16>
    %c4 = arith.constant 4 : index
    %c0_307 = arith.constant 0 : index
    %c0_308 = arith.constant 0 : index
    %274 = vector.load %arg3[%c4, %c0_307, %c0_308] : memref<9x4x128xbf16, #tpu.memory_space<vmem>>, vector<1x4x128xbf16>
    %275 = vector.shape_cast %274 : vector<1x4x128xbf16> to vector<4x128xbf16>
    %cst_309 = arith.constant dense<0.000000e+00> : vector<128x128xf32>
    %276 = tpu.matmul %273, %275, %cst_309 {dimension_numbers = #tpu.dot_dimension_numbers<[1], [0], [0], [1], [0, 0, 1, 1], [], []>} : vector<128x4xbf16>, vector<4x128xbf16>, vector<128x128xf32> -> vector<128x128xf32>
    %277 = arith.addf %272, %276 : vector<128x128xf32>
    %c0_310 = arith.constant 0 : index
    %c0_311 = arith.constant 0 : index
    %278 = vector.load %arg8[%c0_310, %c0_311] : memref<128x128xf32, #tpu.memory_space<vmem>>, vector<128x128xf32>
    tpu.vector_store %arg8[%c0_310, %c0_311], %277 {strides = array<i32>} : memref<128x128xf32, #tpu.memory_space<vmem>>, vector<128x128xf32>,
    %c0_i32_312 = arith.constant 0 : i32
    %279 = arith.addi %1, %c0_i32_312 : i32
    %c1_i32_313 = arith.constant 1 : i32
    %280 = arith.addi %279, %c1_i32_313 : i32
    %c0_314 = arith.constant 0 : index
    %281 = arith.index_cast %280 : i32 to index
    %c2_315 = arith.constant 2 : index
    %c0_316 = arith.constant 0 : index
    %282 = vector.load %arg2[%c0_314, %281, %c2_315, %c0_316] : memref<1x18x18x4xbf16, #tpu.memory_space<vmem>>, vector<1x1x16x4xbf16>
    %283 = vector.shape_cast %282 : vector<1x1x16x4xbf16> to vector<16x4xbf16>
    %c0_317 = arith.constant 0 : index
    %c0_318 = arith.constant 0 : index
    %284 = vector.load %arg7[%c0_317, %c0_318] : memref<128x4xbf16, #tpu.memory_space<vmem>>, vector<16x4xbf16>
    tpu.vector_store %arg7[%c0_317, %c0_318], %283 {strides = array<i32>} : memref<128x4xbf16, #tpu.memory_space<vmem>>, vector<16x4xbf16>,
    %c1_i32_319 = arith.constant 1 : i32
    %285 = arith.addi %1, %c1_i32_319 : i32
    %c1_i32_320 = arith.constant 1 : i32
    %286 = arith.addi %285, %c1_i32_320 : i32
    %c0_321 = arith.constant 0 : index
    %287 = arith.index_cast %286 : i32 to index
    %c2_322 = arith.constant 2 : index
    %c0_323 = arith.constant 0 : index
    %288 = vector.load %arg2[%c0_321, %287, %c2_322, %c0_323] : memref<1x18x18x4xbf16, #tpu.memory_space<vmem>>, vector<1x1x16x4xbf16>
    %289 = vector.shape_cast %288 : vector<1x1x16x4xbf16> to vector<16x4xbf16>
    %c16_324 = arith.constant 16 : index
    %c0_325 = arith.constant 0 : index
    %290 = vector.load %arg7[%c16_324, %c0_325] : memref<128x4xbf16, #tpu.memory_space<vmem>>, vector<16x4xbf16>
    tpu.vector_store %arg7[%c16_324, %c0_325], %289 {strides = array<i32>} : memref<128x4xbf16, #tpu.memory_space<vmem>>, vector<16x4xbf16>,
    %c2_i32_326 = arith.constant 2 : i32
    %291 = arith.addi %1, %c2_i32_326 : i32
    %c1_i32_327 = arith.constant 1 : i32
    %292 = arith.addi %291, %c1_i32_327 : i32
    %c0_328 = arith.constant 0 : index
    %293 = arith.index_cast %292 : i32 to index
    %c2_329 = arith.constant 2 : index
    %c0_330 = arith.constant 0 : index
    %294 = vector.load %arg2[%c0_328, %293, %c2_329, %c0_330] : memref<1x18x18x4xbf16, #tpu.memory_space<vmem>>, vector<1x1x16x4xbf16>
    %295 = vector.shape_cast %294 : vector<1x1x16x4xbf16> to vector<16x4xbf16>
    %c32_331 = arith.constant 32 : index
    %c0_332 = arith.constant 0 : index
    %296 = vector.load %arg7[%c32_331, %c0_332] : memref<128x4xbf16, #tpu.memory_space<vmem>>, vector<16x4xbf16>
    tpu.vector_store %arg7[%c32_331, %c0_332], %295 {strides = array<i32>} : memref<128x4xbf16, #tpu.memory_space<vmem>>, vector<16x4xbf16>,
    %c3_i32_333 = arith.constant 3 : i32
    %297 = arith.addi %1, %c3_i32_333 : i32
    %c1_i32_334 = arith.constant 1 : i32
    %298 = arith.addi %297, %c1_i32_334 : i32
    %c0_335 = arith.constant 0 : index
    %299 = arith.index_cast %298 : i32 to index
    %c2_336 = arith.constant 2 : index
    %c0_337 = arith.constant 0 : index
    %300 = vector.load %arg2[%c0_335, %299, %c2_336, %c0_337] : memref<1x18x18x4xbf16, #tpu.memory_space<vmem>>, vector<1x1x16x4xbf16>
    %301 = vector.shape_cast %300 : vector<1x1x16x4xbf16> to vector<16x4xbf16>
    %c48_338 = arith.constant 48 : index
    %c0_339 = arith.constant 0 : index
    %302 = vector.load %arg7[%c48_338, %c0_339] : memref<128x4xbf16, #tpu.memory_space<vmem>>, vector<16x4xbf16>
    tpu.vector_store %arg7[%c48_338, %c0_339], %301 {strides = array<i32>} : memref<128x4xbf16, #tpu.memory_space<vmem>>, vector<16x4xbf16>,
    %c4_i32_340 = arith.constant 4 : i32
    %303 = arith.addi %1, %c4_i32_340 : i32
    %c1_i32_341 = arith.constant 1 : i32
    %304 = arith.addi %303, %c1_i32_341 : i32
    %c0_342 = arith.constant 0 : index
    %305 = arith.index_cast %304 : i32 to index
    %c2_343 = arith.constant 2 : index
    %c0_344 = arith.constant 0 : index
    %306 = vector.load %arg2[%c0_342, %305, %c2_343, %c0_344] : memref<1x18x18x4xbf16, #tpu.memory_space<vmem>>, vector<1x1x16x4xbf16>
    %307 = vector.shape_cast %306 : vector<1x1x16x4xbf16> to vector<16x4xbf16>
    %c64_345 = arith.constant 64 : index
    %c0_346 = arith.constant 0 : index
    %308 = vector.load %arg7[%c64_345, %c0_346] : memref<128x4xbf16, #tpu.memory_space<vmem>>, vector<16x4xbf16>
    tpu.vector_store %arg7[%c64_345, %c0_346], %307 {strides = array<i32>} : memref<128x4xbf16, #tpu.memory_space<vmem>>, vector<16x4xbf16>,
    %c5_i32_347 = arith.constant 5 : i32
    %309 = arith.addi %1, %c5_i32_347 : i32
    %c1_i32_348 = arith.constant 1 : i32
    %310 = arith.addi %309, %c1_i32_348 : i32
    %c0_349 = arith.constant 0 : index
    %311 = arith.index_cast %310 : i32 to index
    %c2_350 = arith.constant 2 : index
    %c0_351 = arith.constant 0 : index
    %312 = vector.load %arg2[%c0_349, %311, %c2_350, %c0_351] : memref<1x18x18x4xbf16, #tpu.memory_space<vmem>>, vector<1x1x16x4xbf16>
    %313 = vector.shape_cast %312 : vector<1x1x16x4xbf16> to vector<16x4xbf16>
    %c80_352 = arith.constant 80 : index
    %c0_353 = arith.constant 0 : index
    %314 = vector.load %arg7[%c80_352, %c0_353] : memref<128x4xbf16, #tpu.memory_space<vmem>>, vector<16x4xbf16>
    tpu.vector_store %arg7[%c80_352, %c0_353], %313 {strides = array<i32>} : memref<128x4xbf16, #tpu.memory_space<vmem>>, vector<16x4xbf16>,
    %c6_i32_354 = arith.constant 6 : i32
    %315 = arith.addi %1, %c6_i32_354 : i32
    %c1_i32_355 = arith.constant 1 : i32
    %316 = arith.addi %315, %c1_i32_355 : i32
    %c0_356 = arith.constant 0 : index
    %317 = arith.index_cast %316 : i32 to index
    %c2_357 = arith.constant 2 : index
    %c0_358 = arith.constant 0 : index
    %318 = vector.load %arg2[%c0_356, %317, %c2_357, %c0_358] : memref<1x18x18x4xbf16, #tpu.memory_space<vmem>>, vector<1x1x16x4xbf16>
    %319 = vector.shape_cast %318 : vector<1x1x16x4xbf16> to vector<16x4xbf16>
    %c96_359 = arith.constant 96 : index
    %c0_360 = arith.constant 0 : index
    %320 = vector.load %arg7[%c96_359, %c0_360] : memref<128x4xbf16, #tpu.memory_space<vmem>>, vector<16x4xbf16>
    tpu.vector_store %arg7[%c96_359, %c0_360], %319 {strides = array<i32>} : memref<128x4xbf16, #tpu.memory_space<vmem>>, vector<16x4xbf16>,
    %c7_i32_361 = arith.constant 7 : i32
    %321 = arith.addi %1, %c7_i32_361 : i32
    %c1_i32_362 = arith.constant 1 : i32
    %322 = arith.addi %321, %c1_i32_362 : i32
    %c0_363 = arith.constant 0 : index
    %323 = arith.index_cast %322 : i32 to index
    %c2_364 = arith.constant 2 : index
    %c0_365 = arith.constant 0 : index
    %324 = vector.load %arg2[%c0_363, %323, %c2_364, %c0_365] : memref<1x18x18x4xbf16, #tpu.memory_space<vmem>>, vector<1x1x16x4xbf16>
    %325 = vector.shape_cast %324 : vector<1x1x16x4xbf16> to vector<16x4xbf16>
    %c112_366 = arith.constant 112 : index
    %c0_367 = arith.constant 0 : index
    %326 = vector.load %arg7[%c112_366, %c0_367] : memref<128x4xbf16, #tpu.memory_space<vmem>>, vector<16x4xbf16>
    tpu.vector_store %arg7[%c112_366, %c0_367], %325 {strides = array<i32>} : memref<128x4xbf16, #tpu.memory_space<vmem>>, vector<16x4xbf16>,
    %c0_368 = arith.constant 0 : index
    %c0_369 = arith.constant 0 : index
    %327 = vector.load %arg8[%c0_368, %c0_369] : memref<128x128xf32, #tpu.memory_space<vmem>>, vector<128x128xf32>
    %c0_370 = arith.constant 0 : index
    %c0_371 = arith.constant 0 : index
    %328 = vector.load %arg7[%c0_370, %c0_371] : memref<128x4xbf16, #tpu.memory_space<vmem>>, vector<128x4xbf16>
    %c5 = arith.constant 5 : index
    %c0_372 = arith.constant 0 : index
    %c0_373 = arith.constant 0 : index
    %329 = vector.load %arg3[%c5, %c0_372, %c0_373] : memref<9x4x128xbf16, #tpu.memory_space<vmem>>, vector<1x4x128xbf16>
    %330 = vector.shape_cast %329 : vector<1x4x128xbf16> to vector<4x128xbf16>
    %cst_374 = arith.constant dense<0.000000e+00> : vector<128x128xf32>
    %331 = tpu.matmul %328, %330, %cst_374 {dimension_numbers = #tpu.dot_dimension_numbers<[1], [0], [0], [1], [0, 0, 1, 1], [], []>} : vector<128x4xbf16>, vector<4x128xbf16>, vector<128x128xf32> -> vector<128x128xf32>
    %332 = arith.addf %327, %331 : vector<128x128xf32>
    %c0_375 = arith.constant 0 : index
    %c0_376 = arith.constant 0 : index
    %333 = vector.load %arg8[%c0_375, %c0_376] : memref<128x128xf32, #tpu.memory_space<vmem>>, vector<128x128xf32>
    tpu.vector_store %arg8[%c0_375, %c0_376], %332 {strides = array<i32>} : memref<128x128xf32, #tpu.memory_space<vmem>>, vector<128x128xf32>,
    %c0_i32_377 = arith.constant 0 : i32
    %334 = arith.addi %1, %c0_i32_377 : i32
    %c2_i32_378 = arith.constant 2 : i32
    %335 = arith.addi %334, %c2_i32_378 : i32
    %c0_379 = arith.constant 0 : index
    %336 = arith.index_cast %335 : i32 to index
    %c0_380 = arith.constant 0 : index
    %c0_381 = arith.constant 0 : index
    %337 = vector.load %arg2[%c0_379, %336, %c0_380, %c0_381] : memref<1x18x18x4xbf16, #tpu.memory_space<vmem>>, vector<1x1x16x4xbf16>
    %338 = vector.shape_cast %337 : vector<1x1x16x4xbf16> to vector<16x4xbf16>
    %c0_382 = arith.constant 0 : index
    %c0_383 = arith.constant 0 : index
    %339 = vector.load %arg7[%c0_382, %c0_383] : memref<128x4xbf16, #tpu.memory_space<vmem>>, vector<16x4xbf16>
    tpu.vector_store %arg7[%c0_382, %c0_383], %338 {strides = array<i32>} : memref<128x4xbf16, #tpu.memory_space<vmem>>, vector<16x4xbf16>,
    %c1_i32_384 = arith.constant 1 : i32
    %340 = arith.addi %1, %c1_i32_384 : i32
    %c2_i32_385 = arith.constant 2 : i32
    %341 = arith.addi %340, %c2_i32_385 : i32
    %c0_386 = arith.constant 0 : index
    %342 = arith.index_cast %341 : i32 to index
    %c0_387 = arith.constant 0 : index
    %c0_388 = arith.constant 0 : index
    %343 = vector.load %arg2[%c0_386, %342, %c0_387, %c0_388] : memref<1x18x18x4xbf16, #tpu.memory_space<vmem>>, vector<1x1x16x4xbf16>
    %344 = vector.shape_cast %343 : vector<1x1x16x4xbf16> to vector<16x4xbf16>
    %c16_389 = arith.constant 16 : index
    %c0_390 = arith.constant 0 : index
    %345 = vector.load %arg7[%c16_389, %c0_390] : memref<128x4xbf16, #tpu.memory_space<vmem>>, vector<16x4xbf16>
    tpu.vector_store %arg7[%c16_389, %c0_390], %344 {strides = array<i32>} : memref<128x4xbf16, #tpu.memory_space<vmem>>, vector<16x4xbf16>,
    %c2_i32_391 = arith.constant 2 : i32
    %346 = arith.addi %1, %c2_i32_391 : i32
    %c2_i32_392 = arith.constant 2 : i32
    %347 = arith.addi %346, %c2_i32_392 : i32
    %c0_393 = arith.constant 0 : index
    %348 = arith.index_cast %347 : i32 to index
    %c0_394 = arith.constant 0 : index
    %c0_395 = arith.constant 0 : index
    %349 = vector.load %arg2[%c0_393, %348, %c0_394, %c0_395] : memref<1x18x18x4xbf16, #tpu.memory_space<vmem>>, vector<1x1x16x4xbf16>
    %350 = vector.shape_cast %349 : vector<1x1x16x4xbf16> to vector<16x4xbf16>
    %c32_396 = arith.constant 32 : index
    %c0_397 = arith.constant 0 : index
    %351 = vector.load %arg7[%c32_396, %c0_397] : memref<128x4xbf16, #tpu.memory_space<vmem>>, vector<16x4xbf16>
    tpu.vector_store %arg7[%c32_396, %c0_397], %350 {strides = array<i32>} : memref<128x4xbf16, #tpu.memory_space<vmem>>, vector<16x4xbf16>,
    %c3_i32_398 = arith.constant 3 : i32
    %352 = arith.addi %1, %c3_i32_398 : i32
    %c2_i32_399 = arith.constant 2 : i32
    %353 = arith.addi %352, %c2_i32_399 : i32
    %c0_400 = arith.constant 0 : index
    %354 = arith.index_cast %353 : i32 to index
    %c0_401 = arith.constant 0 : index
    %c0_402 = arith.constant 0 : index
    %355 = vector.load %arg2[%c0_400, %354, %c0_401, %c0_402] : memref<1x18x18x4xbf16, #tpu.memory_space<vmem>>, vector<1x1x16x4xbf16>
    %356 = vector.shape_cast %355 : vector<1x1x16x4xbf16> to vector<16x4xbf16>
    %c48_403 = arith.constant 48 : index
    %c0_404 = arith.constant 0 : index
    %357 = vector.load %arg7[%c48_403, %c0_404] : memref<128x4xbf16, #tpu.memory_space<vmem>>, vector<16x4xbf16>
    tpu.vector_store %arg7[%c48_403, %c0_404], %356 {strides = array<i32>} : memref<128x4xbf16, #tpu.memory_space<vmem>>, vector<16x4xbf16>,
    %c4_i32_405 = arith.constant 4 : i32
    %358 = arith.addi %1, %c4_i32_405 : i32
    %c2_i32_406 = arith.constant 2 : i32
    %359 = arith.addi %358, %c2_i32_406 : i32
    %c0_407 = arith.constant 0 : index
    %360 = arith.index_cast %359 : i32 to index
    %c0_408 = arith.constant 0 : index
    %c0_409 = arith.constant 0 : index
    %361 = vector.load %arg2[%c0_407, %360, %c0_408, %c0_409] : memref<1x18x18x4xbf16, #tpu.memory_space<vmem>>, vector<1x1x16x4xbf16>
    %362 = vector.shape_cast %361 : vector<1x1x16x4xbf16> to vector<16x4xbf16>
    %c64_410 = arith.constant 64 : index
    %c0_411 = arith.constant 0 : index
    %363 = vector.load %arg7[%c64_410, %c0_411] : memref<128x4xbf16, #tpu.memory_space<vmem>>, vector<16x4xbf16>
    tpu.vector_store %arg7[%c64_410, %c0_411], %362 {strides = array<i32>} : memref<128x4xbf16, #tpu.memory_space<vmem>>, vector<16x4xbf16>,
    %c5_i32_412 = arith.constant 5 : i32
    %364 = arith.addi %1, %c5_i32_412 : i32
    %c2_i32_413 = arith.constant 2 : i32
    %365 = arith.addi %364, %c2_i32_413 : i32
    %c0_414 = arith.constant 0 : index
    %366 = arith.index_cast %365 : i32 to index
    %c0_415 = arith.constant 0 : index
    %c0_416 = arith.constant 0 : index
    %367 = vector.load %arg2[%c0_414, %366, %c0_415, %c0_416] : memref<1x18x18x4xbf16, #tpu.memory_space<vmem>>, vector<1x1x16x4xbf16>
    %368 = vector.shape_cast %367 : vector<1x1x16x4xbf16> to vector<16x4xbf16>
    %c80_417 = arith.constant 80 : index
    %c0_418 = arith.constant 0 : index
    %369 = vector.load %arg7[%c80_417, %c0_418] : memref<128x4xbf16, #tpu.memory_space<vmem>>, vector<16x4xbf16>
    tpu.vector_store %arg7[%c80_417, %c0_418], %368 {strides = array<i32>} : memref<128x4xbf16, #tpu.memory_space<vmem>>, vector<16x4xbf16>,
    %c6_i32_419 = arith.constant 6 : i32
    %370 = arith.addi %1, %c6_i32_419 : i32
    %c2_i32_420 = arith.constant 2 : i32
    %371 = arith.addi %370, %c2_i32_420 : i32
    %c0_421 = arith.constant 0 : index
    %372 = arith.index_cast %371 : i32 to index
    %c0_422 = arith.constant 0 : index
    %c0_423 = arith.constant 0 : index
    %373 = vector.load %arg2[%c0_421, %372, %c0_422, %c0_423] : memref<1x18x18x4xbf16, #tpu.memory_space<vmem>>, vector<1x1x16x4xbf16>
    %374 = vector.shape_cast %373 : vector<1x1x16x4xbf16> to vector<16x4xbf16>
    %c96_424 = arith.constant 96 : index
    %c0_425 = arith.constant 0 : index
    %375 = vector.load %arg7[%c96_424, %c0_425] : memref<128x4xbf16, #tpu.memory_space<vmem>>, vector<16x4xbf16>
    tpu.vector_store %arg7[%c96_424, %c0_425], %374 {strides = array<i32>} : memref<128x4xbf16, #tpu.memory_space<vmem>>, vector<16x4xbf16>,
    %c7_i32_426 = arith.constant 7 : i32
    %376 = arith.addi %1, %c7_i32_426 : i32
    %c2_i32_427 = arith.constant 2 : i32
    %377 = arith.addi %376, %c2_i32_427 : i32
    %c0_428 = arith.constant 0 : index
    %378 = arith.index_cast %377 : i32 to index
    %c0_429 = arith.constant 0 : index
    %c0_430 = arith.constant 0 : index
    %379 = vector.load %arg2[%c0_428, %378, %c0_429, %c0_430] : memref<1x18x18x4xbf16, #tpu.memory_space<vmem>>, vector<1x1x16x4xbf16>
    %380 = vector.shape_cast %379 : vector<1x1x16x4xbf16> to vector<16x4xbf16>
    %c112_431 = arith.constant 112 : index
    %c0_432 = arith.constant 0 : index
    %381 = vector.load %arg7[%c112_431, %c0_432] : memref<128x4xbf16, #tpu.memory_space<vmem>>, vector<16x4xbf16>
    tpu.vector_store %arg7[%c112_431, %c0_432], %380 {strides = array<i32>} : memref<128x4xbf16, #tpu.memory_space<vmem>>, vector<16x4xbf16>,
    %c0_433 = arith.constant 0 : index
    %c0_434 = arith.constant 0 : index
    %382 = vector.load %arg8[%c0_433, %c0_434] : memref<128x128xf32, #tpu.memory_space<vmem>>, vector<128x128xf32>
    %c0_435 = arith.constant 0 : index
    %c0_436 = arith.constant 0 : index
    %383 = vector.load %arg7[%c0_435, %c0_436] : memref<128x4xbf16, #tpu.memory_space<vmem>>, vector<128x4xbf16>
    %c6 = arith.constant 6 : index
    %c0_437 = arith.constant 0 : index
    %c0_438 = arith.constant 0 : index
    %384 = vector.load %arg3[%c6, %c0_437, %c0_438] : memref<9x4x128xbf16, #tpu.memory_space<vmem>>, vector<1x4x128xbf16>
    %385 = vector.shape_cast %384 : vector<1x4x128xbf16> to vector<4x128xbf16>
    %cst_439 = arith.constant dense<0.000000e+00> : vector<128x128xf32>
    %386 = tpu.matmul %383, %385, %cst_439 {dimension_numbers = #tpu.dot_dimension_numbers<[1], [0], [0], [1], [0, 0, 1, 1], [], []>} : vector<128x4xbf16>, vector<4x128xbf16>, vector<128x128xf32> -> vector<128x128xf32>
    %387 = arith.addf %382, %386 : vector<128x128xf32>
    %c0_440 = arith.constant 0 : index
    %c0_441 = arith.constant 0 : index
    %388 = vector.load %arg8[%c0_440, %c0_441] : memref<128x128xf32, #tpu.memory_space<vmem>>, vector<128x128xf32>
    tpu.vector_store %arg8[%c0_440, %c0_441], %387 {strides = array<i32>} : memref<128x128xf32, #tpu.memory_space<vmem>>, vector<128x128xf32>,
    %c0_i32_442 = arith.constant 0 : i32
    %389 = arith.addi %1, %c0_i32_442 : i32
    %c2_i32_443 = arith.constant 2 : i32
    %390 = arith.addi %389, %c2_i32_443 : i32
    %c0_444 = arith.constant 0 : index
    %391 = arith.index_cast %390 : i32 to index
    %c1_445 = arith.constant 1 : index
    %c0_446 = arith.constant 0 : index
    %392 = vector.load %arg2[%c0_444, %391, %c1_445, %c0_446] : memref<1x18x18x4xbf16, #tpu.memory_space<vmem>>, vector<1x1x16x4xbf16>
    %393 = vector.shape_cast %392 : vector<1x1x16x4xbf16> to vector<16x4xbf16>
    %c0_447 = arith.constant 0 : index
    %c0_448 = arith.constant 0 : index
    %394 = vector.load %arg7[%c0_447, %c0_448] : memref<128x4xbf16, #tpu.memory_space<vmem>>, vector<16x4xbf16>
    tpu.vector_store %arg7[%c0_447, %c0_448], %393 {strides = array<i32>} : memref<128x4xbf16, #tpu.memory_space<vmem>>, vector<16x4xbf16>,
    %c1_i32_449 = arith.constant 1 : i32
    %395 = arith.addi %1, %c1_i32_449 : i32
    %c2_i32_450 = arith.constant 2 : i32
    %396 = arith.addi %395, %c2_i32_450 : i32
    %c0_451 = arith.constant 0 : index
    %397 = arith.index_cast %396 : i32 to index
    %c1_452 = arith.constant 1 : index
    %c0_453 = arith.constant 0 : index
    %398 = vector.load %arg2[%c0_451, %397, %c1_452, %c0_453] : memref<1x18x18x4xbf16, #tpu.memory_space<vmem>>, vector<1x1x16x4xbf16>
    %399 = vector.shape_cast %398 : vector<1x1x16x4xbf16> to vector<16x4xbf16>
    %c16_454 = arith.constant 16 : index
    %c0_455 = arith.constant 0 : index
    %400 = vector.load %arg7[%c16_454, %c0_455] : memref<128x4xbf16, #tpu.memory_space<vmem>>, vector<16x4xbf16>
    tpu.vector_store %arg7[%c16_454, %c0_455], %399 {strides = array<i32>} : memref<128x4xbf16, #tpu.memory_space<vmem>>, vector<16x4xbf16>,
    %c2_i32_456 = arith.constant 2 : i32
    %401 = arith.addi %1, %c2_i32_456 : i32
    %c2_i32_457 = arith.constant 2 : i32
    %402 = arith.addi %401, %c2_i32_457 : i32
    %c0_458 = arith.constant 0 : index
    %403 = arith.index_cast %402 : i32 to index
    %c1_459 = arith.constant 1 : index
    %c0_460 = arith.constant 0 : index
    %404 = vector.load %arg2[%c0_458, %403, %c1_459, %c0_460] : memref<1x18x18x4xbf16, #tpu.memory_space<vmem>>, vector<1x1x16x4xbf16>
    %405 = vector.shape_cast %404 : vector<1x1x16x4xbf16> to vector<16x4xbf16>
    %c32_461 = arith.constant 32 : index
    %c0_462 = arith.constant 0 : index
    %406 = vector.load %arg7[%c32_461, %c0_462] : memref<128x4xbf16, #tpu.memory_space<vmem>>, vector<16x4xbf16>
    tpu.vector_store %arg7[%c32_461, %c0_462], %405 {strides = array<i32>} : memref<128x4xbf16, #tpu.memory_space<vmem>>, vector<16x4xbf16>,
    %c3_i32_463 = arith.constant 3 : i32
    %407 = arith.addi %1, %c3_i32_463 : i32
    %c2_i32_464 = arith.constant 2 : i32
    %408 = arith.addi %407, %c2_i32_464 : i32
    %c0_465 = arith.constant 0 : index
    %409 = arith.index_cast %408 : i32 to index
    %c1_466 = arith.constant 1 : index
    %c0_467 = arith.constant 0 : index
    %410 = vector.load %arg2[%c0_465, %409, %c1_466, %c0_467] : memref<1x18x18x4xbf16, #tpu.memory_space<vmem>>, vector<1x1x16x4xbf16>
    %411 = vector.shape_cast %410 : vector<1x1x16x4xbf16> to vector<16x4xbf16>
    %c48_468 = arith.constant 48 : index
    %c0_469 = arith.constant 0 : index
    %412 = vector.load %arg7[%c48_468, %c0_469] : memref<128x4xbf16, #tpu.memory_space<vmem>>, vector<16x4xbf16>
    tpu.vector_store %arg7[%c48_468, %c0_469], %411 {strides = array<i32>} : memref<128x4xbf16, #tpu.memory_space<vmem>>, vector<16x4xbf16>,
    %c4_i32_470 = arith.constant 4 : i32
    %413 = arith.addi %1, %c4_i32_470 : i32
    %c2_i32_471 = arith.constant 2 : i32
    %414 = arith.addi %413, %c2_i32_471 : i32
    %c0_472 = arith.constant 0 : index
    %415 = arith.index_cast %414 : i32 to index
    %c1_473 = arith.constant 1 : index
    %c0_474 = arith.constant 0 : index
    %416 = vector.load %arg2[%c0_472, %415, %c1_473, %c0_474] : memref<1x18x18x4xbf16, #tpu.memory_space<vmem>>, vector<1x1x16x4xbf16>
    %417 = vector.shape_cast %416 : vector<1x1x16x4xbf16> to vector<16x4xbf16>
    %c64_475 = arith.constant 64 : index
    %c0_476 = arith.constant 0 : index
    %418 = vector.load %arg7[%c64_475, %c0_476] : memref<128x4xbf16, #tpu.memory_space<vmem>>, vector<16x4xbf16>
    tpu.vector_store %arg7[%c64_475, %c0_476], %417 {strides = array<i32>} : memref<128x4xbf16, #tpu.memory_space<vmem>>, vector<16x4xbf16>,
    %c5_i32_477 = arith.constant 5 : i32
    %419 = arith.addi %1, %c5_i32_477 : i32
    %c2_i32_478 = arith.constant 2 : i32
    %420 = arith.addi %419, %c2_i32_478 : i32
    %c0_479 = arith.constant 0 : index
    %421 = arith.index_cast %420 : i32 to index
    %c1_480 = arith.constant 1 : index
    %c0_481 = arith.constant 0 : index
    %422 = vector.load %arg2[%c0_479, %421, %c1_480, %c0_481] : memref<1x18x18x4xbf16, #tpu.memory_space<vmem>>, vector<1x1x16x4xbf16>
    %423 = vector.shape_cast %422 : vector<1x1x16x4xbf16> to vector<16x4xbf16>
    %c80_482 = arith.constant 80 : index
    %c0_483 = arith.constant 0 : index
    %424 = vector.load %arg7[%c80_482, %c0_483] : memref<128x4xbf16, #tpu.memory_space<vmem>>, vector<16x4xbf16>
    tpu.vector_store %arg7[%c80_482, %c0_483], %423 {strides = array<i32>} : memref<128x4xbf16, #tpu.memory_space<vmem>>, vector<16x4xbf16>,
    %c6_i32_484 = arith.constant 6 : i32
    %425 = arith.addi %1, %c6_i32_484 : i32
    %c2_i32_485 = arith.constant 2 : i32
    %426 = arith.addi %425, %c2_i32_485 : i32
    %c0_486 = arith.constant 0 : index
    %427 = arith.index_cast %426 : i32 to index
    %c1_487 = arith.constant 1 : index
    %c0_488 = arith.constant 0 : index
    %428 = vector.load %arg2[%c0_486, %427, %c1_487, %c0_488] : memref<1x18x18x4xbf16, #tpu.memory_space<vmem>>, vector<1x1x16x4xbf16>
    %429 = vector.shape_cast %428 : vector<1x1x16x4xbf16> to vector<16x4xbf16>
    %c96_489 = arith.constant 96 : index
    %c0_490 = arith.constant 0 : index
    %430 = vector.load %arg7[%c96_489, %c0_490] : memref<128x4xbf16, #tpu.memory_space<vmem>>, vector<16x4xbf16>
    tpu.vector_store %arg7[%c96_489, %c0_490], %429 {strides = array<i32>} : memref<128x4xbf16, #tpu.memory_space<vmem>>, vector<16x4xbf16>,
    %c7_i32_491 = arith.constant 7 : i32
    %431 = arith.addi %1, %c7_i32_491 : i32
    %c2_i32_492 = arith.constant 2 : i32
    %432 = arith.addi %431, %c2_i32_492 : i32
    %c0_493 = arith.constant 0 : index
    %433 = arith.index_cast %432 : i32 to index
    %c1_494 = arith.constant 1 : index
    %c0_495 = arith.constant 0 : index
    %434 = vector.load %arg2[%c0_493, %433, %c1_494, %c0_495] : memref<1x18x18x4xbf16, #tpu.memory_space<vmem>>, vector<1x1x16x4xbf16>
    %435 = vector.shape_cast %434 : vector<1x1x16x4xbf16> to vector<16x4xbf16>
    %c112_496 = arith.constant 112 : index
    %c0_497 = arith.constant 0 : index
    %436 = vector.load %arg7[%c112_496, %c0_497] : memref<128x4xbf16, #tpu.memory_space<vmem>>, vector<16x4xbf16>
    tpu.vector_store %arg7[%c112_496, %c0_497], %435 {strides = array<i32>} : memref<128x4xbf16, #tpu.memory_space<vmem>>, vector<16x4xbf16>,
    %c0_498 = arith.constant 0 : index
    %c0_499 = arith.constant 0 : index
    %437 = vector.load %arg8[%c0_498, %c0_499] : memref<128x128xf32, #tpu.memory_space<vmem>>, vector<128x128xf32>
    %c0_500 = arith.constant 0 : index
    %c0_501 = arith.constant 0 : index
    %438 = vector.load %arg7[%c0_500, %c0_501] : memref<128x4xbf16, #tpu.memory_space<vmem>>, vector<128x4xbf16>
    %c7 = arith.constant 7 : index
    %c0_502 = arith.constant 0 : index
    %c0_503 = arith.constant 0 : index
    %439 = vector.load %arg3[%c7, %c0_502, %c0_503] : memref<9x4x128xbf16, #tpu.memory_space<vmem>>, vector<1x4x128xbf16>
    %440 = vector.shape_cast %439 : vector<1x4x128xbf16> to vector<4x128xbf16>
    %cst_504 = arith.constant dense<0.000000e+00> : vector<128x128xf32>
    %441 = tpu.matmul %438, %440, %cst_504 {dimension_numbers = #tpu.dot_dimension_numbers<[1], [0], [0], [1], [0, 0, 1, 1], [], []>} : vector<128x4xbf16>, vector<4x128xbf16>, vector<128x128xf32> -> vector<128x128xf32>
    %442 = arith.addf %437, %441 : vector<128x128xf32>
    %c0_505 = arith.constant 0 : index
    %c0_506 = arith.constant 0 : index
    %443 = vector.load %arg8[%c0_505, %c0_506] : memref<128x128xf32, #tpu.memory_space<vmem>>, vector<128x128xf32>
    tpu.vector_store %arg8[%c0_505, %c0_506], %442 {strides = array<i32>} : memref<128x128xf32, #tpu.memory_space<vmem>>, vector<128x128xf32>,
    %c0_i32_507 = arith.constant 0 : i32
    %444 = arith.addi %1, %c0_i32_507 : i32
    %c2_i32_508 = arith.constant 2 : i32
    %445 = arith.addi %444, %c2_i32_508 : i32
    %c0_509 = arith.constant 0 : index
    %446 = arith.index_cast %445 : i32 to index
    %c2_510 = arith.constant 2 : index
    %c0_511 = arith.constant 0 : index
    %447 = vector.load %arg2[%c0_509, %446, %c2_510, %c0_511] : memref<1x18x18x4xbf16, #tpu.memory_space<vmem>>, vector<1x1x16x4xbf16>
    %448 = vector.shape_cast %447 : vector<1x1x16x4xbf16> to vector<16x4xbf16>
    %c0_512 = arith.constant 0 : index
    %c0_513 = arith.constant 0 : index
    %449 = vector.load %arg7[%c0_512, %c0_513] : memref<128x4xbf16, #tpu.memory_space<vmem>>, vector<16x4xbf16>
    tpu.vector_store %arg7[%c0_512, %c0_513], %448 {strides = array<i32>} : memref<128x4xbf16, #tpu.memory_space<vmem>>, vector<16x4xbf16>,
    %c1_i32_514 = arith.constant 1 : i32
    %450 = arith.addi %1, %c1_i32_514 : i32
    %c2_i32_515 = arith.constant 2 : i32
    %451 = arith.addi %450, %c2_i32_515 : i32
    %c0_516 = arith.constant 0 : index
    %452 = arith.index_cast %451 : i32 to index
    %c2_517 = arith.constant 2 : index
    %c0_518 = arith.constant 0 : index
    %453 = vector.load %arg2[%c0_516, %452, %c2_517, %c0_518] : memref<1x18x18x4xbf16, #tpu.memory_space<vmem>>, vector<1x1x16x4xbf16>
    %454 = vector.shape_cast %453 : vector<1x1x16x4xbf16> to vector<16x4xbf16>
    %c16_519 = arith.constant 16 : index
    %c0_520 = arith.constant 0 : index
    %455 = vector.load %arg7[%c16_519, %c0_520] : memref<128x4xbf16, #tpu.memory_space<vmem>>, vector<16x4xbf16>
    tpu.vector_store %arg7[%c16_519, %c0_520], %454 {strides = array<i32>} : memref<128x4xbf16, #tpu.memory_space<vmem>>, vector<16x4xbf16>,
    %c2_i32_521 = arith.constant 2 : i32
    %456 = arith.addi %1, %c2_i32_521 : i32
    %c2_i32_522 = arith.constant 2 : i32
    %457 = arith.addi %456, %c2_i32_522 : i32
    %c0_523 = arith.constant 0 : index
    %458 = arith.index_cast %457 : i32 to index
    %c2_524 = arith.constant 2 : index
    %c0_525 = arith.constant 0 : index
    %459 = vector.load %arg2[%c0_523, %458, %c2_524, %c0_525] : memref<1x18x18x4xbf16, #tpu.memory_space<vmem>>, vector<1x1x16x4xbf16>
    %460 = vector.shape_cast %459 : vector<1x1x16x4xbf16> to vector<16x4xbf16>
    %c32_526 = arith.constant 32 : index
    %c0_527 = arith.constant 0 : index
    %461 = vector.load %arg7[%c32_526, %c0_527] : memref<128x4xbf16, #tpu.memory_space<vmem>>, vector<16x4xbf16>
    tpu.vector_store %arg7[%c32_526, %c0_527], %460 {strides = array<i32>} : memref<128x4xbf16, #tpu.memory_space<vmem>>, vector<16x4xbf16>,
    %c3_i32_528 = arith.constant 3 : i32
    %462 = arith.addi %1, %c3_i32_528 : i32
    %c2_i32_529 = arith.constant 2 : i32
    %463 = arith.addi %462, %c2_i32_529 : i32
    %c0_530 = arith.constant 0 : index
    %464 = arith.index_cast %463 : i32 to index
    %c2_531 = arith.constant 2 : index
    %c0_532 = arith.constant 0 : index
    %465 = vector.load %arg2[%c0_530, %464, %c2_531, %c0_532] : memref<1x18x18x4xbf16, #tpu.memory_space<vmem>>, vector<1x1x16x4xbf16>
    %466 = vector.shape_cast %465 : vector<1x1x16x4xbf16> to vector<16x4xbf16>
    %c48_533 = arith.constant 48 : index
    %c0_534 = arith.constant 0 : index
    %467 = vector.load %arg7[%c48_533, %c0_534] : memref<128x4xbf16, #tpu.memory_space<vmem>>, vector<16x4xbf16>
    tpu.vector_store %arg7[%c48_533, %c0_534], %466 {strides = array<i32>} : memref<128x4xbf16, #tpu.memory_space<vmem>>, vector<16x4xbf16>,
    %c4_i32_535 = arith.constant 4 : i32
    %468 = arith.addi %1, %c4_i32_535 : i32
    %c2_i32_536 = arith.constant 2 : i32
    %469 = arith.addi %468, %c2_i32_536 : i32
    %c0_537 = arith.constant 0 : index
    %470 = arith.index_cast %469 : i32 to index
    %c2_538 = arith.constant 2 : index
    %c0_539 = arith.constant 0 : index
    %471 = vector.load %arg2[%c0_537, %470, %c2_538, %c0_539] : memref<1x18x18x4xbf16, #tpu.memory_space<vmem>>, vector<1x1x16x4xbf16>
    %472 = vector.shape_cast %471 : vector<1x1x16x4xbf16> to vector<16x4xbf16>
    %c64_540 = arith.constant 64 : index
    %c0_541 = arith.constant 0 : index
    %473 = vector.load %arg7[%c64_540, %c0_541] : memref<128x4xbf16, #tpu.memory_space<vmem>>, vector<16x4xbf16>
    tpu.vector_store %arg7[%c64_540, %c0_541], %472 {strides = array<i32>} : memref<128x4xbf16, #tpu.memory_space<vmem>>, vector<16x4xbf16>,
    %c5_i32_542 = arith.constant 5 : i32
    %474 = arith.addi %1, %c5_i32_542 : i32
    %c2_i32_543 = arith.constant 2 : i32
    %475 = arith.addi %474, %c2_i32_543 : i32
    %c0_544 = arith.constant 0 : index
    %476 = arith.index_cast %475 : i32 to index
    %c2_545 = arith.constant 2 : index
    %c0_546 = arith.constant 0 : index
    %477 = vector.load %arg2[%c0_544, %476, %c2_545, %c0_546] : memref<1x18x18x4xbf16, #tpu.memory_space<vmem>>, vector<1x1x16x4xbf16>
    %478 = vector.shape_cast %477 : vector<1x1x16x4xbf16> to vector<16x4xbf16>
    %c80_547 = arith.constant 80 : index
    %c0_548 = arith.constant 0 : index
    %479 = vector.load %arg7[%c80_547, %c0_548] : memref<128x4xbf16, #tpu.memory_space<vmem>>, vector<16x4xbf16>
    tpu.vector_store %arg7[%c80_547, %c0_548], %478 {strides = array<i32>} : memref<128x4xbf16, #tpu.memory_space<vmem>>, vector<16x4xbf16>,
    %c6_i32_549 = arith.constant 6 : i32
    %480 = arith.addi %1, %c6_i32_549 : i32
    %c2_i32_550 = arith.constant 2 : i32
    %481 = arith.addi %480, %c2_i32_550 : i32
    %c0_551 = arith.constant 0 : index
    %482 = arith.index_cast %481 : i32 to index
    %c2_552 = arith.constant 2 : index
    %c0_553 = arith.constant 0 : index
    %483 = vector.load %arg2[%c0_551, %482, %c2_552, %c0_553] : memref<1x18x18x4xbf16, #tpu.memory_space<vmem>>, vector<1x1x16x4xbf16>
    %484 = vector.shape_cast %483 : vector<1x1x16x4xbf16> to vector<16x4xbf16>
    %c96_554 = arith.constant 96 : index
    %c0_555 = arith.constant 0 : index
    %485 = vector.load %arg7[%c96_554, %c0_555] : memref<128x4xbf16, #tpu.memory_space<vmem>>, vector<16x4xbf16>
    tpu.vector_store %arg7[%c96_554, %c0_555], %484 {strides = array<i32>} : memref<128x4xbf16, #tpu.memory_space<vmem>>, vector<16x4xbf16>,
    %c7_i32_556 = arith.constant 7 : i32
    %486 = arith.addi %1, %c7_i32_556 : i32
    %c2_i32_557 = arith.constant 2 : i32
    %487 = arith.addi %486, %c2_i32_557 : i32
    %c0_558 = arith.constant 0 : index
    %488 = arith.index_cast %487 : i32 to index
    %c2_559 = arith.constant 2 : index
    %c0_560 = arith.constant 0 : index
    %489 = vector.load %arg2[%c0_558, %488, %c2_559, %c0_560] : memref<1x18x18x4xbf16, #tpu.memory_space<vmem>>, vector<1x1x16x4xbf16>
    %490 = vector.shape_cast %489 : vector<1x1x16x4xbf16> to vector<16x4xbf16>
    %c112_561 = arith.constant 112 : index
    %c0_562 = arith.constant 0 : index
    %491 = vector.load %arg7[%c112_561, %c0_562] : memref<128x4xbf16, #tpu.memory_space<vmem>>, vector<16x4xbf16>
    tpu.vector_store %arg7[%c112_561, %c0_562], %490 {strides = array<i32>} : memref<128x4xbf16, #tpu.memory_space<vmem>>, vector<16x4xbf16>,
    %c0_563 = arith.constant 0 : index
    %c0_564 = arith.constant 0 : index
    %492 = vector.load %arg8[%c0_563, %c0_564] : memref<128x128xf32, #tpu.memory_space<vmem>>, vector<128x128xf32>
    %c0_565 = arith.constant 0 : index
    %c0_566 = arith.constant 0 : index
    %493 = vector.load %arg7[%c0_565, %c0_566] : memref<128x4xbf16, #tpu.memory_space<vmem>>, vector<128x4xbf16>
    %c8 = arith.constant 8 : index
    %c0_567 = arith.constant 0 : index
    %c0_568 = arith.constant 0 : index
    %494 = vector.load %arg3[%c8, %c0_567, %c0_568] : memref<9x4x128xbf16, #tpu.memory_space<vmem>>, vector<1x4x128xbf16>
    %495 = vector.shape_cast %494 : vector<1x4x128xbf16> to vector<4x128xbf16>
    %cst_569 = arith.constant dense<0.000000e+00> : vector<128x128xf32>
    %496 = tpu.matmul %493, %495, %cst_569 {dimension_numbers = #tpu.dot_dimension_numbers<[1], [0], [0], [1], [0, 0, 1, 1], [], []>} : vector<128x4xbf16>, vector<4x128xbf16>, vector<128x128xf32> -> vector<128x128xf32>
    %497 = arith.addf %492, %496 : vector<128x128xf32>
    %c0_570 = arith.constant 0 : index
    %c0_571 = arith.constant 0 : index
    %498 = vector.load %arg8[%c0_570, %c0_571] : memref<128x128xf32, #tpu.memory_space<vmem>>, vector<128x128xf32>
    tpu.vector_store %arg8[%c0_570, %c0_571], %497 {strides = array<i32>} : memref<128x128xf32, #tpu.memory_space<vmem>>, vector<128x128xf32>,
    %c0_572 = arith.constant 0 : index
    %c0_573 = arith.constant 0 : index
    %499 = vector.load %arg8[%c0_572, %c0_573] : memref<128x128xf32, #tpu.memory_space<vmem>>, vector<128x128xf32>
    %c0_574 = arith.constant 0 : index
    %c0_575 = arith.constant 0 : index
    %c0_576 = arith.constant 0 : index
    %500 = vector.load %arg4[%c0_574, %c0_575, %c0_576] : memref<1x128x128xf32, #tpu.memory_space<vmem>>, vector<1x128x128xf32>
    %501 = vector.shape_cast %500 : vector<1x128x128xf32> to vector<128x128xf32>
    %502 = vector.shape_cast %499 : vector<128x128xf32> to vector<1x128x128xf32>
    tpu.vector_store %arg4[%c0_574, %c0_575, %c0_576], %502 {strides = array<i32>} : memref<1x128x128xf32, #tpu.memory_space<vmem>>, vector<1x128x128xf32>,
    %cst_577 = arith.constant dense<0.000000e+00> : vector<128xf32>
    %503 = vector.multi_reduction <add>, %499, %cst_577 [0] : vector<128x128xf32> to vector<128xf32>
    %504 = vector.shape_cast %503 : vector<128xf32> to vector<1x128xf32>
    %c0_578 = arith.constant 0 : index
    %c0_579 = arith.constant 0 : index
    %c0_580 = arith.constant 0 : index
    %c0_581 = arith.constant 0 : index
    %505 = vector.load %arg5[%c0_578, %c0_579, %c0_580, %c0_581] : memref<1x1x1x128xf32, #tpu.memory_space<vmem>>, vector<1x1x1x128xf32>
    %506 = vector.shape_cast %505 : vector<1x1x1x128xf32> to vector<1x128xf32>
    %507 = vector.shape_cast %504 : vector<1x128xf32> to vector<1x1x1x128xf32>
    tpu.vector_store %arg5[%c0_578, %c0_579, %c0_580, %c0_581], %507 {strides = array<i32>} : memref<1x1x1x128xf32, #tpu.memory_space<vmem>>, vector<1x1x1x128xf32>,
    %508 = arith.mulf %499, %499 : vector<128x128xf32>
    %cst_582 = arith.constant dense<0.000000e+00> : vector<128xf32>
    %509 = vector.multi_reduction <add>, %508, %cst_582 [0] : vector<128x128xf32> to vector<128xf32>
    %510 = vector.shape_cast %509 : vector<128xf32> to vector<1x128xf32>
    %c0_583 = arith.constant 0 : index
    %c0_584 = arith.constant 0 : index
    %c0_585 = arith.constant 0 : index
    %c0_586 = arith.constant 0 : index
    %511 = vector.load %arg6[%c0_583, %c0_584, %c0_585, %c0_586] : memref<1x1x1x128xf32, #tpu.memory_space<vmem>>, vector<1x1x1x128xf32>
    %512 = vector.shape_cast %511 : vector<1x1x1x128xf32> to vector<1x128xf32>
    %513 = vector.shape_cast %510 : vector<1x128xf32> to vector<1x1x1x128xf32>
    tpu.vector_store %arg6[%c0_583, %c0_584, %c0_585, %c0_586], %513 {strides = array<i32>} : memref<1x1x1x128xf32, #tpu.memory_space<vmem>>, vector<1x1x1x128xf32>,
    return
  }
  func.func @transform_0(%arg0: i32, %arg1: i32) -> (i32, i32, i32, i32) {
    %c0_i32 = arith.constant 0 : i32
    %c0_i32_0 = arith.constant 0 : i32
    %c0_i32_1 = arith.constant 0 : i32
    %c0_i32_2 = arith.constant 0 : i32
    return %arg0, %c0_i32, %c0_i32_0, %c0_i32_1 : i32, i32, i32, i32
  }
  func.func @transform_1(%arg0: i32, %arg1: i32) -> (i32, i32, i32) {
    %c0_i32 = arith.constant 0 : i32
    %c0_i32_0 = arith.constant 0 : i32
    %c0_i32_1 = arith.constant 0 : i32
    %c0_i32_2 = arith.constant 0 : i32
    return %c0_i32, %c0_i32_0, %c0_i32_1 : i32, i32, i32
  }
  func.func @transform_2(%arg0: i32, %arg1: i32) -> (i32, i32, i32) {
    %c0_i32 = arith.constant 0 : i32
    %c0_i32_0 = arith.constant 0 : i32
    return %arg0, %arg1, %c0_i32 : i32, i32, i32
  }
  func.func @transform_3(%arg0: i32, %arg1: i32) -> (i32, i32, i32, i32) {
    %c0_i32 = arith.constant 0 : i32
    %c0_i32_0 = arith.constant 0 : i32
    %c0_i32_1 = arith.constant 0 : i32
    return %arg0, %arg1, %c0_i32, %c0_i32_0 : i32, i32, i32, i32
  }
  func.func @transform_4(%arg0: i32, %arg1: i32) -> (i32, i32, i32, i32) {
    %c0_i32 = arith.constant 0 : i32
    %c0_i32_0 = arith.constant 0 : i32
    %c0_i32_1 = arith.constant 0 : i32
    return %arg0, %arg1, %c0_i32, %c0_i32_0 : i32, i32, i32, i32
  }
}

</mosaic_0001>

<llo_original>
// kernel: con_block_forward.3
$region0: #{con_block_forward.3}
  #allocation0 [shape = 'u32[]', space=smem, size = 0x4, offset = 0x4, fixed_abs, tag = 'smem constant byte address 0x4 - core index']
  #allocation1 [shape = 'u32[72,128]{1,0:T(1,128)}', space=vmem, size = 0x9000, scoped, tag = 'internal scratch']
  %s0 = inlined_call_operand.vmem [shape: f32[1,128], index: 0, kind: input, shape index: {}]
  %s1 = inlined_call_operand.vmem [shape: f32[1,128], index: 1, kind: input, shape index: {}]
  %s2 = inlined_call_operand.vmem [shape: f32[2,256,128], index: 2, kind: input, shape index: {}, may-alias: {2,3}]
  %s3 = inlined_call_operand.vmem [shape: f32[2,256,128], index: 3, kind: output, shape index: {}, may-alias: {2,3}]
  %s4 = sld [smem:[#allocation0]]
  $region45: #{con_block_forward.3} parent=0
    _
  %s6 = ssub.s32 1, %s4
  %s7 = scalar_select 0, %s6, %s4
  loop: start=0, step=1, limit=6
  $region2: #{con_block_forward.3} parent=0 // loop_pre_header
    _
  $region3: #{con_block_forward.3} parent=0 // loop_header
    %s9 = sphi 0, %s13
    %p10 = scmp.ge.s32.totalorder %s9, 6
    %s16 = sphi 0, %s28
    %s17 = sphi 0, %s24
    %s18 = sphi 0, %s16
    %s19 = sphi 0, %s17
    %s20 = sphi 0, %s18
    %s21 = sphi 0, %s19
    %s29 = sphi 0, %s29
    %s31 = sphi 0, %s29
    %s32 = sphi 0, %s31
    %s46 = sphi 0, %s32
    %s50 = sphi 0, %s50
    %s52 = sphi 0, %s50
    %s53 = sphi 0, %s52
    %s67 = sphi 0, %s53
    %s75 = sphi 0, %s77
    %s78 = sphi 0, %s75
    %s79 = sphi 0, %s78
    %s95 = sphi 0, %s79
    %s103 = sphi 0, %s105
    %s106 = sphi 0, %s103
    %s107 = sphi 0, %s106
    %s123 = sphi 0, %s107
  $region4: #{con_block_forward.3} parent=0 // loop_header_branch
    %12 = sbr.rel (%p10) target = $region8
  $region5: #{con_block_forward.3} parent=0 // loop_body
    %s14 = ssub.s32 %s9, 1
    %s15 = ssub.s32 %s9, 2
    %s22 = sadd.s32 1, %s17
    %p23 = scmp.ge.s32.totalorder %s22, 2
    %s24 = scalar_select %p23, 0, %s22
    %s25 = sadd.s32 1, %s16
    %s26 = scalar_select %p23, %s25, %s16
    %p27 = scmp.ge.s32.totalorder %s26, 2
    %s28 = scalar_select %p27, 0, %s26
    %s30 = sadd.s32 %s29, 1
    %p33 = scmp.eq.s32.totalorder %s9, 3
    %p34 = scmp.ne.s32.totalorder %s29, %s31
    %p35 = scmp.eq.s32.totalorder %s9, 0
    %p36 = por %p34, %p35
    %p37 = scmp.ne.s32.totalorder %s29, %s31
    %p38 = scmp.eq.s32.totalorder %s14, 3
    %p39 = por %p37, %p38
    %p40 = scmp.ne.s32.totalorder %s31, %s32
    %p41 = scmp.eq.s32.totalorder %s14, 0
    %p42 = por %p40, %p41
    %p43 = scmp.ne.s32.totalorder %s31, %s32
    %p44 = scmp.eq.s32.totalorder %s15, 3
    %p45 = por %p43, %p44
    %p47 = scmp.ne.s32.totalorder %s32, %s46
    %p48 = scmp.eq.s32.totalorder %s15, 0
    %p49 = por %p47, %p48
    %s51 = sadd.s32 %s50, 1
    %p54 = scmp.eq.s32.totalorder %s9, 3
    %p55 = scmp.ne.s32.totalorder %s50, %s52
    %p56 = scmp.eq.s32.totalorder %s9, 0
    %p57 = por %p55, %p56
    %p58 = scmp.ne.s32.totalorder %s50, %s52
    %p59 = scmp.eq.s32.totalorder %s14, 3
    %p60 = por %p58, %p59
    %p61 = scmp.ne.s32.totalorder %s52, %s53
    %p62 = scmp.eq.s32.totalorder %s14, 0
    %p63 = por %p61, %p62
    %p64 = scmp.ne.s32.totalorder %s52, %s53
    %p65 = scmp.eq.s32.totalorder %s15, 3
    %p66 = por %p64, %p65
    %p68 = scmp.ne.s32.totalorder %s53, %s67
    %p69 = scmp.eq.s32.totalorder %s15, 0
    %p70 = por %p68, %p69
    %s71 = ssub.s32 %s16, %s28
    %s72 = ssub.s32 %s17, %s24
    %s73 = sor.u32 %s71, %s72
    %p74 = scmp.eq.s32.totalorder %s73, 0
    %s76 = sadd.s32 %s75, 1
    %s77 = scalar_select %p74, %s75, %s76
    %p80 = pneg %p74
    %p81 = scmp.eq.s32.totalorder %s9, 3
    %p82 = por %p80, %p81
    %p83 = scmp.ne.s32.totalorder %s75, %s78
    %p84 = scmp.eq.s32.totalorder %s9, 0
    %p85 = por %p83, %p84
    %p86 = scmp.ne.s32.totalorder %s75, %s78
    %p87 = scmp.eq.s32.totalorder %s14, 3
    %p88 = por %p86, %p87
    %p89 = scmp.ne.s32.totalorder %s78, %s79
    %p90 = scmp.eq.s32.totalorder %s14, 0
    %p91 = por %p89, %p90
    %p92 = scmp.ne.s32.totalorder %s78, %s79
    %p93 = scmp.eq.s32.totalorder %s15, 3
    %p94 = por %p92, %p93
    %p96 = scmp.ne.s32.totalorder %s79, %s95
    %p97 = scmp.eq.s32.totalorder %s15, 0
    %p98 = por %p96, %p97
    %s99 = ssub.s32 %s16, %s28
    %s100 = ssub.s32 %s17, %s24
    %s101 = sor.u32 %s99, %s100
    %p102 = scmp.eq.s32.totalorder %s101, 0
    %s104 = sadd.s32 %s103, 1
    %s105 = scalar_select %p102, %s103, %s104
    %p108 = pneg %p102
    %p109 = scmp.eq.s32.totalorder %s9, 3
    %p110 = por %p108, %p109
    %p111 = scmp.ne.s32.totalorder %s103, %s106
    %p112 = scmp.eq.s32.totalorder %s9, 0
    %p113 = por %p111, %p112
    %p114 = scmp.ne.s32.totalorder %s103, %s106
    %p115 = scmp.eq.s32.totalorder %s14, 3
    %p116 = por %p114, %p115
    %p117 = scmp.ne.s32.totalorder %s106, %s107
    %p118 = scmp.eq.s32.totalorder %s14, 0
    %p119 = por %p117, %p118
    %p120 = scmp.ne.s32.totalorder %s106, %s107
    %p121 = scmp.eq.s32.totalorder %s15, 3
    %p122 = por %p120, %p121
    %p124 = scmp.ne.s32.totalorder %s107, %s123
    %p125 = scmp.eq.s32.totalorder %s15, 0
    %p126 = por %p124, %p125
    %p127 = scmp.le.s32.totalorder 1, %s9
    %p128 = scmp.lt.s32.totalorder %s9, 5
    %p129 = pnand %p127, %p128
    %p130 = pneg %p129
    // Predicated region
    $region9: #{con_block_forward.3} parent=5 // pred_check
      _
    $region10: #{con_block_forward.3} parent=5 // pred_check_branch
      %132 = sbr.rel (%p129) target = $region12
    $region11: #{con_block_forward.3} parent=5 // pred_region
      %s133 = ssub.s32 %s9, 1
      // Predicated region
      $region13: #{con_block_forward.3} parent=11 // pred_check
        %p134 = pneg %p42
      $region14: #{con_block_forward.3} parent=11 // pred_check_branch
        %136 = sbr.rel (%p134) target = $region16
      $region15: #{con_block_forward.3} parent=11 // pred_region
        _
      $region16: #{con_block_forward.3} parent=11 // pred_fallthru
        _
      // Predicated region
      $region17: #{con_block_forward.3} parent=11 // pred_check
        %p137 = pneg %p63
      $region18: #{con_block_forward.3} parent=11 // pred_check_branch
        %139 = sbr.rel (%p137) target = $region20
      $region19: #{con_block_forward.3} parent=11 // pred_region
        _
      $region20: #{con_block_forward.3} parent=11 // pred_fallthru
        _
    $region12: #{con_block_forward.3} parent=5 // pred_fallthru
      _
    %p140 = scmp.lt.s32.totalorder %s9, 4
    // Predicated region
    $region21: #{con_block_forward.3} parent=5 // pred_check
      %p141 = pneg %p140
    $region22: #{con_block_forward.3} parent=5 // pred_check_branch
      %143 = sbr.rel (%p141) target = $region24
    $region23: #{con_block_forward.3} parent=5 // pred_region
      // Predicated region
      $region25: #{con_block_forward.3} parent=23 // pred_check
        %p144 = pneg %p85
      $region26: #{con_block_forward.3} parent=23 // pred_check_branch
        %146 = sbr.rel (%p144) target = $region28
      $region27: #{con_block_forward.3} parent=23 // pred_region
        %s147 = smul.u32 16, %s17
        %p148 = scmp.lt.s32.totalorder %s16, 1
        %s149 = scalar_select %p148, %s16, 1
        %p150 = scmp.lt.s32.totalorder %s147, 31
        %s151 = scalar_select %p150, %s147, 31
        %s152 = smul.addr %s149, 32
        %s153 = sadd.s32 %s151, %s152
        %s154 = smul.addr %s153, 8
        %s155 = scalar_lea.vmem %s2, %s154
        %s156 = smul.u32 16, %s17
      $region28: #{con_block_forward.3} parent=23 // pred_fallthru
        _
    $region24: #{con_block_forward.3} parent=5 // pred_fallthru
      _
    %p157 = scmp.le.s32.totalorder 1, %s9
    %p158 = scmp.lt.s32.totalorder %s9, 5
    %p159 = pnand %p157, %p158
    %p160 = pneg %p159
    // Predicated region
    $region29: #{con_block_forward.3} parent=5 // pred_check
      _
    $region30: #{con_block_forward.3} parent=5 // pred_check_branch
      %162 = sbr.rel (%p159) target = $region32
    $region31: #{con_block_forward.3} parent=5 // pred_region
      %s163 = ssub.s32 %s9, 1
      %p164 = pneg %p42
      %p165 = pneg %p39
      %p166 = pneg %p63
      %p167 = pneg %p60
      %s168 = smul.u32 16, %s19
      %p169 = scmp.lt.s32.totalorder %s18, 1
      %s170 = scalar_select %p169, %s18, 1
      %p171 = scmp.lt.s32.totalorder %s168, 31
      %s172 = scalar_select %p171, %s168, 31
      %s173 = smul.addr %s170, 32
      %s174 = sadd.s32 %s172, %s173
      %s175 = smul.addr %s174, 8
      %s176 = scalar_lea.vmem %s2, %s175
      %p177 = pneg %p91
      %p178 = pneg %p88
      %p179 = pneg %p119
      %p180 = pneg %p116
      %s181 = smul.u32 16, %s19
      %p182 = scmp.lt.s32.totalorder %s18, 1
      %s183 = scalar_select %p182, %s18, 1
      %p184 = scmp.lt.s32.totalorder %s181, 31
      %s185 = scalar_select %p184, %s181, 31
      %s186 = smul.addr %s183, 32
      %s187 = sadd.s32 %s185, %s186
      %s188 = smul.addr %s187, 8
      %s189 = scalar_lea.vmem %s3, %s188
      %s190 = smul.u32 16, %s19
      %p191 = scmp.lt.s32.totalorder %s18, 1
      %s192 = scalar_select %p191, %s18, 1
      %p193 = scmp.lt.s32.totalorder %s190, 31
      %s194 = scalar_select %p193, %s190, 31
      %s195 = smul.addr %s192, 32
      %s196 = sadd.s32 %s194, %s195
      %s197 = smul.addr %s196, 8
      %s198 = scalar_lea.vmem %s2, %s197
      %s199 = smul.u32 16, %s19
      %s200 = smul.u32 16, %s19
      %p201 = scmp.lt.s32.totalorder %s18, 1
      %s202 = scalar_select %p201, %s18, 1
      %p203 = scmp.lt.s32.totalorder %s200, 31
      %s204 = scalar_select %p203, %s200, 31
      %s205 = smul.addr %s202, 32
      %s206 = sadd.s32 %s204, %s205
      %s207 = smul.addr %s206, 8
      %s208 = scalar_lea.vmem %s3, %s207
      %s209 = smul.u32 16, %s19
      %v210 = vld [vmem:[%s198] sm:$0xff]
      %v211 = vld [vmem:[%s198 + $0x8] sm:$0xff]
      %v212 = vld [vmem:[%s198 + $0x10] sm:$0xff]
      %v213 = vld [vmem:[%s198 + $0x18] sm:$0xff]
      %v214 = vld [vmem:[%s198 + $0x20] sm:$0xff]
      %v215 = vld [vmem:[%s198 + $0x28] sm:$0xff]
      %v216 = vld [vmem:[%s198 + $0x30] sm:$0xff]
      %v217 = vld [vmem:[%s198 + $0x38] sm:$0xff]
      %v218 = vld [vmem:[%s198 + $0x40] sm:$0xff]
      %v219 = vld [vmem:[%s198 + $0x48] sm:$0xff]
      %v220 = vld [vmem:[%s198 + $0x50] sm:$0xff]
      %v221 = vld [vmem:[%s198 + $0x58] sm:$0xff]
      %v222 = vld [vmem:[%s198 + $0x60] sm:$0xff]
      %v223 = vld [vmem:[%s198 + $0x68] sm:$0xff]
      %v224 = vld [vmem:[%s198 + $0x70] sm:$0xff]
      %v225 = vld [vmem:[%s198 + $0x78] sm:$0xff]
      %v226 = vld [vmem:[%s0] sm:$0x1]
      %v228 = vperm.slane %v226, 0
      %v230 = vmul.f32 %v210, %v228
      %v231 = vmul.f32 %v211, %v228
      %v232 = vmul.f32 %v212, %v228
      %v233 = vmul.f32 %v213, %v228
      %v234 = vmul.f32 %v214, %v228
      %v235 = vmul.f32 %v215, %v228
      %v236 = vmul.f32 %v216, %v228
      %v237 = vmul.f32 %v217, %v228
      %v238 = vmul.f32 %v218, %v228
      %v239 = vmul.f32 %v219, %v228
      %v240 = vmul.f32 %v220, %v228
      %v241 = vmul.f32 %v221, %v228
      %v242 = vmul.f32 %v222, %v228
      %v243 = vmul.f32 %v223, %v228
      %v244 = vmul.f32 %v224, %v228
      %v245 = vmul.f32 %v225, %v228
      %v246 = vld [vmem:[%s1] sm:$0x1]
      %v248 = vperm.slane %v246, 0
      %v250 = vadd.f32 %v230, %v248
      %v251 = vadd.f32 %v231, %v248
      %v252 = vadd.f32 %v232, %v248
      %v253 = vadd.f32 %v233, %v248
      %v254 = vadd.f32 %v234, %v248
      %v255 = vadd.f32 %v235, %v248
      %v256 = vadd.f32 %v236, %v248
      %v257 = vadd.f32 %v237, %v248
      %v258 = vadd.f32 %v238, %v248
      %v259 = vadd.f32 %v239, %v248
      %v260 = vadd.f32 %v240, %v248
      %v261 = vadd.f32 %v241, %v248
      %v262 = vadd.f32 %v242, %v248
      %v263 = vadd.f32 %v243, %v248
      %v264 = vadd.f32 %v244, %v248
      %v265 = vadd.f32 %v245, %v248
      %v266 = vmax.f32 %v250, 0.0
      %v267 = vmax.f32 %v251, 0.0
      %v268 = vmax.f32 %v252, 0.0
      %v269 = vmax.f32 %v253, 0.0
      %v270 = vmax.f32 %v254, 0.0
      %v271 = vmax.f32 %v255, 0.0
      %v272 = vmax.f32 %v256, 0.0
      %v273 = vmax.f32 %v257, 0.0
      %v274 = vmax.f32 %v258, 0.0
      %v275 = vmax.f32 %v259, 0.0
      %v276 = vmax.f32 %v260, 0.0
      %v277 = vmax.f32 %v261, 0.0
      %v278 = vmax.f32 %v262, 0.0
      %v279 = vmax.f32 %v263, 0.0
      %v280 = vmax.f32 %v264, 0.0
      %v281 = vmax.f32 %v265, 0.0
      %282 = vst [vmem:[%s208] sm:$0xff] %v266
      %283 = vst [vmem:[%s208 + $0x8] sm:$0xff] %v267
      %284 = vst [vmem:[%s208 + $0x10] sm:$0xff] %v268
      %285 = vst [vmem:[%s208 + $0x18] sm:$0xff] %v269
      %286 = vst [vmem:[%s208 + $0x20] sm:$0xff] %v270
      %287 = vst [vmem:[%s208 + $0x28] sm:$0xff] %v271
      %288 = vst [vmem:[%s208 + $0x30] sm:$0xff] %v272
      %289 = vst [vmem:[%s208 + $0x38] sm:$0xff] %v273
      %290 = vst [vmem:[%s208 + $0x40] sm:$0xff] %v274
      %291 = vst [vmem:[%s208 + $0x48] sm:$0xff] %v275
      %292 = vst [vmem:[%s208 + $0x50] sm:$0xff] %v276
      %293 = vst [vmem:[%s208 + $0x58] sm:$0xff] %v277
      %294 = vst [vmem:[%s208 + $0x60] sm:$0xff] %v278
      %295 = vst [vmem:[%s208 + $0x68] sm:$0xff] %v279
      %296 = vst [vmem:[%s208 + $0x70] sm:$0xff] %v280
      %297 = vst [vmem:[%s208 + $0x78] sm:$0xff] %v281
      %s298 = smul.u32 16, %s19
      %p299 = scmp.lt.s32.totalorder %s18, 1
      %s300 = scalar_select %p299, %s18, 1
      %p301 = scmp.lt.s32.totalorder %s298, 31
      %s302 = scalar_select %p301, %s298, 31
      %s303 = smul.addr %s300, 32
      %s304 = sadd.s32 %s302, %s303
      %s305 = smul.addr %s304, 8
      %s306 = scalar_lea.vmem %s3, %s305
      // Predicated region
      $region33: #{con_block_forward.3} parent=31 // pred_check
        %p307 = pneg %p116
      $region34: #{con_block_forward.3} parent=31 // pred_check_branch
        %309 = sbr.rel (%p307) target = $region36
      $region35: #{con_block_forward.3} parent=31 // pred_region
        %s310 = smul.u32 16, %s19
      $region36: #{con_block_forward.3} parent=31 // pred_fallthru
        _
    $region32: #{con_block_forward.3} parent=5 // pred_fallthru
      _
    %p311 = scmp.le.s32.totalorder 2, %s9
    // Predicated region
    $region37: #{con_block_forward.3} parent=5 // pred_check
      %p312 = pneg %p311
    $region38: #{con_block_forward.3} parent=5 // pred_check_branch
      %314 = sbr.rel (%p312) target = $region40
    $region39: #{con_block_forward.3} parent=5 // pred_region
      %s315 = ssub.s32 %s9, 2
      // Predicated region
      $region41: #{con_block_forward.3} parent=39 // pred_check
        %p316 = pneg %p122
      $region42: #{con_block_forward.3} parent=39 // pred_check_branch
        %318 = sbr.rel (%p316) target = $region44
      $region43: #{con_block_forward.3} parent=39 // pred_region
        %s319 = smul.u32 16, %s21
        %p320 = scmp.lt.s32.totalorder %s20, 1
        %s321 = scalar_select %p320, %s20, 1
        %p322 = scmp.lt.s32.totalorder %s319, 31
        %s323 = scalar_select %p322, %s319, 31
        %s324 = smul.addr %s321, 32
        %s325 = sadd.s32 %s323, %s324
        %s326 = smul.addr %s325, 8
        %s327 = scalar_lea.vmem %s3, %s326
      $region44: #{con_block_forward.3} parent=39 // pred_fallthru
        _
    $region40: #{con_block_forward.3} parent=5 // pred_fallthru
      _
  $region6: #{con_block_forward.3} parent=0 // loop_footer
    %s13 = sadd.s32 1, %s9
  $region7: #{con_block_forward.3} parent=0 // loop_footer_branch
    %8 = sbr.rel target = $region3
  $region8: #{con_block_forward.3} parent=0 // loop_exit
    _

// kernel: con_block_forward.2
$region0: #{con_block_forward.2}
  #allocation0 [shape = 'u32[]', space=smem, size = 0x4, offset = 0x4, fixed_abs, tag = 'smem constant byte address 0x4 - core index']
  #allocation1 [shape = 'u32[72,128]{1,0:T(1,128)}', space=vmem, size = 0x9000, scoped, tag = 'internal scratch']
  #allocation2 [shape = 'bf16[128,4]{1,0:T(8,128)(2,1)}', space=vmem, size = 0x8000, scoped, tag = 'scratch operand']
  #allocation3 [shape = 'f32[128,128]{1,0:T(8,128)}', space=vmem, size = 0x10000, scoped, tag = 'scratch operand']
  %s0 = inlined_call_operand.vmem [shape: bf16[2,18,18,4], index: 0, kind: input, shape index: {}]
  %s1 = inlined_call_operand.vmem [shape: bf16[9,4,128], index: 1, kind: input, shape index: {}]
  %s2 = inlined_call_operand.vmem [shape: f32[2,256,128], index: 2, kind: output, shape index: {0}]
  %s3 = inlined_call_operand.vmem [shape: f32[2,2,1,128], index: 3, kind: output, shape index: {1}]
  %s4 = inlined_call_operand.vmem [shape: f32[2,2,1,128], index: 4, kind: output, shape index: {2}]
  %5 = xla_tuple %s2, %s3, %s4
  %s6 = sld [smem:[#allocation0]]
  $region57: #{con_block_forward.2} parent=0
    _
  %s8 = ssub.s32 1, %s6
  %s9 = scalar_select 0, %s8, %s6
  loop: start=0, step=1, limit=6
  $region2: #{con_block_forward.2} parent=0 // loop_pre_header
    _
  $region3: #{con_block_forward.2} parent=0 // loop_header
    %s11 = sphi 0, %s15
    %p12 = scmp.ge.s32.totalorder %s11, 6
    %s18 = sphi 0, %s30
    %s19 = sphi 0, %s26
    %s20 = sphi 0, %s18
    %s21 = sphi 0, %s19
    %s22 = sphi 0, %s20
    %s23 = sphi 0, %s21
    %s33 = sphi 0, %s35
    %s36 = sphi 0, %s33
    %s37 = sphi 0, %s36
    %s53 = sphi 0, %s37
    %s57 = sphi 0, %s57
    %s59 = sphi 0, %s57
    %s60 = sphi 0, %s59
    %s74 = sphi 0, %s60
    %s82 = sphi 0, %s84
    %s85 = sphi 0, %s82
    %s86 = sphi 0, %s85
    %s102 = sphi 0, %s86
    %s110 = sphi 0, %s112
    %s113 = sphi 0, %s110
    %s114 = sphi 0, %s113
    %s130 = sphi 0, %s114
    %s138 = sphi 0, %s140
    %s141 = sphi 0, %s138
    %s142 = sphi 0, %s141
    %s158 = sphi 0, %s142
  $region4: #{con_block_forward.2} parent=0 // loop_header_branch
    %14 = sbr.rel (%p12) target = $region8
  $region5: #{con_block_forward.2} parent=0 // loop_body
    %s16 = ssub.s32 %s11, 1
    %s17 = ssub.s32 %s11, 2
    %s24 = sadd.s32 1, %s19
    %p25 = scmp.ge.s32.totalorder %s24, 2
    %s26 = scalar_select %p25, 0, %s24
    %s27 = sadd.s32 1, %s18
    %s28 = scalar_select %p25, %s27, %s18
    %p29 = scmp.ge.s32.totalorder %s28, 2
    %s30 = scalar_select %p29, 0, %s28
    %s31 = ssub.s32 %s18, %s30
    %p32 = scmp.eq.s32.totalorder %s31, 0
    %s34 = sadd.s32 %s33, 1
    %s35 = scalar_select %p32, %s33, %s34
    %p38 = pneg %p32
    %p39 = scmp.eq.s32.totalorder %s11, 3
    %p40 = por %p38, %p39
    %p41 = scmp.ne.s32.totalorder %s33, %s36
    %p42 = scmp.eq.s32.totalorder %s11, 0
    %p43 = por %p41, %p42
    %p44 = scmp.ne.s32.totalorder %s33, %s36
    %p45 = scmp.eq.s32.totalorder %s16, 3
    %p46 = por %p44, %p45
    %p47 = scmp.ne.s32.totalorder %s36, %s37
    %p48 = scmp.eq.s32.totalorder %s16, 0
    %p49 = por %p47, %p48
    %p50 = scmp.ne.s32.totalorder %s36, %s37
    %p51 = scmp.eq.s32.totalorder %s17, 3
    %p52 = por %p50, %p51
    %p54 = scmp.ne.s32.totalorder %s37, %s53
    %p55 = scmp.eq.s32.totalorder %s17, 0
    %p56 = por %p54, %p55
    %s58 = sadd.s32 %s57, 1
    %p61 = scmp.eq.s32.totalorder %s11, 3
    %p62 = scmp.ne.s32.totalorder %s57, %s59
    %p63 = scmp.eq.s32.totalorder %s11, 0
    %p64 = por %p62, %p63
    %p65 = scmp.ne.s32.totalorder %s57, %s59
    %p66 = scmp.eq.s32.totalorder %s16, 3
    %p67 = por %p65, %p66
    %p68 = scmp.ne.s32.totalorder %s59, %s60
    %p69 = scmp.eq.s32.totalorder %s16, 0
    %p70 = por %p68, %p69
    %p71 = scmp.ne.s32.totalorder %s59, %s60
    %p72 = scmp.eq.s32.totalorder %s17, 3
    %p73 = por %p71, %p72
    %p75 = scmp.ne.s32.totalorder %s60, %s74
    %p76 = scmp.eq.s32.totalorder %s17, 0
    %p77 = por %p75, %p76
    %s78 = ssub.s32 %s18, %s30
    %s79 = ssub.s32 %s19, %s26
    %s80 = sor.u32 %s78, %s79
    %p81 = scmp.eq.s32.totalorder %s80, 0
    %s83 = sadd.s32 %s82, 1
    %s84 = scalar_select %p81, %s82, %s83
    %p87 = pneg %p81
    %p88 = scmp.eq.s32.totalorder %s11, 3
    %p89 = por %p87, %p88
    %p90 = scmp.ne.s32.totalorder %s82, %s85
    %p91 = scmp.eq.s32.totalorder %s11, 0
    %p92 = por %p90, %p91
    %p93 = scmp.ne.s32.totalorder %s82, %s85
    %p94 = scmp.eq.s32.totalorder %s16, 3
    %p95 = por %p93, %p94
    %p96 = scmp.ne.s32.totalorder %s85, %s86
    %p97 = scmp.eq.s32.totalorder %s16, 0
    %p98 = por %p96, %p97
    %p99 = scmp.ne.s32.totalorder %s85, %s86
    %p100 = scmp.eq.s32.totalorder %s17, 3
    %p101 = por %p99, %p100
    %p103 = scmp.ne.s32.totalorder %s86, %s102
    %p104 = scmp.eq.s32.totalorder %s17, 0
    %p105 = por %p103, %p104
    %s106 = ssub.s32 %s18, %s30
    %s107 = ssub.s32 %s19, %s26
    %s108 = sor.u32 %s106, %s107
    %p109 = scmp.eq.s32.totalorder %s108, 0
    %s111 = sadd.s32 %s110, 1
    %s112 = scalar_select %p109, %s110, %s111
    %p115 = pneg %p109
    %p116 = scmp.eq.s32.totalorder %s11, 3
    %p117 = por %p115, %p116
    %p118 = scmp.ne.s32.totalorder %s110, %s113
    %p119 = scmp.eq.s32.totalorder %s11, 0
    %p120 = por %p118, %p119
    %p121 = scmp.ne.s32.totalorder %s110, %s113
    %p122 = scmp.eq.s32.totalorder %s16, 3
    %p123 = por %p121, %p122
    %p124 = scmp.ne.s32.totalorder %s113, %s114
    %p125 = scmp.eq.s32.totalorder %s16, 0
    %p126 = por %p124, %p125
    %p127 = scmp.ne.s32.totalorder %s113, %s114
    %p128 = scmp.eq.s32.totalorder %s17, 3
    %p129 = por %p127, %p128
    %p131 = scmp.ne.s32.totalorder %s114, %s130
    %p132 = scmp.eq.s32.totalorder %s17, 0
    %p133 = por %p131, %p132
    %s134 = ssub.s32 %s18, %s30
    %s135 = ssub.s32 %s19, %s26
    %s136 = sor.u32 %s134, %s135
    %p137 = scmp.eq.s32.totalorder %s136, 0
    %s139 = sadd.s32 %s138, 1
    %s140 = scalar_select %p137, %s138, %s139
    %p143 = pneg %p137
    %p144 = scmp.eq.s32.totalorder %s11, 3
    %p145 = por %p143, %p144
    %p146 = scmp.ne.s32.totalorder %s138, %s141
    %p147 = scmp.eq.s32.totalorder %s11, 0
    %p148 = por %p146, %p147
    %p149 = scmp.ne.s32.totalorder %s138, %s141
    %p150 = scmp.eq.s32.totalorder %s16, 3
    %p151 = por %p149, %p150
    %p152 = scmp.ne.s32.totalorder %s141, %s142
    %p153 = scmp.eq.s32.totalorder %s16, 0
    %p154 = por %p152, %p153
    %p155 = scmp.ne.s32.totalorder %s141, %s142
    %p156 = scmp.eq.s32.totalorder %s17, 3
    %p157 = por %p155, %p156
    %p159 = scmp.ne.s32.totalorder %s142, %s158
    %p160 = scmp.eq.s32.totalorder %s17, 0
    %p161 = por %p159, %p160
    %p162 = scmp.le.s32.totalorder 1, %s11
    %p163 = scmp.lt.s32.totalorder %s11, 5
    %p164 = pnand %p162, %p163
    %p165 = pneg %p164
    // Predicated region
    $region9: #{con_block_forward.2} parent=5 // pred_check
      _
    $region10: #{con_block_forward.2} parent=5 // pred_check_branch
      %167 = sbr.rel (%p164) target = $region12
    $region11: #{con_block_forward.2} parent=5 // pred_region
      %s168 = ssub.s32 %s11, 1
      // Predicated region
      $region13: #{con_block_forward.2} parent=11 // pred_check
        %p169 = pneg %p70
      $region14: #{con_block_forward.2} parent=11 // pred_check_branch
        %171 = sbr.rel (%p169) target = $region16
      $region15: #{con_block_forward.2} parent=11 // pred_region
        _
      $region16: #{con_block_forward.2} parent=11 // pred_fallthru
        _
    $region12: #{con_block_forward.2} parent=5 // pred_fallthru
      _
    %p172 = scmp.lt.s32.totalorder %s11, 4
    // Predicated region
    $region17: #{con_block_forward.2} parent=5 // pred_check
      %p173 = pneg %p172
    $region18: #{con_block_forward.2} parent=5 // pred_check_branch
      %175 = sbr.rel (%p173) target = $region20
    $region19: #{con_block_forward.2} parent=5 // pred_region
      // Predicated region
      $region21: #{con_block_forward.2} parent=19 // pred_check
        %p176 = pneg %p43
      $region22: #{con_block_forward.2} parent=19 // pred_check_branch
        %178 = sbr.rel (%p176) target = $region24
      $region23: #{con_block_forward.2} parent=19 // pred_region
        %p179 = scmp.lt.s32.totalorder %s18, 1
        %s180 = scalar_select %p179, %s18, 1
        %s181 = smul.addr %s180, 54
        %s182 = smul.addr %s181, 4
        %s183 = scalar_lea.vmem %s0, %s182
      $region24: #{con_block_forward.2} parent=19 // pred_fallthru
        _
    $region20: #{con_block_forward.2} parent=5 // pred_fallthru
      _
    %p184 = scmp.le.s32.totalorder 1, %s11
    %p185 = scmp.lt.s32.totalorder %s11, 5
    %p186 = pnand %p184, %p185
    %p187 = pneg %p186
    // Predicated region
    $region25: #{con_block_forward.2} parent=5 // pred_check
      _
    $region26: #{con_block_forward.2} parent=5 // pred_check_branch
      %189 = sbr.rel (%p186) target = $region28
    $region27: #{con_block_forward.2} parent=5 // pred_region
      %s190 = ssub.s32 %s11, 1
      %p191 = scmp.lt.s32.totalorder %s20, 1
      %s192 = scalar_select %p191, %s20, 1
      %s193 = smul.addr %s192, 54
      %s194 = smul.addr %s193, 4
      %s195 = scalar_lea.vmem %s0, %s194
      %p196 = pneg %p49
      %p197 = pneg %p46
      %p198 = pneg %p70
      %p199 = pneg %p67
      %p200 = pneg %p98
      %p201 = pneg %p95
      %s202 = smul.u32 16, %s21
      %p203 = scmp.lt.s32.totalorder %s20, 1
      %s204 = scalar_select %p203, %s20, 1
      %p205 = scmp.lt.s32.totalorder %s202, 31
      %s206 = scalar_select %p205, %s202, 31
      %s207 = smul.addr %s204, 32
      %s208 = sadd.s32 %s206, %s207
      %s209 = smul.addr %s208, 8
      %s210 = scalar_lea.vmem %s2, %s209
      %p211 = pneg %p126
      %p212 = pneg %p123
      %p213 = scmp.lt.s32.totalorder %s20, 1
      %s214 = scalar_select %p213, %s20, 1
      %p215 = scmp.lt.s32.totalorder %s21, 1
      %s216 = scalar_select %p215, %s21, 1
      %s217 = smul.addr %s214, 2
      %s218 = sadd.s32 %s216, %s217
      %s219 = scalar_lea.vmem %s3, %s218
      %p220 = pneg %p154
      %p221 = pneg %p151
      %p222 = scmp.lt.s32.totalorder %s20, 1
      %s223 = scalar_select %p222, %s20, 1
      %p224 = scmp.lt.s32.totalorder %s21, 1
      %s225 = scalar_select %p224, %s21, 1
      %s226 = smul.addr %s223, 2
      %s227 = sadd.s32 %s225, %s226
      %s228 = scalar_lea.vmem %s4, %s227
      %p229 = scmp.lt.s32.totalorder %s20, 1
      %s230 = scalar_select %p229, %s20, 1
      %s231 = smul.addr %s230, 54
      %s232 = smul.addr %s231, 4
      %s233 = scalar_lea.vmem %s0, %s232
      %s234 = smul.u32 16, %s21
      %p235 = scmp.lt.s32.totalorder %s20, 1
      %s236 = scalar_select %p235, %s20, 1
      %p237 = scmp.lt.s32.totalorder %s234, 31
      %s238 = scalar_select %p237, %s234, 31
      %s239 = smul.addr %s236, 32
      %s240 = sadd.s32 %s238, %s239
      %s241 = smul.addr %s240, 8
      %s242 = scalar_lea.vmem %s2, %s241
      %s243 = smul.u32 16, %s21
      %p244 = scmp.lt.s32.totalorder %s20, 1
      %s245 = scalar_select %p244, %s20, 1
      %p246 = scmp.lt.s32.totalorder %s21, 1
      %s247 = scalar_select %p246, %s21, 1
      %s248 = smul.addr %s245, 2
      %s249 = sadd.s32 %s247, %s248
      %s250 = scalar_lea.vmem %s3, %s249
      %p251 = scmp.lt.s32.totalorder %s20, 1
      %s252 = scalar_select %p251, %s20, 1
      %p253 = scmp.lt.s32.totalorder %s21, 1
      %s254 = scalar_select %p253, %s21, 1
      %s255 = smul.addr %s252, 2
      %s256 = sadd.s32 %s254, %s255
      %s257 = scalar_lea.vmem %s4, %s256
      %s259 = smul.u32 %s21, 8
      %260 = vst [vmem:[#allocation3] sm:$0xff] 0.0
      %261 = vst [vmem:[#allocation3 + $0x8] sm:$0xff] 0.0
      %262 = vst [vmem:[#allocation3 + $0x10] sm:$0xff] 0.0
      %263 = vst [vmem:[#allocation3 + $0x18] sm:$0xff] 0.0
      %264 = vst [vmem:[#allocation3 + $0x20] sm:$0xff] 0.0
      %265 = vst [vmem:[#allocation3 + $0x28] sm:$0xff] 0.0
      %266 = vst [vmem:[#allocation3 + $0x30] sm:$0xff] 0.0
      %267 = vst [vmem:[#allocation3 + $0x38] sm:$0xff] 0.0
      %268 = vst [vmem:[#allocation3 + $0x40] sm:$0xff] 0.0
      %269 = vst [vmem:[#allocation3 + $0x48] sm:$0xff] 0.0
      %270 = vst [vmem:[#allocation3 + $0x50] sm:$0xff] 0.0
      %271 = vst [vmem:[#allocation3 + $0x58] sm:$0xff] 0.0
      %272 = vst [vmem:[#allocation3 + $0x60] sm:$0xff] 0.0
      %273 = vst [vmem:[#allocation3 + $0x68] sm:$0xff] 0.0
      %274 = vst [vmem:[#allocation3 + $0x70] sm:$0xff] 0.0
      %275 = vst [vmem:[#allocation3 + $0x78] sm:$0xff] 0.0
      %s276 = smul.u32 %s259, 3
      %s277 = smul.addr %s276, 4
      %s278 = scalar_lea.vmem %s233, %s277
      %v279 = vld [vmem:[%s278] sm:$0xf]
      %v280 = vld [vmem:[%s278 + $0x4] sm:$0xf]
      %vm281 = vcmask 27648
      %282 = vst.msk [vmem:[#allocation2] sm:$0xf] %vm281, %v279
      %283 = vst.msk [vmem:[#allocation2 + $0x4] sm:$0xf] %vm281, %v280
      %s284 = sadd.s32 %s259, 1
      %s285 = smul.u32 %s284, 3
      %s286 = smul.addr %s285, 4
      %s287 = scalar_lea.vmem %s233, %s286
      %v288 = vld [vmem:[%s287] sm:$0xf]
      %v289 = vld [vmem:[%s287 + $0x4] sm:$0xf]
      %290 = vst.msk [vmem:[#allocation2 + $0x8] sm:$0xf] %vm281, %v288
      %291 = vst.msk [vmem:[#allocation2 + $0xc] sm:$0xf] %vm281, %v289
      %s292 = sadd.s32 %s259, 2
      %s293 = smul.u32 %s292, 3
      %s294 = smul.addr %s293, 4
      %s295 = scalar_lea.vmem %s233, %s294
      %v296 = vld [vmem:[%s295] sm:$0xf]
      %v297 = vld [vmem:[%s295 + $0x4] sm:$0xf]
      %298 = vst.msk [vmem:[#allocation2 + $0x10] sm:$0xf] %vm281, %v296
      %299 = vst.msk [vmem:[#allocation2 + $0x14] sm:$0xf] %vm281, %v297
      %s300 = sadd.s32 %s259, 3
      %s301 = smul.u32 %s300, 3
      %s302 = smul.addr %s301, 4
      %s303 = scalar_lea.vmem %s233, %s302
      %v304 = vld [vmem:[%s303] sm:$0xf]
      %v305 = vld [vmem:[%s303 + $0x4] sm:$0xf]
      %306 = vst.msk [vmem:[#allocation2 + $0x18] sm:$0xf] %vm281, %v304
      %307 = vst.msk [vmem:[#allocation2 + $0x1c] sm:$0xf] %vm281, %v305
      %s308 = sadd.s32 %s259, 4
      %s309 = smul.u32 %s308, 3
      %s310 = smul.addr %s309, 4
      %s311 = scalar_lea.vmem %s233, %s310
      %v312 = vld [vmem:[%s311] sm:$0xf]
      %v313 = vld [vmem:[%s311 + $0x4] sm:$0xf]
      %314 = vst.msk [vmem:[#allocation2 + $0x20] sm:$0xf] %vm281, %v312
      %315 = vst.msk [vmem:[#allocation2 + $0x24] sm:$0xf] %vm281, %v313
      %s316 = sadd.s32 %s259, 5
      %s317 = smul.u32 %s316, 3
      %s318 = smul.addr %s317, 4
      %s319 = scalar_lea.vmem %s233, %s318
      %v320 = vld [vmem:[%s319] sm:$0xf]
      %v321 = vld [vmem:[%s319 + $0x4] sm:$0xf]
      %322 = vst.msk [vmem:[#allocation2 + $0x28] sm:$0xf] %vm281, %v320
      %323 = vst.msk [vmem:[#allocation2 + $0x2c] sm:$0xf] %vm281, %v321
      %s324 = sadd.s32 %s259, 6
      %s325 = smul.u32 %s324, 3
      %s326 = smul.addr %s325, 4
      %s327 = scalar_lea.vmem %s233, %s326
      %v328 = vld [vmem:[%s327] sm:$0xf]
      %v329 = vld [vmem:[%s327 + $0x4] sm:$0xf]
      %330 = vst.msk [vmem:[#allocation2 + $0x30] sm:$0xf] %vm281, %v328
      %331 = vst.msk [vmem:[#allocation2 + $0x34] sm:$0xf] %vm281, %v329
      %s332 = sadd.s32 %s259, 7
      %s333 = smul.u32 %s332, 3
      %s334 = smul.addr %s333, 4
      %s335 = scalar_lea.vmem %s233, %s334
      %v336 = vld [vmem:[%s335] sm:$0xf]
      %v337 = vld [vmem:[%s335 + $0x4] sm:$0xf]
      %338 = vst.msk [vmem:[#allocation2 + $0x38] sm:$0xf] %vm281, %v336
      %339 = vst.msk [vmem:[#allocation2 + $0x3c] sm:$0xf] %vm281, %v337
      %v340 = vld [vmem:[#allocation3] sm:$0xff]
      %v341 = vld [vmem:[#allocation3 + $0x8] sm:$0xff]
      %v342 = vld [vmem:[#allocation3 + $0x10] sm:$0xff]
      %v343 = vld [vmem:[#allocation3 + $0x18] sm:$0xff]
      %v344 = vld [vmem:[#allocation3 + $0x20] sm:$0xff]
      %v345 = vld [vmem:[#allocation3 + $0x28] sm:$0xff]
      %v346 = vld [vmem:[#allocation3 + $0x30] sm:$0xff]
      %v347 = vld [vmem:[#allocation3 + $0x38] sm:$0xff]
      %v348 = vld [vmem:[#allocation3 + $0x40] sm:$0xff]
      %v349 = vld [vmem:[#allocation3 + $0x48] sm:$0xff]
      %v350 = vld [vmem:[#allocation3 + $0x50] sm:$0xff]
      %v351 = vld [vmem:[#allocation3 + $0x58] sm:$0xff]
      %v352 = vld [vmem:[#allocation3 + $0x60] sm:$0xff]
      %v353 = vld [vmem:[#allocation3 + $0x68] sm:$0xff]
      %v354 = vld [vmem:[#allocation3 + $0x70] sm:$0xff]
      %v355 = vld [vmem:[#allocation3 + $0x78] sm:$0xff]
      %v356 = vld [vmem:[#allocation2] sm:$0xf]
      %v357 = vld [vmem:[#allocation2 + $0x4] sm:$0xf]
      %v358 = vld [vmem:[#allocation2 + $0x8] sm:$0xf]
      %v359 = vld [vmem:[#allocation2 + $0xc] sm:$0xf]
      %v360 = vld [vmem:[#allocation2 + $0x10] sm:$0xf]
      %v361 = vld [vmem:[#allocation2 + $0x14] sm:$0xf]
      %v362 = vld [vmem:[#allocation2 + $0x18] sm:$0xf]
      %v363 = vld [vmem:[#allocation2 + $0x1c] sm:$0xf]
      %v364 = vld [vmem:[#allocation2 + $0x20] sm:$0xf]
      %v365 = vld [vmem:[#allocation2 + $0x24] sm:$0xf]
      %v366 = vld [vmem:[#allocation2 + $0x28] sm:$0xf]
      %v367 = vld [vmem:[#allocation2 + $0x2c] sm:$0xf]
      %v368 = vld [vmem:[#allocation2 + $0x30] sm:$0xf]
      %v369 = vld [vmem:[#allocation2 + $0x34] sm:$0xf]
      %v370 = vld [vmem:[#allocation2 + $0x38] sm:$0xf]
      %v371 = vld [vmem:[#allocation2 + $0x3c] sm:$0xf]
      %v372 = vld [vmem:[%s1] sm:$0x3]
      %v389 = vunpack.c.l.b16 %v356
      %v390 = vunpack.c.l.b16 %v357
      %v391 = vunpack.c.l.b16 %v358
      %v392 = vunpack.c.l.b16 %v359
      %v393 = vunpack.c.l.b16 %v360
      %v394 = vunpack.c.l.b16 %v361
      %v395 = vunpack.c.l.b16 %v362
      %v396 = vunpack.c.l.b16 %v363
      %v397 = vunpack.c.l.b16 %v364
      %v398 = vunpack.c.l.b16 %v365
      %v399 = vunpack.c.l.b16 %v366
      %v400 = vunpack.c.l.b16 %v367
      %v401 = vunpack.c.l.b16 %v368
      %v402 = vunpack.c.l.b16 %v369
      %v403 = vunpack.c.l.b16 %v370
      %v404 = vunpack.c.l.b16 %v371
      %v405 = vpack.c.b16 %v390, %v389
      %v406 = vpack.c.b16 %v392, %v391
      %v407 = vpack.c.b16 %v394, %v393
      %v408 = vpack.c.b16 %v396, %v395
      %v409 = vpack.c.b16 %v398, %v397
      %v410 = vpack.c.b16 %v400, %v399
      %v411 = vpack.c.b16 %v402, %v401
      %v412 = vpack.c.b16 %v404, %v403
      %vm413 = vcmask 31744
      %v415 = vsel %vm413, %v405, 0
      %v418 = vsel %vm413, %v406, 0
      %v421 = vsel %vm413, %v407, 0
      %v424 = vsel %vm413, %v408, 0
      %v427 = vsel %vm413, %v409, 0
      %v430 = vsel %vm413, %v410, 0
      %v433 = vsel %vm413, %v411, 0
      %v436 = vsel %vm413, %v412, 0
      %vm438 = vcmask 1041408
      %v440 = vsel %vm438, %v372, 0
      %442 = vmatpush.bf16.msra.mxu0 0
      %443 = vmatpush.bf16.msra.mxu0 0
      %444 = vmatpush.bf16.msra.mxu0 0
      %445 = vmatpush.bf16.msra.mxu0 0
      %446 = vmatpush.bf16.msra.mxu0 0
      %447 = vmatpush.bf16.msra.mxu0 0
      %448 = vmatpush.bf16.msra.mxu0 0
      %449 = vmatpush.bf16.msra.mxu0 %v440
      %450 = vmatmul.bf16.gmra.mxu0 %v415
      %v451 = vpop.f32.mrf.mxu0
      %v452 = vadd.f32 0.0, %v451
      %v453 = vpop.f32.mrf.mxu0
      %v454 = vadd.f32 0.0, %v453
      %455 = vmatmul.bf16.gmra.mxu0 %v418
      %v456 = vpop.f32.mrf.mxu0
      %v457 = vadd.f32 0.0, %v456
      %v458 = vpop.f32.mrf.mxu0
      %v459 = vadd.f32 0.0, %v458
      %460 = vmatmul.bf16.gmra.mxu0 %v421
      %v461 = vpop.f32.mrf.mxu0
      %v462 = vadd.f32 0.0, %v461
      %v463 = vpop.f32.mrf.mxu0
      %v464 = vadd.f32 0.0, %v463
      %465 = vmatmul.bf16.gmra.mxu0 %v424
      %v466 = vpop.f32.mrf.mxu0
      %v467 = vadd.f32 0.0, %v466
      %v468 = vpop.f32.mrf.mxu0
      %v469 = vadd.f32 0.0, %v468
      %470 = vmatmul.bf16.gmra.mxu0 %v427
      %v471 = vpop.f32.mrf.mxu0
      %v472 = vadd.f32 0.0, %v471
      %v473 = vpop.f32.mrf.mxu0
      %v474 = vadd.f32 0.0, %v473
      %475 = vmatmul.bf16.gmra.mxu0 %v430
      %v476 = vpop.f32.mrf.mxu0
      %v477 = vadd.f32 0.0, %v476
      %v478 = vpop.f32.mrf.mxu0
      %v479 = vadd.f32 0.0, %v478
      %480 = vmatmul.bf16.gmra.mxu0 %v433
      %v481 = vpop.f32.mrf.mxu0
      %v482 = vadd.f32 0.0, %v481
      %v483 = vpop.f32.mrf.mxu0
      %v484 = vadd.f32 0.0, %v483
      %485 = vmatmul.bf16.gmra.mxu0 %v436
      %v486 = vpop.f32.mrf.mxu0
      %v487 = vadd.f32 0.0, %v486
      %v488 = vpop.f32.mrf.mxu0
      %v489 = vadd.f32 0.0, %v488
      %490 = vdwg.mxu0
      %v491 = vadd.f32 %v340, %v452
      %v492 = vadd.f32 %v341, %v454
      %v493 = vadd.f32 %v342, %v457
      %v494 = vadd.f32 %v343, %v459
      %v495 = vadd.f32 %v344, %v462
      %v496 = vadd.f32 %v345, %v464
      %v497 = vadd.f32 %v346, %v467
      %v498 = vadd.f32 %v347, %v469
      %v499 = vadd.f32 %v348, %v472
      %v500 = vadd.f32 %v349, %v474
      %v501 = vadd.f32 %v350, %v477
      %v502 = vadd.f32 %v351, %v479
      %v503 = vadd.f32 %v352, %v482
      %v504 = vadd.f32 %v353, %v484
      %v505 = vadd.f32 %v354, %v487
      %v506 = vadd.f32 %v355, %v489
      %507 = vst [vmem:[#allocation3] sm:$0xff] %v491
      %508 = vst [vmem:[#allocation3 + $0x8] sm:$0xff] %v492
      %509 = vst [vmem:[#allocation3 + $0x10] sm:$0xff] %v493
      %510 = vst [vmem:[#allocation3 + $0x18] sm:$0xff] %v494
      %511 = vst [vmem:[#allocation3 + $0x20] sm:$0xff] %v495
      %512 = vst [vmem:[#allocation3 + $0x28] sm:$0xff] %v496
      %513 = vst [vmem:[#allocation3 + $0x30] sm:$0xff] %v497
      %514 = vst [vmem:[#allocation3 + $0x38] sm:$0xff] %v498
      %515 = vst [vmem:[#allocation3 + $0x40] sm:$0xff] %v499
      %516 = vst [vmem:[#allocation3 + $0x48] sm:$0xff] %v500
      %517 = vst [vmem:[#allocation3 + $0x50] sm:$0xff] %v501
      %518 = vst [vmem:[#allocation3 + $0x58] sm:$0xff] %v502
      %519 = vst [vmem:[#allocation3 + $0x60] sm:$0xff] %v503
      %520 = vst [vmem:[#allocation3 + $0x68] sm:$0xff] %v504
      %521 = vst [vmem:[#allocation3 + $0x70] sm:$0xff] %v505
      %522 = vst [vmem:[#allocation3 + $0x78] sm:$0xff] %v506
      %v523 = vld [vmem:[%s278] sm:$0xf]
      %v524 = vld [vmem:[%s278 + $0x4] sm:$0xf]
      %v525 = vld [vmem:[%s278 + $0x8] sm:$0x1]
      %vm526 = vsmask.f32 3328
      %vm527 = vsmask.f32 7440
      %vm528 = vmor %vm526, %vm527
      %v530 = vshrl.u32 %v523, 16
      %v532 = vrot.slane %v530, 4
      %v533 = vshll.u32 %v523, 16
      %v535 = vrot.slane %v533, 5
      %v536 = vor.u32 %v532, %v535
      %v537 = vrot.slane %v536, 4
      %v539 = vshll.u32 %v524, 16
      %v541 = vrot.slane %v539, 5
      %v542 = vsel %vm528, %v537, %v541
      %v543 = vshrl.u32 %v524, 16
      %v545 = vrot.slane %v543, 4
      %v546 = vor.u32 %v545, %v541
      %v547 = vrot.slane %v546, 4
      %v549 = vshll.u32 %v525, 16
      %v551 = vrot.slane %v549, 5
      %v552 = vsel %vm528, %v547, %v551
      %555 = vst.msk [vmem:[#allocation2] sm:$0xf] %vm281, %v542
      %556 = vst.msk [vmem:[#allocation2 + $0x4] sm:$0xf] %vm281, %v552
      %v557 = vld [vmem:[%s287] sm:$0xf]
      %v558 = vld [vmem:[%s287 + $0x4] sm:$0xf]
      %v559 = vld [vmem:[%s287 + $0x8] sm:$0x1]
      %v561 = vshrl.u32 %v557, 16
      %v563 = vrot.slane %v561, 4
      %v564 = vshll.u32 %v557, 16
      %v566 = vrot.slane %v564, 5
      %v567 = vor.u32 %v563, %v566
      %v568 = vrot.slane %v567, 4
      %v570 = vshll.u32 %v558, 16
      %v572 = vrot.slane %v570, 5
      %v573 = vsel %vm528, %v568, %v572
      %v574 = vshrl.u32 %v558, 16
      %v576 = vrot.slane %v574, 4
      %v577 = vor.u32 %v576, %v572
      %v578 = vrot.slane %v577, 4
      %v580 = vshll.u32 %v559, 16
      %v582 = vrot.slane %v580, 5
      %v583 = vsel %vm528, %v578, %v582
      %586 = vst.msk [vmem:[#allocation2 + $0x8] sm:$0xf] %vm281, %v573
      %587 = vst.msk [vmem:[#allocation2 + $0xc] sm:$0xf] %vm281, %v583
      %v588 = vld [vmem:[%s295] sm:$0xf]
      %v589 = vld [vmem:[%s295 + $0x4] sm:$0xf]
      %v590 = vld [vmem:[%s295 + $0x8] sm:$0x1]
      %v592 = vshrl.u32 %v588, 16
      %v594 = vrot.slane %v592, 4
      %v595 = vshll.u32 %v588, 16
      %v597 = vrot.slane %v595, 5
      %v598 = vor.u32 %v594, %v597
      %v599 = vrot.slane %v598, 4
      %v601 = vshll.u32 %v589, 16
      %v603 = vrot.slane %v601, 5
      %v604 = vsel %vm528, %v599, %v603
      %v605 = vshrl.u32 %v589, 16
      %v607 = vrot.slane %v605, 4
      %v608 = vor.u32 %v607, %v603
      %v609 = vrot.slane %v608, 4
      %v611 = vshll.u32 %v590, 16
      %v613 = vrot.slane %v611, 5
      %v614 = vsel %vm528, %v609, %v613
      %617 = vst.msk [vmem:[#allocation2 + $0x10] sm:$0xf] %vm281, %v604
      %618 = vst.msk [vmem:[#allocation2 + $0x14] sm:$0xf] %vm281, %v614
      %v619 = vld [vmem:[%s303] sm:$0xf]
      %v620 = vld [vmem:[%s303 + $0x4] sm:$0xf]
      %v621 = vld [vmem:[%s303 + $0x8] sm:$0x1]
      %v623 = vshrl.u32 %v619, 16
      %v625 = vrot.slane %v623, 4
      %v626 = vshll.u32 %v619, 16
      %v628 = vrot.slane %v626, 5
      %v629 = vor.u32 %v625, %v628
      %v630 = vrot.slane %v629, 4
      %v632 = vshll.u32 %v620, 16
      %v634 = vrot.slane %v632, 5
      %v635 = vsel %vm528, %v630, %v634
      %v636 = vshrl.u32 %v620, 16
      %v638 = vrot.slane %v636, 4
      %v639 = vor.u32 %v638, %v634
      %v640 = vrot.slane %v639, 4
      %v642 = vshll.u32 %v621, 16
      %v644 = vrot.slane %v642, 5
      %v645 = vsel %vm528, %v640, %v644
      %648 = vst.msk [vmem:[#allocation2 + $0x18] sm:$0xf] %vm281, %v635
      %649 = vst.msk [vmem:[#allocation2 + $0x1c] sm:$0xf] %vm281, %v645
      %v650 = vld [vmem:[%s311] sm:$0xf]
      %v651 = vld [vmem:[%s311 + $0x4] sm:$0xf]
      %v652 = vld [vmem:[%s311 + $0x8] sm:$0x1]
      %v654 = vshrl.u32 %v650, 16
      %v656 = vrot.slane %v654, 4
      %v657 = vshll.u32 %v650, 16
      %v659 = vrot.slane %v657, 5
      %v660 = vor.u32 %v656, %v659
      %v661 = vrot.slane %v660, 4
      %v663 = vshll.u32 %v651, 16
      %v665 = vrot.slane %v663, 5
      %v666 = vsel %vm528, %v661, %v665
      %v667 = vshrl.u32 %v651, 16
      %v669 = vrot.slane %v667, 4
      %v670 = vor.u32 %v669, %v665
      %v671 = vrot.slane %v670, 4
      %v673 = vshll.u32 %v652, 16
      %v675 = vrot.slane %v673, 5
      %v676 = vsel %vm528, %v671, %v675
      %679 = vst.msk [vmem:[#allocation2 + $0x20] sm:$0xf] %vm281, %v666
      %680 = vst.msk [vmem:[#allocation2 + $0x24] sm:$0xf] %vm281, %v676
      %v681 = vld [vmem:[%s319] sm:$0xf]
      %v682 = vld [vmem:[%s319 + $0x4] sm:$0xf]
      %v683 = vld [vmem:[%s319 + $0x8] sm:$0x1]
      %v685 = vshrl.u32 %v681, 16
      %v687 = vrot.slane %v685, 4
      %v688 = vshll.u32 %v681, 16
      %v690 = vrot.slane %v688, 5
      %v691 = vor.u32 %v687, %v690
      %v692 = vrot.slane %v691, 4
      %v694 = vshll.u32 %v682, 16
      %v696 = vrot.slane %v694, 5
      %v697 = vsel %vm528, %v692, %v696
      %v698 = vshrl.u32 %v682, 16
      %v700 = vrot.slane %v698, 4
      %v701 = vor.u32 %v700, %v696
      %v702 = vrot.slane %v701, 4
      %v704 = vshll.u32 %v683, 16
      %v706 = vrot.slane %v704, 5
      %v707 = vsel %vm528, %v702, %v706
      %710 = vst.msk [vmem:[#allocation2 + $0x28] sm:$0xf] %vm281, %v697
      %711 = vst.msk [vmem:[#allocation2 + $0x2c] sm:$0xf] %vm281, %v707
      %v712 = vld [vmem:[%s327] sm:$0xf]
      %v713 = vld [vmem:[%s327 + $0x4] sm:$0xf]
      %v714 = vld [vmem:[%s327 + $0x8] sm:$0x1]
      %v716 = vshrl.u32 %v712, 16
      %v718 = vrot.slane %v716, 4
      %v719 = vshll.u32 %v712, 16
      %v721 = vrot.slane %v719, 5
      %v722 = vor.u32 %v718, %v721
      %v723 = vrot.slane %v722, 4
      %v725 = vshll.u32 %v713, 16
      %v727 = vrot.slane %v725, 5
      %v728 = vsel %vm528, %v723, %v727
      %v729 = vshrl.u32 %v713, 16
      %v731 = vrot.slane %v729, 4
      %v732 = vor.u32 %v731, %v727
      %v733 = vrot.slane %v732, 4
      %v735 = vshll.u32 %v714, 16
      %v737 = vrot.slane %v735, 5
      %v738 = vsel %vm528, %v733, %v737
      %741 = vst.msk [vmem:[#allocation2 + $0x30] sm:$0xf] %vm281, %v728
      %742 = vst.msk [vmem:[#allocation2 + $0x34] sm:$0xf] %vm281, %v738
      %v743 = vld [vmem:[%s335] sm:$0xf]
      %v744 = vld [vmem:[%s335 + $0x4] sm:$0xf]
      %v745 = vld [vmem:[%s335 + $0x8] sm:$0x1]
      %v747 = vshrl.u32 %v743, 16
      %v749 = vrot.slane %v747, 4
      %v750 = vshll.u32 %v743, 16
      %v752 = vrot.slane %v750, 5
      %v753 = vor.u32 %v749, %v752
      %v754 = vrot.slane %v753, 4
      %v756 = vshll.u32 %v744, 16
      %v758 = vrot.slane %v756, 5
      %v759 = vsel %vm528, %v754, %v758
      %v760 = vshrl.u32 %v744, 16
      %v762 = vrot.slane %v760, 4
      %v763 = vor.u32 %v762, %v758
      %v764 = vrot.slane %v763, 4
      %v766 = vshll.u32 %v745, 16
      %v768 = vrot.slane %v766, 5
      %v769 = vsel %vm528, %v764, %v768
      %772 = vst.msk [vmem:[#allocation2 + $0x38] sm:$0xf] %vm281, %v759
      %773 = vst.msk [vmem:[#allocation2 + $0x3c] sm:$0xf] %vm281, %v769
      %v774 = vld [vmem:[#allocation3] sm:$0xff]
      %v775 = vld [vmem:[#allocation3 + $0x8] sm:$0xff]
      %v776 = vld [vmem:[#allocation3 + $0x10] sm:$0xff]
      %v777 = vld [vmem:[#allocation3 + $0x18] sm:$0xff]
      %v778 = vld [vmem:[#allocation3 + $0x20] sm:$0xff]
      %v779 = vld [vmem:[#allocation3 + $0x28] sm:$0xff]
      %v780 = vld [vmem:[#allocation3 + $0x30] sm:$0xff]
      %v781 = vld [vmem:[#allocation3 + $0x38] sm:$0xff]
      %v782 = vld [vmem:[#allocation3 + $0x40] sm:$0xff]
      %v783 = vld [vmem:[#allocation3 + $0x48] sm:$0xff]
      %v784 = vld [vmem:[#allocation3 + $0x50] sm:$0xff]
      %v785 = vld [vmem:[#allocation3 + $0x58] sm:$0xff]
      %v786 = vld [vmem:[#allocation3 + $0x60] sm:$0xff]
      %v787 = vld [vmem:[#allocation3 + $0x68] sm:$0xff]
      %v788 = vld [vmem:[#allocation3 + $0x70] sm:$0xff]
      %v789 = vld [vmem:[#allocation3 + $0x78] sm:$0xff]
      %v790 = vld [vmem:[#allocation2] sm:$0xf]
      %v791 = vld [vmem:[#allocation2 + $0x4] sm:$0xf]
      %v792 = vld [vmem:[#allocation2 + $0x8] sm:$0xf]
      %v793 = vld [vmem:[#allocation2 + $0xc] sm:$0xf]
      %v794 = vld [vmem:[#allocation2 + $0x10] sm:$0xf]
      %v795 = vld [vmem:[#allocation2 + $0x14] sm:$0xf]
      %v796 = vld [vmem:[#allocation2 + $0x18] sm:$0xf]
      %v797 = vld [vmem:[#allocation2 + $0x1c] sm:$0xf]
      %v798 = vld [vmem:[#allocation2 + $0x20] sm:$0xf]
      %v799 = vld [vmem:[#allocation2 + $0x24] sm:$0xf]
      %v800 = vld [vmem:[#allocation2 + $0x28] sm:$0xf]
      %v801 = vld [vmem:[#allocation2 + $0x2c] sm:$0xf]
      %v802 = vld [vmem:[#allocation2 + $0x30] sm:$0xf]
      %v803 = vld [vmem:[#allocation2 + $0x34] sm:$0xf]
      %v804 = vld [vmem:[#allocation2 + $0x38] sm:$0xf]
      %v805 = vld [vmem:[#allocation2 + $0x3c] sm:$0xf]
      %s806 = scalar_lea.vmem %s1, 2
      %v807 = vld [vmem:[%s806] sm:$0x3]
      %v824 = vunpack.c.l.b16 %v790
      %v825 = vunpack.c.l.b16 %v791
      %v826 = vunpack.c.l.b16 %v792
      %v827 = vunpack.c.l.b16 %v793
      %v828 = vunpack.c.l.b16 %v794
      %v829 = vunpack.c.l.b16 %v795
      %v830 = vunpack.c.l.b16 %v796
      %v831 = vunpack.c.l.b16 %v797
      %v832 = vunpack.c.l.b16 %v798
      %v833 = vunpack.c.l.b16 %v799
      %v834 = vunpack.c.l.b16 %v800
      %v835 = vunpack.c.l.b16 %v801
      %v836 = vunpack.c.l.b16 %v802
      %v837 = vunpack.c.l.b16 %v803
      %v838 = vunpack.c.l.b16 %v804
      %v839 = vunpack.c.l.b16 %v805
      %v840 = vpack.c.b16 %v825, %v824
      %v841 = vpack.c.b16 %v827, %v826
      %v842 = vpack.c.b16 %v829, %v828
      %v843 = vpack.c.b16 %v831, %v830
      %v844 = vpack.c.b16 %v833, %v832
      %v845 = vpack.c.b16 %v835, %v834
      %v846 = vpack.c.b16 %v837, %v836
      %v847 = vpack.c.b16 %v839, %v838
      %v849 = vsel %vm413, %v840, 0
      %v852 = vsel %vm413, %v841, 0
      %v855 = vsel %vm413, %v842, 0
      %v858 = vsel %vm413, %v843, 0
      %v861 = vsel %vm413, %v844, 0
      %v864 = vsel %vm413, %v845, 0
      %v867 = vsel %vm413, %v846, 0
      %v870 = vsel %vm413, %v847, 0
      %v873 = vsel %vm438, %v807, 0
      %875 = vmatpush.bf16.msra.mxu0 0
      %876 = vmatpush.bf16.msra.mxu0 0
      %877 = vmatpush.bf16.msra.mxu0 0
      %878 = vmatpush.bf16.msra.mxu0 0
      %879 = vmatpush.bf16.msra.mxu0 0
      %880 = vmatpush.bf16.msra.mxu0 0
      %881 = vmatpush.bf16.msra.mxu0 0
      %882 = vmatpush.bf16.msra.mxu0 %v873
      %883 = vmatmul.bf16.gmra.mxu0 %v849
      %v884 = vpop.f32.mrf.mxu0
      %v885 = vadd.f32 0.0, %v884
      %v886 = vpop.f32.mrf.mxu0
      %v887 = vadd.f32 0.0, %v886
      %888 = vmatmul.bf16.gmra.mxu0 %v852
      %v889 = vpop.f32.mrf.mxu0
      %v890 = vadd.f32 0.0, %v889
      %v891 = vpop.f32.mrf.mxu0
      %v892 = vadd.f32 0.0, %v891
      %893 = vmatmul.bf16.gmra.mxu0 %v855
      %v894 = vpop.f32.mrf.mxu0
      %v895 = vadd.f32 0.0, %v894
      %v896 = vpop.f32.mrf.mxu0
      %v897 = vadd.f32 0.0, %v896
      %898 = vmatmul.bf16.gmra.mxu0 %v858
      %v899 = vpop.f32.mrf.mxu0
      %v900 = vadd.f32 0.0, %v899
      %v901 = vpop.f32.mrf.mxu0
      %v902 = vadd.f32 0.0, %v901
      %903 = vmatmul.bf16.gmra.mxu0 %v861
      %v904 = vpop.f32.mrf.mxu0
      %v905 = vadd.f32 0.0, %v904
      %v906 = vpop.f32.mrf.mxu0
      %v907 = vadd.f32 0.0, %v906
      %908 = vmatmul.bf16.gmra.mxu0 %v864
      %v909 = vpop.f32.mrf.mxu0
      %v910 = vadd.f32 0.0, %v909
      %v911 = vpop.f32.mrf.mxu0
      %v912 = vadd.f32 0.0, %v911
      %913 = vmatmul.bf16.gmra.mxu0 %v867
      %v914 = vpop.f32.mrf.mxu0
      %v915 = vadd.f32 0.0, %v914
      %v916 = vpop.f32.mrf.mxu0
      %v917 = vadd.f32 0.0, %v916
      %918 = vmatmul.bf16.gmra.mxu0 %v870
      %v919 = vpop.f32.mrf.mxu0
      %v920 = vadd.f32 0.0, %v919
      %v921 = vpop.f32.mrf.mxu0
      %v922 = vadd.f32 0.0, %v921
      %923 = vdwg.mxu0
      %v924 = vadd.f32 %v774, %v885
      %v925 = vadd.f32 %v775, %v887
      %v926 = vadd.f32 %v776, %v890
      %v927 = vadd.f32 %v777, %v892
      %v928 = vadd.f32 %v778, %v895
      %v929 = vadd.f32 %v779, %v897
      %v930 = vadd.f32 %v780, %v900
      %v931 = vadd.f32 %v781, %v902
      %v932 = vadd.f32 %v782, %v905
      %v933 = vadd.f32 %v783, %v907
      %v934 = vadd.f32 %v784, %v910
      %v935 = vadd.f32 %v785, %v912
      %v936 = vadd.f32 %v786, %v915
      %v937 = vadd.f32 %v787, %v917
      %v938 = vadd.f32 %v788, %v920
      %v939 = vadd.f32 %v789, %v922
      %940 = vst [vmem:[#allocation3] sm:$0xff] %v924
      %941 = vst [vmem:[#allocation3 + $0x8] sm:$0xff] %v925
      %942 = vst [vmem:[#allocation3 + $0x10] sm:$0xff] %v926
      %943 = vst [vmem:[#allocation3 + $0x18] sm:$0xff] %v927
      %944 = vst [vmem:[#allocation3 + $0x20] sm:$0xff] %v928
      %945 = vst [vmem:[#allocation3 + $0x28] sm:$0xff] %v929
      %946 = vst [vmem:[#allocation3 + $0x30] sm:$0xff] %v930
      %947 = vst [vmem:[#allocation3 + $0x38] sm:$0xff] %v931
      %948 = vst [vmem:[#allocation3 + $0x40] sm:$0xff] %v932
      %949 = vst [vmem:[#allocation3 + $0x48] sm:$0xff] %v933
      %950 = vst [vmem:[#allocation3 + $0x50] sm:$0xff] %v934
      %951 = vst [vmem:[#allocation3 + $0x58] sm:$0xff] %v935
      %952 = vst [vmem:[#allocation3 + $0x60] sm:$0xff] %v936
      %953 = vst [vmem:[#allocation3 + $0x68] sm:$0xff] %v937
      %954 = vst [vmem:[#allocation3 + $0x70] sm:$0xff] %v938
      %955 = vst [vmem:[#allocation3 + $0x78] sm:$0xff] %v939
      %v956 = vld [vmem:[%s278] sm:$0xe]
      %v957 = vld [vmem:[%s278 + $0x4] sm:$0xf]
      %v958 = vld [vmem:[%s278 + $0x8] sm:$0x1]
      %vm962 = vcmask 1042432
      %vm963 = vcmask 1046532
      %vm964 = vmor %vm962, %vm963
      %v965 = vrot.slane %v956, 5
      %v966 = vrot.slane %v965, 4
      %v967 = vrot.slane %v957, 5
      %v968 = vsel %vm964, %v966, %v967
      %v969 = vrot.slane %v967, 4
      %v970 = vrot.slane %v958, 5
      %v971 = vsel %vm964, %v969, %v970
      %974 = vst.msk [vmem:[#allocation2] sm:$0xf] %vm281, %v968
      %975 = vst.msk [vmem:[#allocation2 + $0x4] sm:$0xf] %vm281, %v971
      %v976 = vld [vmem:[%s287] sm:$0xe]
      %v977 = vld [vmem:[%s287 + $0x4] sm:$0xf]
      %v978 = vld [vmem:[%s287 + $0x8] sm:$0x1]
      %v982 = vrot.slane %v976, 5
      %v983 = vrot.slane %v982, 4
      %v984 = vrot.slane %v977, 5
      %v985 = vsel %vm964, %v983, %v984
      %v986 = vrot.slane %v984, 4
      %v987 = vrot.slane %v978, 5
      %v988 = vsel %vm964, %v986, %v987
      %991 = vst.msk [vmem:[#allocation2 + $0x8] sm:$0xf] %vm281, %v985
      %992 = vst.msk [vmem:[#allocation2 + $0xc] sm:$0xf] %vm281, %v988
      %v993 = vld [vmem:[%s295] sm:$0xe]
      %v994 = vld [vmem:[%s295 + $0x4] sm:$0xf]
      %v995 = vld [vmem:[%s295 + $0x8] sm:$0x1]
      %v999 = vrot.slane %v993, 5
      %v1000 = vrot.slane %v999, 4
      %v1001 = vrot.slane %v994, 5
      %v1002 = vsel %vm964, %v1000, %v1001
      %v1003 = vrot.slane %v1001, 4
      %v1004 = vrot.slane %v995, 5
      %v1005 = vsel %vm964, %v1003, %v1004
      %1008 = vst.msk [vmem:[#allocation2 + $0x10] sm:$0xf] %vm281, %v1002
      %1009 = vst.msk [vmem:[#allocation2 + $0x14] sm:$0xf] %vm281, %v1005
      %v1010 = vld [vmem:[%s303] sm:$0xe]
      %v1011 = vld [vmem:[%s303 + $0x4] sm:$0xf]
      %v1012 = vld [vmem:[%s303 + $0x8] sm:$0x1]
      %v1016 = vrot.slane %v1010, 5
      %v1017 = vrot.slane %v1016, 4
      %v1018 = vrot.slane %v1011, 5
      %v1019 = vsel %vm964, %v1017, %v1018
      %v1020 = vrot.slane %v1018, 4
      %v1021 = vrot.slane %v1012, 5
      %v1022 = vsel %vm964, %v1020, %v1021
      %1025 = vst.msk [vmem:[#allocation2 + $0x18] sm:$0xf] %vm281, %v1019
      %1026 = vst.msk [vmem:[#allocation2 + $0x1c] sm:$0xf] %vm281, %v1022
      %v1027 = vld [vmem:[%s311] sm:$0xe]
      %v1028 = vld [vmem:[%s311 + $0x4] sm:$0xf]
      %v1029 = vld [vmem:[%s311 + $0x8] sm:$0x1]
      %v1033 = vrot.slane %v1027, 5
      %v1034 = vrot.slane %v1033, 4
      %v1035 = vrot.slane %v1028, 5
      %v1036 = vsel %vm964, %v1034, %v1035
      %v1037 = vrot.slane %v1035, 4
      %v1038 = vrot.slane %v1029, 5
      %v1039 = vsel %vm964, %v1037, %v1038
      %1042 = vst.msk [vmem:[#allocation2 + $0x20] sm:$0xf] %vm281, %v1036
      %1043 = vst.msk [vmem:[#allocation2 + $0x24] sm:$0xf] %vm281, %v1039
      %v1044 = vld [vmem:[%s319] sm:$0xe]
      %v1045 = vld [vmem:[%s319 + $0x4] sm:$0xf]
      %v1046 = vld [vmem:[%s319 + $0x8] sm:$0x1]
      %v1050 = vrot.slane %v1044, 5
      %v1051 = vrot.slane %v1050, 4
      %v1052 = vrot.slane %v1045, 5
      %v1053 = vsel %vm964, %v1051, %v1052
      %v1054 = vrot.slane %v1052, 4
      %v1055 = vrot.slane %v1046, 5
      %v1056 = vsel %vm964, %v1054, %v1055
      %1059 = vst.msk [vmem:[#allocation2 + $0x28] sm:$0xf] %vm281, %v1053
      %1060 = vst.msk [vmem:[#allocation2 + $0x2c] sm:$0xf] %vm281, %v1056
      %v1061 = vld [vmem:[%s327] sm:$0xe]
      %v1062 = vld [vmem:[%s327 + $0x4] sm:$0xf]
      %v1063 = vld [vmem:[%s327 + $0x8] sm:$0x1]
      %v1067 = vrot.slane %v1061, 5
      %v1068 = vrot.slane %v1067, 4
      %v1069 = vrot.slane %v1062, 5
      %v1070 = vsel %vm964, %v1068, %v1069
      %v1071 = vrot.slane %v1069, 4
      %v1072 = vrot.slane %v1063, 5
      %v1073 = vsel %vm964, %v1071, %v1072
      %1076 = vst.msk [vmem:[#allocation2 + $0x30] sm:$0xf] %vm281, %v1070
      %1077 = vst.msk [vmem:[#allocation2 + $0x34] sm:$0xf] %vm281, %v1073
      %v1078 = vld [vmem:[%s335] sm:$0xe]
      %v1079 = vld [vmem:[%s335 + $0x4] sm:$0xf]
      %v1080 = vld [vmem:[%s335 + $0x8] sm:$0x1]
      %v1084 = vrot.slane %v1078, 5
      %v1085 = vrot.slane %v1084, 4
      %v1086 = vrot.slane %v1079, 5
      %v1087 = vsel %vm964, %v1085, %v1086
      %v1088 = vrot.slane %v1086, 4
      %v1089 = vrot.slane %v1080, 5
      %v1090 = vsel %vm964, %v1088, %v1089
      %1093 = vst.msk [vmem:[#allocation2 + $0x38] sm:$0xf] %vm281, %v1087
      %1094 = vst.msk [vmem:[#allocation2 + $0x3c] sm:$0xf] %vm281, %v1090
      %v1095 = vld [vmem:[#allocation3] sm:$0xff]
      %v1096 = vld [vmem:[#allocation3 + $0x8] sm:$0xff]
      %v1097 = vld [vmem:[#allocation3 + $0x10] sm:$0xff]
      %v1098 = vld [vmem:[#allocation3 + $0x18] sm:$0xff]
      %v1099 = vld [vmem:[#allocation3 + $0x20] sm:$0xff]
      %v1100 = vld [vmem:[#allocation3 + $0x28] sm:$0xff]
      %v1101 = vld [vmem:[#allocation3 + $0x30] sm:$0xff]
      %v1102 = vld [vmem:[#allocation3 + $0x38] sm:$0xff]
      %v1103 = vld [vmem:[#allocation3 + $0x40] sm:$0xff]
      %v1104 = vld [vmem:[#allocation3 + $0x48] sm:$0xff]
      %v1105 = vld [vmem:[#allocation3 + $0x50] sm:$0xff]
      %v1106 = vld [vmem:[#allocation3 + $0x58] sm:$0xff]
      %v1107 = vld [vmem:[#allocation3 + $0x60] sm:$0xff]
      %v1108 = vld [vmem:[#allocation3 + $0x68] sm:$0xff]
      %v1109 = vld [vmem:[#allocation3 + $0x70] sm:$0xff]
      %v1110 = vld [vmem:[#allocation3 + $0x78] sm:$0xff]
      %v1111 = vld [vmem:[#allocation2] sm:$0xf]
      %v1112 = vld [vmem:[#allocation2 + $0x4] sm:$0xf]
      %v1113 = vld [vmem:[#allocation2 + $0x8] sm:$0xf]
      %v1114 = vld [vmem:[#allocation2 + $0xc] sm:$0xf]
      %v1115 = vld [vmem:[#allocation2 + $0x10] sm:$0xf]
      %v1116 = vld [vmem:[#allocation2 + $0x14] sm:$0xf]
      %v1117 = vld [vmem:[#allocation2 + $0x18] sm:$0xf]
      %v1118 = vld [vmem:[#allocation2 + $0x1c] sm:$0xf]
      %v1119 = vld [vmem:[#allocation2 + $0x20] sm:$0xf]
      %v1120 = vld [vmem:[#allocation2 + $0x24] sm:$0xf]
      %v1121 = vld [vmem:[#allocation2 + $0x28] sm:$0xf]
      %v1122 = vld [vmem:[#allocation2 + $0x2c] sm:$0xf]
      %v1123 = vld [vmem:[#allocation2 + $0x30] sm:$0xf]
      %v1124 = vld [vmem:[#allocation2 + $0x34] sm:$0xf]
      %v1125 = vld [vmem:[#allocation2 + $0x38] sm:$0xf]
      %v1126 = vld [vmem:[#allocation2 + $0x3c] sm:$0xf]
      %s1127 = scalar_lea.vmem %s1, 4
      %v1128 = vld [vmem:[%s1127] sm:$0x3]
      %v1145 = vunpack.c.l.b16 %v1111
      %v1146 = vunpack.c.l.b16 %v1112
      %v1147 = vunpack.c.l.b16 %v1113
      %v1148 = vunpack.c.l.b16 %v1114
      %v1149 = vunpack.c.l.b16 %v1115
      %v1150 = vunpack.c.l.b16 %v1116
      %v1151 = vunpack.c.l.b16 %v1117
      %v1152 = vunpack.c.l.b16 %v1118
      %v1153 = vunpack.c.l.b16 %v1119
      %v1154 = vunpack.c.l.b16 %v1120
      %v1155 = vunpack.c.l.b16 %v1121
      %v1156 = vunpack.c.l.b16 %v1122
      %v1157 = vunpack.c.l.b16 %v1123
      %v1158 = vunpack.c.l.b16 %v1124
      %v1159 = vunpack.c.l.b16 %v1125
      %v1160 = vunpack.c.l.b16 %v1126
      %v1161 = vpack.c.b16 %v1146, %v1145
      %v1162 = vpack.c.b16 %v1148, %v1147
      %v1163 = vpack.c.b16 %v1150, %v1149
      %v1164 = vpack.c.b16 %v1152, %v1151
      %v1165 = vpack.c.b16 %v1154, %v1153
      %v1166 = vpack.c.b16 %v1156, %v1155
      %v1167 = vpack.c.b16 %v1158, %v1157
      %v1168 = vpack.c.b16 %v1160, %v1159
      %v1170 = vsel %vm413, %v1161, 0
      %v1173 = vsel %vm413, %v1162, 0
      %v1176 = vsel %vm413, %v1163, 0
      %v1179 = vsel %vm413, %v1164, 0
      %v1182 = vsel %vm413, %v1165, 0
      %v1185 = vsel %vm413, %v1166, 0
      %v1188 = vsel %vm413, %v1167, 0
      %v1191 = vsel %vm413, %v1168, 0
      %v1194 = vsel %vm438, %v1128, 0
      %1196 = vmatpush.bf16.msra.mxu0 0
      %1197 = vmatpush.bf16.msra.mxu0 0
      %1198 = vmatpush.bf16.msra.mxu0 0
      %1199 = vmatpush.bf16.msra.mxu0 0
      %1200 = vmatpush.bf16.msra.mxu0 0
      %1201 = vmatpush.bf16.msra.mxu0 0
      %1202 = vmatpush.bf16.msra.mxu0 0
      %1203 = vmatpush.bf16.msra.mxu0 %v1194
      %1204 = vmatmul.bf16.gmra.mxu0 %v1170
      %v1205 = vpop.f32.mrf.mxu0
      %v1206 = vadd.f32 0.0, %v1205
      %v1207 = vpop.f32.mrf.mxu0
      %v1208 = vadd.f32 0.0, %v1207
      %1209 = vmatmul.bf16.gmra.mxu0 %v1173
      %v1210 = vpop.f32.mrf.mxu0
      %v1211 = vadd.f32 0.0, %v1210
      %v1212 = vpop.f32.mrf.mxu0
      %v1213 = vadd.f32 0.0, %v1212
      %1214 = vmatmul.bf16.gmra.mxu0 %v1176
      %v1215 = vpop.f32.mrf.mxu0
      %v1216 = vadd.f32 0.0, %v1215
      %v1217 = vpop.f32.mrf.mxu0
      %v1218 = vadd.f32 0.0, %v1217
      %1219 = vmatmul.bf16.gmra.mxu0 %v1179
      %v1220 = vpop.f32.mrf.mxu0
      %v1221 = vadd.f32 0.0, %v1220
      %v1222 = vpop.f32.mrf.mxu0
      %v1223 = vadd.f32 0.0, %v1222
      %1224 = vmatmul.bf16.gmra.mxu0 %v1182
      %v1225 = vpop.f32.mrf.mxu0
      %v1226 = vadd.f32 0.0, %v1225
      %v1227 = vpop.f32.mrf.mxu0
      %v1228 = vadd.f32 0.0, %v1227
      %1229 = vmatmul.bf16.gmra.mxu0 %v1185
      %v1230 = vpop.f32.mrf.mxu0
      %v1231 = vadd.f32 0.0, %v1230
      %v1232 = vpop.f32.mrf.mxu0
      %v1233 = vadd.f32 0.0, %v1232
      %1234 = vmatmul.bf16.gmra.mxu0 %v1188
      %v1235 = vpop.f32.mrf.mxu0
      %v1236 = vadd.f32 0.0, %v1235
      %v1237 = vpop.f32.mrf.mxu0
      %v1238 = vadd.f32 0.0, %v1237
      %1239 = vmatmul.bf16.gmra.mxu0 %v1191
      %v1240 = vpop.f32.mrf.mxu0
      %v1241 = vadd.f32 0.0, %v1240
      %v1242 = vpop.f32.mrf.mxu0
      %v1243 = vadd.f32 0.0, %v1242
      %1244 = vdwg.mxu0
      %v1245 = vadd.f32 %v1095, %v1206
      %v1246 = vadd.f32 %v1096, %v1208
      %v1247 = vadd.f32 %v1097, %v1211
      %v1248 = vadd.f32 %v1098, %v1213
      %v1249 = vadd.f32 %v1099, %v1216
      %v1250 = vadd.f32 %v1100, %v1218
      %v1251 = vadd.f32 %v1101, %v1221
      %v1252 = vadd.f32 %v1102, %v1223
      %v1253 = vadd.f32 %v1103, %v1226
      %v1254 = vadd.f32 %v1104, %v1228
      %v1255 = vadd.f32 %v1105, %v1231
      %v1256 = vadd.f32 %v1106, %v1233
      %v1257 = vadd.f32 %v1107, %v1236
      %v1258 = vadd.f32 %v1108, %v1238
      %v1259 = vadd.f32 %v1109, %v1241
      %v1260 = vadd.f32 %v1110, %v1243
      %1261 = vst [vmem:[#allocation3] sm:$0xff] %v1245
      %1262 = vst [vmem:[#allocation3 + $0x8] sm:$0xff] %v1246
      %1263 = vst [vmem:[#allocation3 + $0x10] sm:$0xff] %v1247
      %1264 = vst [vmem:[#allocation3 + $0x18] sm:$0xff] %v1248
      %1265 = vst [vmem:[#allocation3 + $0x20] sm:$0xff] %v1249
      %1266 = vst [vmem:[#allocation3 + $0x28] sm:$0xff] %v1250
      %1267 = vst [vmem:[#allocation3 + $0x30] sm:$0xff] %v1251
      %1268 = vst [vmem:[#allocation3 + $0x38] sm:$0xff] %v1252
      %1269 = vst [vmem:[#allocation3 + $0x40] sm:$0xff] %v1253
      %1270 = vst [vmem:[#allocation3 + $0x48] sm:$0xff] %v1254
      %1271 = vst [vmem:[#allocation3 + $0x50] sm:$0xff] %v1255
      %1272 = vst [vmem:[#allocation3 + $0x58] sm:$0xff] %v1256
      %1273 = vst [vmem:[#allocation3 + $0x60] sm:$0xff] %v1257
      %1274 = vst [vmem:[#allocation3 + $0x68] sm:$0xff] %v1258
      %1275 = vst [vmem:[#allocation3 + $0x70] sm:$0xff] %v1259
      %1276 = vst [vmem:[#allocation3 + $0x78] sm:$0xff] %v1260
      %v1277 = vld [vmem:[%s287] sm:$0xf]
      %v1278 = vld [vmem:[%s287 + $0x4] sm:$0xf]
      %1279 = vst.msk [vmem:[#allocation2] sm:$0xf] %vm281, %v1277
      %1280 = vst.msk [vmem:[#allocation2 + $0x4] sm:$0xf] %vm281, %v1278
      %v1281 = vld [vmem:[%s295] sm:$0xf]
      %v1282 = vld [vmem:[%s295 + $0x4] sm:$0xf]
      %1283 = vst.msk [vmem:[#allocation2 + $0x8] sm:$0xf] %vm281, %v1281
      %1284 = vst.msk [vmem:[#allocation2 + $0xc] sm:$0xf] %vm281, %v1282
      %v1285 = vld [vmem:[%s303] sm:$0xf]
      %v1286 = vld [vmem:[%s303 + $0x4] sm:$0xf]
      %1287 = vst.msk [vmem:[#allocation2 + $0x10] sm:$0xf] %vm281, %v1285
      %1288 = vst.msk [vmem:[#allocation2 + $0x14] sm:$0xf] %vm281, %v1286
      %v1289 = vld [vmem:[%s311] sm:$0xf]
      %v1290 = vld [vmem:[%s311 + $0x4] sm:$0xf]
      %1291 = vst.msk [vmem:[#allocation2 + $0x18] sm:$0xf] %vm281, %v1289
      %1292 = vst.msk [vmem:[#allocation2 + $0x1c] sm:$0xf] %vm281, %v1290
      %v1293 = vld [vmem:[%s319] sm:$0xf]
      %v1294 = vld [vmem:[%s319 + $0x4] sm:$0xf]
      %1295 = vst.msk [vmem:[#allocation2 + $0x20] sm:$0xf] %vm281, %v1293
      %1296 = vst.msk [vmem:[#allocation2 + $0x24] sm:$0xf] %vm281, %v1294
      %v1297 = vld [vmem:[%s327] sm:$0xf]
      %v1298 = vld [vmem:[%s327 + $0x4] sm:$0xf]
      %1299 = vst.msk [vmem:[#allocation2 + $0x28] sm:$0xf] %vm281, %v1297
      %1300 = vst.msk [vmem:[#allocation2 + $0x2c] sm:$0xf] %vm281, %v1298
      %v1301 = vld [vmem:[%s335] sm:$0xf]
      %v1302 = vld [vmem:[%s335 + $0x4] sm:$0xf]
      %1303 = vst.msk [vmem:[#allocation2 + $0x30] sm:$0xf] %vm281, %v1301
      %1304 = vst.msk [vmem:[#allocation2 + $0x34] sm:$0xf] %vm281, %v1302
      %s1305 = sadd.s32 %s259, 8
      %s1306 = smul.u32 %s1305, 3
      %s1307 = smul.addr %s1306, 4
      %s1308 = scalar_lea.vmem %s233, %s1307
      %v1309 = vld [vmem:[%s1308] sm:$0xf]
      %v1310 = vld [vmem:[%s1308 + $0x4] sm:$0xf]
      %1311 = vst.msk [vmem:[#allocation2 + $0x38] sm:$0xf] %vm281, %v1309
      %1312 = vst.msk [vmem:[#allocation2 + $0x3c] sm:$0xf] %vm281, %v1310
      %v1313 = vld [vmem:[#allocation3] sm:$0xff]
      %v1314 = vld [vmem:[#allocation3 + $0x8] sm:$0xff]
      %v1315 = vld [vmem:[#allocation3 + $0x10] sm:$0xff]
      %v1316 = vld [vmem:[#allocation3 + $0x18] sm:$0xff]
      %v1317 = vld [vmem:[#allocation3 + $0x20] sm:$0xff]
      %v1318 = vld [vmem:[#allocation3 + $0x28] sm:$0xff]
      %v1319 = vld [vmem:[#allocation3 + $0x30] sm:$0xff]
      %v1320 = vld [vmem:[#allocation3 + $0x38] sm:$0xff]
      %v1321 = vld [vmem:[#allocation3 + $0x40] sm:$0xff]
      %v1322 = vld [vmem:[#allocation3 + $0x48] sm:$0xff]
      %v1323 = vld [vmem:[#allocation3 + $0x50] sm:$0xff]
      %v1324 = vld [vmem:[#allocation3 + $0x58] sm:$0xff]
      %v1325 = vld [vmem:[#allocation3 + $0x60] sm:$0xff]
      %v1326 = vld [vmem:[#allocation3 + $0x68] sm:$0xff]
      %v1327 = vld [vmem:[#allocation3 + $0x70] sm:$0xff]
      %v1328 = vld [vmem:[#allocation3 + $0x78] sm:$0xff]
      %v1329 = vld [vmem:[#allocation2] sm:$0xf]
      %v1330 = vld [vmem:[#allocation2 + $0x4] sm:$0xf]
      %v1331 = vld [vmem:[#allocation2 + $0x8] sm:$0xf]
      %v1332 = vld [vmem:[#allocation2 + $0xc] sm:$0xf]
      %v1333 = vld [vmem:[#allocation2 + $0x10] sm:$0xf]
      %v1334 = vld [vmem:[#allocation2 + $0x14] sm:$0xf]
      %v1335 = vld [vmem:[#allocation2 + $0x18] sm:$0xf]
      %v1336 = vld [vmem:[#allocation2 + $0x1c] sm:$0xf]
      %v1337 = vld [vmem:[#allocation2 + $0x20] sm:$0xf]
      %v1338 = vld [vmem:[#allocation2 + $0x24] sm:$0xf]
      %v1339 = vld [vmem:[#allocation2 + $0x28] sm:$0xf]
      %v1340 = vld [vmem:[#allocation2 + $0x2c] sm:$0xf]
      %v1341 = vld [vmem:[#allocation2 + $0x30] sm:$0xf]
      %v1342 = vld [vmem:[#allocation2 + $0x34] sm:$0xf]
      %v1343 = vld [vmem:[#allocation2 + $0x38] sm:$0xf]
      %v1344 = vld [vmem:[#allocation2 + $0x3c] sm:$0xf]
      %s1345 = scalar_lea.vmem %s1, 6
      %v1346 = vld [vmem:[%s1345] sm:$0x3]
      %v1363 = vunpack.c.l.b16 %v1329
      %v1364 = vunpack.c.l.b16 %v1330
      %v1365 = vunpack.c.l.b16 %v1331
      %v1366 = vunpack.c.l.b16 %v1332
      %v1367 = vunpack.c.l.b16 %v1333
      %v1368 = vunpack.c.l.b16 %v1334
      %v1369 = vunpack.c.l.b16 %v1335
      %v1370 = vunpack.c.l.b16 %v1336
      %v1371 = vunpack.c.l.b16 %v1337
      %v1372 = vunpack.c.l.b16 %v1338
      %v1373 = vunpack.c.l.b16 %v1339
      %v1374 = vunpack.c.l.b16 %v1340
      %v1375 = vunpack.c.l.b16 %v1341
      %v1376 = vunpack.c.l.b16 %v1342
      %v1377 = vunpack.c.l.b16 %v1343
      %v1378 = vunpack.c.l.b16 %v1344
      %v1379 = vpack.c.b16 %v1364, %v1363
      %v1380 = vpack.c.b16 %v1366, %v1365
      %v1381 = vpack.c.b16 %v1368, %v1367
      %v1382 = vpack.c.b16 %v1370, %v1369
      %v1383 = vpack.c.b16 %v1372, %v1371
      %v1384 = vpack.c.b16 %v1374, %v1373
      %v1385 = vpack.c.b16 %v1376, %v1375
      %v1386 = vpack.c.b16 %v1378, %v1377
      %v1388 = vsel %vm413, %v1379, 0
      %v1391 = vsel %vm413, %v1380, 0
      %v1394 = vsel %vm413, %v1381, 0
      %v1397 = vsel %vm413, %v1382, 0
      %v1400 = vsel %vm413, %v1383, 0
      %v1403 = vsel %vm413, %v1384, 0
      %v1406 = vsel %vm413, %v1385, 0
      %v1409 = vsel %vm413, %v1386, 0
      %v1412 = vsel %vm438, %v1346, 0
      %1414 = vmatpush.bf16.msra.mxu0 0
      %1415 = vmatpush.bf16.msra.mxu0 0
      %1416 = vmatpush.bf16.msra.mxu0 0
      %1417 = vmatpush.bf16.msra.mxu0 0
      %1418 = vmatpush.bf16.msra.mxu0 0
      %1419 = vmatpush.bf16.msra.mxu0 0
      %1420 = vmatpush.bf16.msra.mxu0 0
      %1421 = vmatpush.bf16.msra.mxu0 %v1412
      %1422 = vmatmul.bf16.gmra.mxu0 %v1388
      %v1423 = vpop.f32.mrf.mxu0
      %v1424 = vadd.f32 0.0, %v1423
      %v1425 = vpop.f32.mrf.mxu0
      %v1426 = vadd.f32 0.0, %v1425
      %1427 = vmatmul.bf16.gmra.mxu0 %v1391
      %v1428 = vpop.f32.mrf.mxu0
      %v1429 = vadd.f32 0.0, %v1428
      %v1430 = vpop.f32.mrf.mxu0
      %v1431 = vadd.f32 0.0, %v1430
      %1432 = vmatmul.bf16.gmra.mxu0 %v1394
      %v1433 = vpop.f32.mrf.mxu0
      %v1434 = vadd.f32 0.0, %v1433
      %v1435 = vpop.f32.mrf.mxu0
      %v1436 = vadd.f32 0.0, %v1435
      %1437 = vmatmul.bf16.gmra.mxu0 %v1397
      %v1438 = vpop.f32.mrf.mxu0
      %v1439 = vadd.f32 0.0, %v1438
      %v1440 = vpop.f32.mrf.mxu0
      %v1441 = vadd.f32 0.0, %v1440
      %1442 = vmatmul.bf16.gmra.mxu0 %v1400
      %v1443 = vpop.f32.mrf.mxu0
      %v1444 = vadd.f32 0.0, %v1443
      %v1445 = vpop.f32.mrf.mxu0
      %v1446 = vadd.f32 0.0, %v1445
      %1447 = vmatmul.bf16.gmra.mxu0 %v1403
      %v1448 = vpop.f32.mrf.mxu0
      %v1449 = vadd.f32 0.0, %v1448
      %v1450 = vpop.f32.mrf.mxu0
      %v1451 = vadd.f32 0.0, %v1450
      %1452 = vmatmul.bf16.gmra.mxu0 %v1406
      %v1453 = vpop.f32.mrf.mxu0
      %v1454 = vadd.f32 0.0, %v1453
      %v1455 = vpop.f32.mrf.mxu0
      %v1456 = vadd.f32 0.0, %v1455
      %1457 = vmatmul.bf16.gmra.mxu0 %v1409
      %v1458 = vpop.f32.mrf.mxu0
      %v1459 = vadd.f32 0.0, %v1458
      %v1460 = vpop.f32.mrf.mxu0
      %v1461 = vadd.f32 0.0, %v1460
      %1462 = vdwg.mxu0
      %v1463 = vadd.f32 %v1313, %v1424
      %v1464 = vadd.f32 %v1314, %v1426
      %v1465 = vadd.f32 %v1315, %v1429
      %v1466 = vadd.f32 %v1316, %v1431
      %v1467 = vadd.f32 %v1317, %v1434
      %v1468 = vadd.f32 %v1318, %v1436
      %v1469 = vadd.f32 %v1319, %v1439
      %v1470 = vadd.f32 %v1320, %v1441
      %v1471 = vadd.f32 %v1321, %v1444
      %v1472 = vadd.f32 %v1322, %v1446
      %v1473 = vadd.f32 %v1323, %v1449
      %v1474 = vadd.f32 %v1324, %v1451
      %v1475 = vadd.f32 %v1325, %v1454
      %v1476 = vadd.f32 %v1326, %v1456
      %v1477 = vadd.f32 %v1327, %v1459
      %v1478 = vadd.f32 %v1328, %v1461
      %1479 = vst [vmem:[#allocation3] sm:$0xff] %v1463
      %1480 = vst [vmem:[#allocation3 + $0x8] sm:$0xff] %v1464
      %1481 = vst [vmem:[#allocation3 + $0x10] sm:$0xff] %v1465
      %1482 = vst [vmem:[#allocation3 + $0x18] sm:$0xff] %v1466
      %1483 = vst [vmem:[#allocation3 + $0x20] sm:$0xff] %v1467
      %1484 = vst [vmem:[#allocation3 + $0x28] sm:$0xff] %v1468
      %1485 = vst [vmem:[#allocation3 + $0x30] sm:$0xff] %v1469
      %1486 = vst [vmem:[#allocation3 + $0x38] sm:$0xff] %v1470
      %1487 = vst [vmem:[#allocation3 + $0x40] sm:$0xff] %v1471
      %1488 = vst [vmem:[#allocation3 + $0x48] sm:$0xff] %v1472
      %1489 = vst [vmem:[#allocation3 + $0x50] sm:$0xff] %v1473
      %1490 = vst [vmem:[#allocation3 + $0x58] sm:$0xff] %v1474
      %1491 = vst [vmem:[#allocation3 + $0x60] sm:$0xff] %v1475
      %1492 = vst [vmem:[#allocation3 + $0x68] sm:$0xff] %v1476
      %1493 = vst [vmem:[#allocation3 + $0x70] sm:$0xff] %v1477
      %1494 = vst [vmem:[#allocation3 + $0x78] sm:$0xff] %v1478
      %v1495 = vld [vmem:[%s287] sm:$0xf]
      %v1496 = vld [vmem:[%s287 + $0x4] sm:$0xf]
      %v1497 = vld [vmem:[%s287 + $0x8] sm:$0x1]
      %v1499 = vshrl.u32 %v1495, 16
      %v1501 = vrot.slane %v1499, 4
      %v1502 = vshll.u32 %v1495, 16
      %v1504 = vrot.slane %v1502, 5
      %v1505 = vor.u32 %v1501, %v1504
      %v1506 = vrot.slane %v1505, 4
      %v1508 = vshll.u32 %v1496, 16
      %v1510 = vrot.slane %v1508, 5
      %v1511 = vsel %vm528, %v1506, %v1510
      %v1512 = vshrl.u32 %v1496, 16
      %v1514 = vrot.slane %v1512, 4
      %v1515 = vor.u32 %v1514, %v1510
      %v1516 = vrot.slane %v1515, 4
      %v1518 = vshll.u32 %v1497, 16
      %v1520 = vrot.slane %v1518, 5
      %v1521 = vsel %vm528, %v1516, %v1520
      %1524 = vst.msk [vmem:[#allocation2] sm:$0xf] %vm281, %v1511
      %1525 = vst.msk [vmem:[#allocation2 + $0x4] sm:$0xf] %vm281, %v1521
      %v1526 = vld [vmem:[%s295] sm:$0xf]
      %v1527 = vld [vmem:[%s295 + $0x4] sm:$0xf]
      %v1528 = vld [vmem:[%s295 + $0x8] sm:$0x1]
      %v1530 = vshrl.u32 %v1526, 16
      %v1532 = vrot.slane %v1530, 4
      %v1533 = vshll.u32 %v1526, 16
      %v1535 = vrot.slane %v1533, 5
      %v1536 = vor.u32 %v1532, %v1535
      %v1537 = vrot.slane %v1536, 4
      %v1539 = vshll.u32 %v1527, 16
      %v1541 = vrot.slane %v1539, 5
      %v1542 = vsel %vm528, %v1537, %v1541
      %v1543 = vshrl.u32 %v1527, 16
      %v1545 = vrot.slane %v1543, 4
      %v1546 = vor.u32 %v1545, %v1541
      %v1547 = vrot.slane %v1546, 4
      %v1549 = vshll.u32 %v1528, 16
      %v1551 = vrot.slane %v1549, 5
      %v1552 = vsel %vm528, %v1547, %v1551
      %1555 = vst.msk [vmem:[#allocation2 + $0x8] sm:$0xf] %vm281, %v1542
      %1556 = vst.msk [vmem:[#allocation2 + $0xc] sm:$0xf] %vm281, %v1552
      %v1557 = vld [vmem:[%s303] sm:$0xf]
      %v1558 = vld [vmem:[%s303 + $0x4] sm:$0xf]
      %v1559 = vld [vmem:[%s303 + $0x8] sm:$0x1]
      %v1561 = vshrl.u32 %v1557, 16
      %v1563 = vrot.slane %v1561, 4
      %v1564 = vshll.u32 %v1557, 16
      %v1566 = vrot.slane %v1564, 5
      %v1567 = vor.u32 %v1563, %v1566
      %v1568 = vrot.slane %v1567, 4
      %v1570 = vshll.u32 %v1558, 16
      %v1572 = vrot.slane %v1570, 5
      %v1573 = vsel %vm528, %v1568, %v1572
      %v1574 = vshrl.u32 %v1558, 16
      %v1576 = vrot.slane %v1574, 4
      %v1577 = vor.u32 %v1576, %v1572
      %v1578 = vrot.slane %v1577, 4
      %v1580 = vshll.u32 %v1559, 16
      %v1582 = vrot.slane %v1580, 5
      %v1583 = vsel %vm528, %v1578, %v1582
      %1586 = vst.msk [vmem:[#allocation2 + $0x10] sm:$0xf] %vm281, %v1573
      %1587 = vst.msk [vmem:[#allocation2 + $0x14] sm:$0xf] %vm281, %v1583
      %v1588 = vld [vmem:[%s311] sm:$0xf]
      %v1589 = vld [vmem:[%s311 + $0x4] sm:$0xf]
      %v1590 = vld [vmem:[%s311 + $0x8] sm:$0x1]
      %v1592 = vshrl.u32 %v1588, 16
      %v1594 = vrot.slane %v1592, 4
      %v1595 = vshll.u32 %v1588, 16
      %v1597 = vrot.slane %v1595, 5
      %v1598 = vor.u32 %v1594, %v1597
      %v1599 = vrot.slane %v1598, 4
      %v1601 = vshll.u32 %v1589, 16
      %v1603 = vrot.slane %v1601, 5
      %v1604 = vsel %vm528, %v1599, %v1603
      %v1605 = vshrl.u32 %v1589, 16
      %v1607 = vrot.slane %v1605, 4
      %v1608 = vor.u32 %v1607, %v1603
      %v1609 = vrot.slane %v1608, 4
      %v1611 = vshll.u32 %v1590, 16
      %v1613 = vrot.slane %v1611, 5
      %v1614 = vsel %vm528, %v1609, %v1613
      %1617 = vst.msk [vmem:[#allocation2 + $0x18] sm:$0xf] %vm281, %v1604
      %1618 = vst.msk [vmem:[#allocation2 + $0x1c] sm:$0xf] %vm281, %v1614
      %v1619 = vld [vmem:[%s319] sm:$0xf]
      %v1620 = vld [vmem:[%s319 + $0x4] sm:$0xf]
      %v1621 = vld [vmem:[%s319 + $0x8] sm:$0x1]
      %v1623 = vshrl.u32 %v1619, 16
      %v1625 = vrot.slane %v1623, 4
      %v1626 = vshll.u32 %v1619, 16
      %v1628 = vrot.slane %v1626, 5
      %v1629 = vor.u32 %v1625, %v1628
      %v1630 = vrot.slane %v1629, 4
      %v1632 = vshll.u32 %v1620, 16
      %v1634 = vrot.slane %v1632, 5
      %v1635 = vsel %vm528, %v1630, %v1634
      %v1636 = vshrl.u32 %v1620, 16
      %v1638 = vrot.slane %v1636, 4
      %v1639 = vor.u32 %v1638, %v1634
      %v1640 = vrot.slane %v1639, 4
      %v1642 = vshll.u32 %v1621, 16
      %v1644 = vrot.slane %v1642, 5
      %v1645 = vsel %vm528, %v1640, %v1644
      %1648 = vst.msk [vmem:[#allocation2 + $0x20] sm:$0xf] %vm281, %v1635
      %1649 = vst.msk [vmem:[#allocation2 + $0x24] sm:$0xf] %vm281, %v1645
      %v1650 = vld [vmem:[%s327] sm:$0xf]
      %v1651 = vld [vmem:[%s327 + $0x4] sm:$0xf]
      %v1652 = vld [vmem:[%s327 + $0x8] sm:$0x1]
      %v1654 = vshrl.u32 %v1650, 16
      %v1656 = vrot.slane %v1654, 4
      %v1657 = vshll.u32 %v1650, 16
      %v1659 = vrot.slane %v1657, 5
      %v1660 = vor.u32 %v1656, %v1659
      %v1661 = vrot.slane %v1660, 4
      %v1663 = vshll.u32 %v1651, 16
      %v1665 = vrot.slane %v1663, 5
      %v1666 = vsel %vm528, %v1661, %v1665
      %v1667 = vshrl.u32 %v1651, 16
      %v1669 = vrot.slane %v1667, 4
      %v1670 = vor.u32 %v1669, %v1665
      %v1671 = vrot.slane %v1670, 4
      %v1673 = vshll.u32 %v1652, 16
      %v1675 = vrot.slane %v1673, 5
      %v1676 = vsel %vm528, %v1671, %v1675
      %1679 = vst.msk [vmem:[#allocation2 + $0x28] sm:$0xf] %vm281, %v1666
      %1680 = vst.msk [vmem:[#allocation2 + $0x2c] sm:$0xf] %vm281, %v1676
      %v1681 = vld [vmem:[%s335] sm:$0xf]
      %v1682 = vld [vmem:[%s335 + $0x4] sm:$0xf]
      %v1683 = vld [vmem:[%s335 + $0x8] sm:$0x1]
      %v1685 = vshrl.u32 %v1681, 16
      %v1687 = vrot.slane %v1685, 4
      %v1688 = vshll.u32 %v1681, 16
      %v1690 = vrot.slane %v1688, 5
      %v1691 = vor.u32 %v1687, %v1690
      %v1692 = vrot.slane %v1691, 4
      %v1694 = vshll.u32 %v1682, 16
      %v1696 = vrot.slane %v1694, 5
      %v1697 = vsel %vm528, %v1692, %v1696
      %v1698 = vshrl.u32 %v1682, 16
      %v1700 = vrot.slane %v1698, 4
      %v1701 = vor.u32 %v1700, %v1696
      %v1702 = vrot.slane %v1701, 4
      %v1704 = vshll.u32 %v1683, 16
      %v1706 = vrot.slane %v1704, 5
      %v1707 = vsel %vm528, %v1702, %v1706
      %1710 = vst.msk [vmem:[#allocation2 + $0x30] sm:$0xf] %vm281, %v1697
      %1711 = vst.msk [vmem:[#allocation2 + $0x34] sm:$0xf] %vm281, %v1707
      %v1712 = vld [vmem:[%s1308] sm:$0xf]
      %v1713 = vld [vmem:[%s1308 + $0x4] sm:$0xf]
      %v1714 = vld [vmem:[%s1308 + $0x8] sm:$0x1]
      %v1716 = vshrl.u32 %v1712, 16
      %v1718 = vrot.slane %v1716, 4
      %v1719 = vshll.u32 %v1712, 16
      %v1721 = vrot.slane %v1719, 5
      %v1722 = vor.u32 %v1718, %v1721
      %v1723 = vrot.slane %v1722, 4
      %v1725 = vshll.u32 %v1713, 16
      %v1727 = vrot.slane %v1725, 5
      %v1728 = vsel %vm528, %v1723, %v1727
      %v1729 = vshrl.u32 %v1713, 16
      %v1731 = vrot.slane %v1729, 4
      %v1732 = vor.u32 %v1731, %v1727
      %v1733 = vrot.slane %v1732, 4
      %v1735 = vshll.u32 %v1714, 16
      %v1737 = vrot.slane %v1735, 5
      %v1738 = vsel %vm528, %v1733, %v1737
      %1741 = vst.msk [vmem:[#allocation2 + $0x38] sm:$0xf] %vm281, %v1728
      %1742 = vst.msk [vmem:[#allocation2 + $0x3c] sm:$0xf] %vm281, %v1738
      %v1743 = vld [vmem:[#allocation3] sm:$0xff]
      %v1744 = vld [vmem:[#allocation3 + $0x8] sm:$0xff]
      %v1745 = vld [vmem:[#allocation3 + $0x10] sm:$0xff]
      %v1746 = vld [vmem:[#allocation3 + $0x18] sm:$0xff]
      %v1747 = vld [vmem:[#allocation3 + $0x20] sm:$0xff]
      %v1748 = vld [vmem:[#allocation3 + $0x28] sm:$0xff]
      %v1749 = vld [vmem:[#allocation3 + $0x30] sm:$0xff]
      %v1750 = vld [vmem:[#allocation3 + $0x38] sm:$0xff]
      %v1751 = vld [vmem:[#allocation3 + $0x40] sm:$0xff]
      %v1752 = vld [vmem:[#allocation3 + $0x48] sm:$0xff]
      %v1753 = vld [vmem:[#allocation3 + $0x50] sm:$0xff]
      %v1754 = vld [vmem:[#allocation3 + $0x58] sm:$0xff]
      %v1755 = vld [vmem:[#allocation3 + $0x60] sm:$0xff]
      %v1756 = vld [vmem:[#allocation3 + $0x68] sm:$0xff]
      %v1757 = vld [vmem:[#allocation3 + $0x70] sm:$0xff]
      %v1758 = vld [vmem:[#allocation3 + $0x78] sm:$0xff]
      %v1759 = vld [vmem:[#allocation2] sm:$0xf]
      %v1760 = vld [vmem:[#allocation2 + $0x4] sm:$0xf]
      %v1761 = vld [vmem:[#allocation2 + $0x8] sm:$0xf]
      %v1762 = vld [vmem:[#allocation2 + $0xc] sm:$0xf]
      %v1763 = vld [vmem:[#allocation2 + $0x10] sm:$0xf]
      %v1764 = vld [vmem:[#allocation2 + $0x14] sm:$0xf]
      %v1765 = vld [vmem:[#allocation2 + $0x18] sm:$0xf]
      %v1766 = vld [vmem:[#allocation2 + $0x1c] sm:$0xf]
      %v1767 = vld [vmem:[#allocation2 + $0x20] sm:$0xf]
      %v1768 = vld [vmem:[#allocation2 + $0x24] sm:$0xf]
      %v1769 = vld [vmem:[#allocation2 + $0x28] sm:$0xf]
      %v1770 = vld [vmem:[#allocation2 + $0x2c] sm:$0xf]
      %v1771 = vld [vmem:[#allocation2 + $0x30] sm:$0xf]
      %v1772 = vld [vmem:[#allocation2 + $0x34] sm:$0xf]
      %v1773 = vld [vmem:[#allocation2 + $0x38] sm:$0xf]
      %v1774 = vld [vmem:[#allocation2 + $0x3c] sm:$0xf]
      %s1775 = scalar_lea.vmem %s1, 8
      %v1776 = vld [vmem:[%s1775] sm:$0x3]
      %v1793 = vunpack.c.l.b16 %v1759
      %v1794 = vunpack.c.l.b16 %v1760
      %v1795 = vunpack.c.l.b16 %v1761
      %v1796 = vunpack.c.l.b16 %v1762
      %v1797 = vunpack.c.l.b16 %v1763
      %v1798 = vunpack.c.l.b16 %v1764
      %v1799 = vunpack.c.l.b16 %v1765
      %v1800 = vunpack.c.l.b16 %v1766
      %v1801 = vunpack.c.l.b16 %v1767
      %v1802 = vunpack.c.l.b16 %v1768
      %v1803 = vunpack.c.l.b16 %v1769
      %v1804 = vunpack.c.l.b16 %v1770
      %v1805 = vunpack.c.l.b16 %v1771
      %v1806 = vunpack.c.l.b16 %v1772
      %v1807 = vunpack.c.l.b16 %v1773
      %v1808 = vunpack.c.l.b16 %v1774
      %v1809 = vpack.c.b16 %v1794, %v1793
      %v1810 = vpack.c.b16 %v1796, %v1795
      %v1811 = vpack.c.b16 %v1798, %v1797
      %v1812 = vpack.c.b16 %v1800, %v1799
      %v1813 = vpack.c.b16 %v1802, %v1801
      %v1814 = vpack.c.b16 %v1804, %v1803
      %v1815 = vpack.c.b16 %v1806, %v1805
      %v1816 = vpack.c.b16 %v1808, %v1807
      %v1818 = vsel %vm413, %v1809, 0
      %v1821 = vsel %vm413, %v1810, 0
      %v1824 = vsel %vm413, %v1811, 0
      %v1827 = vsel %vm413, %v1812, 0
      %v1830 = vsel %vm413, %v1813, 0
      %v1833 = vsel %vm413, %v1814, 0
      %v1836 = vsel %vm413, %v1815, 0
      %v1839 = vsel %vm413, %v1816, 0
      %v1842 = vsel %vm438, %v1776, 0
      %1844 = vmatpush.bf16.msra.mxu0 0
      %1845 = vmatpush.bf16.msra.mxu0 0
      %1846 = vmatpush.bf16.msra.mxu0 0
      %1847 = vmatpush.bf16.msra.mxu0 0
      %1848 = vmatpush.bf16.msra.mxu0 0
      %1849 = vmatpush.bf16.msra.mxu0 0
      %1850 = vmatpush.bf16.msra.mxu0 0
      %1851 = vmatpush.bf16.msra.mxu0 %v1842
      %1852 = vmatmul.bf16.gmra.mxu0 %v1818
      %v1853 = vpop.f32.mrf.mxu0
      %v1854 = vadd.f32 0.0, %v1853
      %v1855 = vpop.f32.mrf.mxu0
      %v1856 = vadd.f32 0.0, %v1855
      %1857 = vmatmul.bf16.gmra.mxu0 %v1821
      %v1858 = vpop.f32.mrf.mxu0
      %v1859 = vadd.f32 0.0, %v1858
      %v1860 = vpop.f32.mrf.mxu0
      %v1861 = vadd.f32 0.0, %v1860
      %1862 = vmatmul.bf16.gmra.mxu0 %v1824
      %v1863 = vpop.f32.mrf.mxu0
      %v1864 = vadd.f32 0.0, %v1863
      %v1865 = vpop.f32.mrf.mxu0
      %v1866 = vadd.f32 0.0, %v1865
      %1867 = vmatmul.bf16.gmra.mxu0 %v1827
      %v1868 = vpop.f32.mrf.mxu0
      %v1869 = vadd.f32 0.0, %v1868
      %v1870 = vpop.f32.mrf.mxu0
      %v1871 = vadd.f32 0.0, %v1870
      %1872 = vmatmul.bf16.gmra.mxu0 %v1830
      %v1873 = vpop.f32.mrf.mxu0
      %v1874 = vadd.f32 0.0, %v1873
      %v1875 = vpop.f32.mrf.mxu0
      %v1876 = vadd.f32 0.0, %v1875
      %1877 = vmatmul.bf16.gmra.mxu0 %v1833
      %v1878 = vpop.f32.mrf.mxu0
      %v1879 = vadd.f32 0.0, %v1878
      %v1880 = vpop.f32.mrf.mxu0
      %v1881 = vadd.f32 0.0, %v1880
      %1882 = vmatmul.bf16.gmra.mxu0 %v1836
      %v1883 = vpop.f32.mrf.mxu0
      %v1884 = vadd.f32 0.0, %v1883
      %v1885 = vpop.f32.mrf.mxu0
      %v1886 = vadd.f32 0.0, %v1885
      %1887 = vmatmul.bf16.gmra.mxu0 %v1839
      %v1888 = vpop.f32.mrf.mxu0
      %v1889 = vadd.f32 0.0, %v1888
      %v1890 = vpop.f32.mrf.mxu0
      %v1891 = vadd.f32 0.0, %v1890
      %1892 = vdwg.mxu0
      %v1893 = vadd.f32 %v1743, %v1854
      %v1894 = vadd.f32 %v1744, %v1856
      %v1895 = vadd.f32 %v1745, %v1859
      %v1896 = vadd.f32 %v1746, %v1861
      %v1897 = vadd.f32 %v1747, %v1864
      %v1898 = vadd.f32 %v1748, %v1866
      %v1899 = vadd.f32 %v1749, %v1869
      %v1900 = vadd.f32 %v1750, %v1871
      %v1901 = vadd.f32 %v1751, %v1874
      %v1902 = vadd.f32 %v1752, %v1876
      %v1903 = vadd.f32 %v1753, %v1879
      %v1904 = vadd.f32 %v1754, %v1881
      %v1905 = vadd.f32 %v1755, %v1884
      %v1906 = vadd.f32 %v1756, %v1886
      %v1907 = vadd.f32 %v1757, %v1889
      %v1908 = vadd.f32 %v1758, %v1891
      %1909 = vst [vmem:[#allocation3] sm:$0xff] %v1893
      %1910 = vst [vmem:[#allocation3 + $0x8] sm:$0xff] %v1894
      %1911 = vst [vmem:[#allocation3 + $0x10] sm:$0xff] %v1895
      %1912 = vst [vmem:[#allocation3 + $0x18] sm:$0xff] %v1896
      %1913 = vst [vmem:[#allocation3 + $0x20] sm:$0xff] %v1897
      %1914 = vst [vmem:[#allocation3 + $0x28] sm:$0xff] %v1898
      %1915 = vst [vmem:[#allocation3 + $0x30] sm:$0xff] %v1899
      %1916 = vst [vmem:[#allocation3 + $0x38] sm:$0xff] %v1900
      %1917 = vst [vmem:[#allocation3 + $0x40] sm:$0xff] %v1901
      %1918 = vst [vmem:[#allocation3 + $0x48] sm:$0xff] %v1902
      %1919 = vst [vmem:[#allocation3 + $0x50] sm:$0xff] %v1903
      %1920 = vst [vmem:[#allocation3 + $0x58] sm:$0xff] %v1904
      %1921 = vst [vmem:[#allocation3 + $0x60] sm:$0xff] %v1905
      %1922 = vst [vmem:[#allocation3 + $0x68] sm:$0xff] %v1906
      %1923 = vst [vmem:[#allocation3 + $0x70] sm:$0xff] %v1907
      %1924 = vst [vmem:[#allocation3 + $0x78] sm:$0xff] %v1908
      %v1925 = vld [vmem:[%s287] sm:$0xe]
      %v1926 = vld [vmem:[%s287 + $0x4] sm:$0xf]
      %v1927 = vld [vmem:[%s287 + $0x8] sm:$0x1]
      %v1931 = vrot.slane %v1925, 5
      %v1932 = vrot.slane %v1931, 4
      %v1933 = vrot.slane %v1926, 5
      %v1934 = vsel %vm964, %v1932, %v1933
      %v1935 = vrot.slane %v1933, 4
      %v1936 = vrot.slane %v1927, 5
      %v1937 = vsel %vm964, %v1935, %v1936
      %1940 = vst.msk [vmem:[#allocation2] sm:$0xf] %vm281, %v1934
      %1941 = vst.msk [vmem:[#allocation2 + $0x4] sm:$0xf] %vm281, %v1937
      %v1942 = vld [vmem:[%s295] sm:$0xe]
      %v1943 = vld [vmem:[%s295 + $0x4] sm:$0xf]
      %v1944 = vld [vmem:[%s295 + $0x8] sm:$0x1]
      %v1948 = vrot.slane %v1942, 5
      %v1949 = vrot.slane %v1948, 4
      %v1950 = vrot.slane %v1943, 5
      %v1951 = vsel %vm964, %v1949, %v1950
      %v1952 = vrot.slane %v1950, 4
      %v1953 = vrot.slane %v1944, 5
      %v1954 = vsel %vm964, %v1952, %v1953
      %1957 = vst.msk [vmem:[#allocation2 + $0x8] sm:$0xf] %vm281, %v1951
      %1958 = vst.msk [vmem:[#allocation2 + $0xc] sm:$0xf] %vm281, %v1954
      %v1959 = vld [vmem:[%s303] sm:$0xe]
      %v1960 = vld [vmem:[%s303 + $0x4] sm:$0xf]
      %v1961 = vld [vmem:[%s303 + $0x8] sm:$0x1]
      %v1965 = vrot.slane %v1959, 5
      %v1966 = vrot.slane %v1965, 4
      %v1967 = vrot.slane %v1960, 5
      %v1968 = vsel %vm964, %v1966, %v1967
      %v1969 = vrot.slane %v1967, 4
      %v1970 = vrot.slane %v1961, 5
      %v1971 = vsel %vm964, %v1969, %v1970
      %1974 = vst.msk [vmem:[#allocation2 + $0x10] sm:$0xf] %vm281, %v1968
      %1975 = vst.msk [vmem:[#allocation2 + $0x14] sm:$0xf] %vm281, %v1971
      %v1976 = vld [vmem:[%s311] sm:$0xe]
      %v1977 = vld [vmem:[%s311 + $0x4] sm:$0xf]
      %v1978 = vld [vmem:[%s311 + $0x8] sm:$0x1]
      %v1982 = vrot.slane %v1976, 5
      %v1983 = vrot.slane %v1982, 4
      %v1984 = vrot.slane %v1977, 5
      %v1985 = vsel %vm964, %v1983, %v1984
      %v1986 = vrot.slane %v1984, 4
      %v1987 = vrot.slane %v1978, 5
      %v1988 = vsel %vm964, %v1986, %v1987
      %1991 = vst.msk [vmem:[#allocation2 + $0x18] sm:$0xf] %vm281, %v1985
      %1992 = vst.msk [vmem:[#allocation2 + $0x1c] sm:$0xf] %vm281, %v1988
      %v1993 = vld [vmem:[%s319] sm:$0xe]
      %v1994 = vld [vmem:[%s319 + $0x4] sm:$0xf]
      %v1995 = vld [vmem:[%s319 + $0x8] sm:$0x1]
      %v1999 = vrot.slane %v1993, 5
      %v2000 = vrot.slane %v1999, 4
      %v2001 = vrot.slane %v1994, 5
      %v2002 = vsel %vm964, %v2000, %v2001
      %v2003 = vrot.slane %v2001, 4
      %v2004 = vrot.slane %v1995, 5
      %v2005 = vsel %vm964, %v2003, %v2004
      %2008 = vst.msk [vmem:[#allocation2 + $0x20] sm:$0xf] %vm281, %v2002
      %2009 = vst.msk [vmem:[#allocation2 + $0x24] sm:$0xf] %vm281, %v2005
      %v2010 = vld [vmem:[%s327] sm:$0xe]
      %v2011 = vld [vmem:[%s327 + $0x4] sm:$0xf]
      %v2012 = vld [vmem:[%s327 + $0x8] sm:$0x1]
      %v2016 = vrot.slane %v2010, 5
      %v2017 = vrot.slane %v2016, 4
      %v2018 = vrot.slane %v2011, 5
      %v2019 = vsel %vm964, %v2017, %v2018
      %v2020 = vrot.slane %v2018, 4
      %v2021 = vrot.slane %v2012, 5
      %v2022 = vsel %vm964, %v2020, %v2021
      %2025 = vst.msk [vmem:[#allocation2 + $0x28] sm:$0xf] %vm281, %v2019
      %2026 = vst.msk [vmem:[#allocation2 + $0x2c] sm:$0xf] %vm281, %v2022
      %v2027 = vld [vmem:[%s335] sm:$0xe]
      %v2028 = vld [vmem:[%s335 + $0x4] sm:$0xf]
      %v2029 = vld [vmem:[%s335 + $0x8] sm:$0x1]
      %v2033 = vrot.slane %v2027, 5
      %v2034 = vrot.slane %v2033, 4
      %v2035 = vrot.slane %v2028, 5
      %v2036 = vsel %vm964, %v2034, %v2035
      %v2037 = vrot.slane %v2035, 4
      %v2038 = vrot.slane %v2029, 5
      %v2039 = vsel %vm964, %v2037, %v2038
      %2042 = vst.msk [vmem:[#allocation2 + $0x30] sm:$0xf] %vm281, %v2036
      %2043 = vst.msk [vmem:[#allocation2 + $0x34] sm:$0xf] %vm281, %v2039
      %v2044 = vld [vmem:[%s1308] sm:$0xe]
      %v2045 = vld [vmem:[%s1308 + $0x4] sm:$0xf]
      %v2046 = vld [vmem:[%s1308 + $0x8] sm:$0x1]
      %v2050 = vrot.slane %v2044, 5
      %v2051 = vrot.slane %v2050, 4
      %v2052 = vrot.slane %v2045, 5
      %v2053 = vsel %vm964, %v2051, %v2052
      %v2054 = vrot.slane %v2052, 4
      %v2055 = vrot.slane %v2046, 5
      %v2056 = vsel %vm964, %v2054, %v2055
      %2059 = vst.msk [vmem:[#allocation2 + $0x38] sm:$0xf] %vm281, %v2053
      %2060 = vst.msk [vmem:[#allocation2 + $0x3c] sm:$0xf] %vm281, %v2056
      %v2061 = vld [vmem:[#allocation3] sm:$0xff]
      %v2062 = vld [vmem:[#allocation3 + $0x8] sm:$0xff]
      %v2063 = vld [vmem:[#allocation3 + $0x10] sm:$0xff]
      %v2064 = vld [vmem:[#allocation3 + $0x18] sm:$0xff]
      %v2065 = vld [vmem:[#allocation3 + $0x20] sm:$0xff]
      %v2066 = vld [vmem:[#allocation3 + $0x28] sm:$0xff]
      %v2067 = vld [vmem:[#allocation3 + $0x30] sm:$0xff]
      %v2068 = vld [vmem:[#allocation3 + $0x38] sm:$0xff]
      %v2069 = vld [vmem:[#allocation3 + $0x40] sm:$0xff]
      %v2070 = vld [vmem:[#allocation3 + $0x48] sm:$0xff]
      %v2071 = vld [vmem:[#allocation3 + $0x50] sm:$0xff]
      %v2072 = vld [vmem:[#allocation3 + $0x58] sm:$0xff]
      %v2073 = vld [vmem:[#allocation3 + $0x60] sm:$0xff]
      %v2074 = vld [vmem:[#allocation3 + $0x68] sm:$0xff]
      %v2075 = vld [vmem:[#allocation3 + $0x70] sm:$0xff]
      %v2076 = vld [vmem:[#allocation3 + $0x78] sm:$0xff]
      %v2077 = vld [vmem:[#allocation2] sm:$0xf]
      %v2078 = vld [vmem:[#allocation2 + $0x4] sm:$0xf]
      %v2079 = vld [vmem:[#allocation2 + $0x8] sm:$0xf]
      %v2080 = vld [vmem:[#allocation2 + $0xc] sm:$0xf]
      %v2081 = vld [vmem:[#allocation2 + $0x10] sm:$0xf]
      %v2082 = vld [vmem:[#allocation2 + $0x14] sm:$0xf]
      %v2083 = vld [vmem:[#allocation2 + $0x18] sm:$0xf]
      %v2084 = vld [vmem:[#allocation2 + $0x1c] sm:$0xf]
      %v2085 = vld [vmem:[#allocation2 + $0x20] sm:$0xf]
      %v2086 = vld [vmem:[#allocation2 + $0x24] sm:$0xf]
      %v2087 = vld [vmem:[#allocation2 + $0x28] sm:$0xf]
      %v2088 = vld [vmem:[#allocation2 + $0x2c] sm:$0xf]
      %v2089 = vld [vmem:[#allocation2 + $0x30] sm:$0xf]
      %v2090 = vld [vmem:[#allocation2 + $0x34] sm:$0xf]
      %v2091 = vld [vmem:[#allocation2 + $0x38] sm:$0xf]
      %v2092 = vld [vmem:[#allocation2 + $0x3c] sm:$0xf]
      %s2093 = scalar_lea.vmem %s1, 10
      %v2094 = vld [vmem:[%s2093] sm:$0x3]
      %v2111 = vunpack.c.l.b16 %v2077
      %v2112 = vunpack.c.l.b16 %v2078
      %v2113 = vunpack.c.l.b16 %v2079
      %v2114 = vunpack.c.l.b16 %v2080
      %v2115 = vunpack.c.l.b16 %v2081
      %v2116 = vunpack.c.l.b16 %v2082
      %v2117 = vunpack.c.l.b16 %v2083
      %v2118 = vunpack.c.l.b16 %v2084
      %v2119 = vunpack.c.l.b16 %v2085
      %v2120 = vunpack.c.l.b16 %v2086
      %v2121 = vunpack.c.l.b16 %v2087
      %v2122 = vunpack.c.l.b16 %v2088
      %v2123 = vunpack.c.l.b16 %v2089
      %v2124 = vunpack.c.l.b16 %v2090
      %v2125 = vunpack.c.l.b16 %v2091
      %v2126 = vunpack.c.l.b16 %v2092
      %v2127 = vpack.c.b16 %v2112, %v2111
      %v2128 = vpack.c.b16 %v2114, %v2113
      %v2129 = vpack.c.b16 %v2116, %v2115
      %v2130 = vpack.c.b16 %v2118, %v2117
      %v2131 = vpack.c.b16 %v2120, %v2119
      %v2132 = vpack.c.b16 %v2122, %v2121
      %v2133 = vpack.c.b16 %v2124, %v2123
      %v2134 = vpack.c.b16 %v2126, %v2125
      %v2136 = vsel %vm413, %v2127, 0
      %v2139 = vsel %vm413, %v2128, 0
      %v2142 = vsel %vm413, %v2129, 0
      %v2145 = vsel %vm413, %v2130, 0
      %v2148 = vsel %vm413, %v2131, 0
      %v2151 = vsel %vm413, %v2132, 0
      %v2154 = vsel %vm413, %v2133, 0
      %v2157 = vsel %vm413, %v2134, 0
      %v2160 = vsel %vm438, %v2094, 0
      %2162 = vmatpush.bf16.msra.mxu0 0
      %2163 = vmatpush.bf16.msra.mxu0 0
      %2164 = vmatpush.bf16.msra.mxu0 0
      %2165 = vmatpush.bf16.msra.mxu0 0
      %2166 = vmatpush.bf16.msra.mxu0 0
      %2167 = vmatpush.bf16.msra.mxu0 0
      %2168 = vmatpush.bf16.msra.mxu0 0
      %2169 = vmatpush.bf16.msra.mxu0 %v2160
      %2170 = vmatmul.bf16.gmra.mxu0 %v2136
      %v2171 = vpop.f32.mrf.mxu0
      %v2172 = vadd.f32 0.0, %v2171
      %v2173 = vpop.f32.mrf.mxu0
      %v2174 = vadd.f32 0.0, %v2173
      %2175 = vmatmul.bf16.gmra.mxu0 %v2139
      %v2176 = vpop.f32.mrf.mxu0
      %v2177 = vadd.f32 0.0, %v2176
      %v2178 = vpop.f32.mrf.mxu0
      %v2179 = vadd.f32 0.0, %v2178
      %2180 = vmatmul.bf16.gmra.mxu0 %v2142
      %v2181 = vpop.f32.mrf.mxu0
      %v2182 = vadd.f32 0.0, %v2181
      %v2183 = vpop.f32.mrf.mxu0
      %v2184 = vadd.f32 0.0, %v2183
      %2185 = vmatmul.bf16.gmra.mxu0 %v2145
      %v2186 = vpop.f32.mrf.mxu0
      %v2187 = vadd.f32 0.0, %v2186
      %v2188 = vpop.f32.mrf.mxu0
      %v2189 = vadd.f32 0.0, %v2188
      %2190 = vmatmul.bf16.gmra.mxu0 %v2148
      %v2191 = vpop.f32.mrf.mxu0
      %v2192 = vadd.f32 0.0, %v2191
      %v2193 = vpop.f32.mrf.mxu0
      %v2194 = vadd.f32 0.0, %v2193
      %2195 = vmatmul.bf16.gmra.mxu0 %v2151
      %v2196 = vpop.f32.mrf.mxu0
      %v2197 = vadd.f32 0.0, %v2196
      %v2198 = vpop.f32.mrf.mxu0
      %v2199 = vadd.f32 0.0, %v2198
      %2200 = vmatmul.bf16.gmra.mxu0 %v2154
      %v2201 = vpop.f32.mrf.mxu0
      %v2202 = vadd.f32 0.0, %v2201
      %v2203 = vpop.f32.mrf.mxu0
      %v2204 = vadd.f32 0.0, %v2203
      %2205 = vmatmul.bf16.gmra.mxu0 %v2157
      %v2206 = vpop.f32.mrf.mxu0
      %v2207 = vadd.f32 0.0, %v2206
      %v2208 = vpop.f32.mrf.mxu0
      %v2209 = vadd.f32 0.0, %v2208
      %2210 = vdwg.mxu0
      %v2211 = vadd.f32 %v2061, %v2172
      %v2212 = vadd.f32 %v2062, %v2174
      %v2213 = vadd.f32 %v2063, %v2177
      %v2214 = vadd.f32 %v2064, %v2179
      %v2215 = vadd.f32 %v2065, %v2182
      %v2216 = vadd.f32 %v2066, %v2184
      %v2217 = vadd.f32 %v2067, %v2187
      %v2218 = vadd.f32 %v2068, %v2189
      %v2219 = vadd.f32 %v2069, %v2192
      %v2220 = vadd.f32 %v2070, %v2194
      %v2221 = vadd.f32 %v2071, %v2197
      %v2222 = vadd.f32 %v2072, %v2199
      %v2223 = vadd.f32 %v2073, %v2202
      %v2224 = vadd.f32 %v2074, %v2204
      %v2225 = vadd.f32 %v2075, %v2207
      %v2226 = vadd.f32 %v2076, %v2209
      %2227 = vst [vmem:[#allocation3] sm:$0xff] %v2211
      %2228 = vst [vmem:[#allocation3 + $0x8] sm:$0xff] %v2212
      %2229 = vst [vmem:[#allocation3 + $0x10] sm:$0xff] %v2213
      %2230 = vst [vmem:[#allocation3 + $0x18] sm:$0xff] %v2214
      %2231 = vst [vmem:[#allocation3 + $0x20] sm:$0xff] %v2215
      %2232 = vst [vmem:[#allocation3 + $0x28] sm:$0xff] %v2216
      %2233 = vst [vmem:[#allocation3 + $0x30] sm:$0xff] %v2217
      %2234 = vst [vmem:[#allocation3 + $0x38] sm:$0xff] %v2218
      %2235 = vst [vmem:[#allocation3 + $0x40] sm:$0xff] %v2219
      %2236 = vst [vmem:[#allocation3 + $0x48] sm:$0xff] %v2220
      %2237 = vst [vmem:[#allocation3 + $0x50] sm:$0xff] %v2221
      %2238 = vst [vmem:[#allocation3 + $0x58] sm:$0xff] %v2222
      %2239 = vst [vmem:[#allocation3 + $0x60] sm:$0xff] %v2223
      %2240 = vst [vmem:[#allocation3 + $0x68] sm:$0xff] %v2224
      %2241 = vst [vmem:[#allocation3 + $0x70] sm:$0xff] %v2225
      %2242 = vst [vmem:[#allocation3 + $0x78] sm:$0xff] %v2226
      %v2243 = vld [vmem:[%s295] sm:$0xf]
      %v2244 = vld [vmem:[%s295 + $0x4] sm:$0xf]
      %2245 = vst.msk [vmem:[#allocation2] sm:$0xf] %vm281, %v2243
      %2246 = vst.msk [vmem:[#allocation2 + $0x4] sm:$0xf] %vm281, %v2244
      %v2247 = vld [vmem:[%s303] sm:$0xf]
      %v2248 = vld [vmem:[%s303 + $0x4] sm:$0xf]
      %2249 = vst.msk [vmem:[#allocation2 + $0x8] sm:$0xf] %vm281, %v2247
      %2250 = vst.msk [vmem:[#allocation2 + $0xc] sm:$0xf] %vm281, %v2248
      %v2251 = vld [vmem:[%s311] sm:$0xf]
      %v2252 = vld [vmem:[%s311 + $0x4] sm:$0xf]
      %2253 = vst.msk [vmem:[#allocation2 + $0x10] sm:$0xf] %vm281, %v2251
      %2254 = vst.msk [vmem:[#allocation2 + $0x14] sm:$0xf] %vm281, %v2252
      %v2255 = vld [vmem:[%s319] sm:$0xf]
      %v2256 = vld [vmem:[%s319 + $0x4] sm:$0xf]
      %2257 = vst.msk [vmem:[#allocation2 + $0x18] sm:$0xf] %vm281, %v2255
      %2258 = vst.msk [vmem:[#allocation2 + $0x1c] sm:$0xf] %vm281, %v2256
      %v2259 = vld [vmem:[%s327] sm:$0xf]
      %v2260 = vld [vmem:[%s327 + $0x4] sm:$0xf]
      %2261 = vst.msk [vmem:[#allocation2 + $0x20] sm:$0xf] %vm281, %v2259
      %2262 = vst.msk [vmem:[#allocation2 + $0x24] sm:$0xf] %vm281, %v2260
      %v2263 = vld [vmem:[%s335] sm:$0xf]
      %v2264 = vld [vmem:[%s335 + $0x4] sm:$0xf]
      %2265 = vst.msk [vmem:[#allocation2 + $0x28] sm:$0xf] %vm281, %v2263
      %2266 = vst.msk [vmem:[#allocation2 + $0x2c] sm:$0xf] %vm281, %v2264
      %v2267 = vld [vmem:[%s1308] sm:$0xf]
      %v2268 = vld [vmem:[%s1308 + $0x4] sm:$0xf]
      %2269 = vst.msk [vmem:[#allocation2 + $0x30] sm:$0xf] %vm281, %v2267
      %2270 = vst.msk [vmem:[#allocation2 + $0x34] sm:$0xf] %vm281, %v2268
      %s2271 = sadd.s32 %s259, 9
      %s2272 = smul.u32 %s2271, 3
      %s2273 = smul.addr %s2272, 4
      %s2274 = scalar_lea.vmem %s233, %s2273
      %v2275 = vld [vmem:[%s2274] sm:$0xf]
      %v2276 = vld [vmem:[%s2274 + $0x4] sm:$0xf]
      %2277 = vst.msk [vmem:[#allocation2 + $0x38] sm:$0xf] %vm281, %v2275
      %2278 = vst.msk [vmem:[#allocation2 + $0x3c] sm:$0xf] %vm281, %v2276
      %v2279 = vld [vmem:[#allocation3] sm:$0xff]
      %v2280 = vld [vmem:[#allocation3 + $0x8] sm:$0xff]
      %v2281 = vld [vmem:[#allocation3 + $0x10] sm:$0xff]
      %v2282 = vld [vmem:[#allocation3 + $0x18] sm:$0xff]
      %v2283 = vld [vmem:[#allocation3 + $0x20] sm:$0xff]
      %v2284 = vld [vmem:[#allocation3 + $0x28] sm:$0xff]
      %v2285 = vld [vmem:[#allocation3 + $0x30] sm:$0xff]
      %v2286 = vld [vmem:[#allocation3 + $0x38] sm:$0xff]
      %v2287 = vld [vmem:[#allocation3 + $0x40] sm:$0xff]
      %v2288 = vld [vmem:[#allocation3 + $0x48] sm:$0xff]
      %v2289 = vld [vmem:[#allocation3 + $0x50] sm:$0xff]
      %v2290 = vld [vmem:[#allocation3 + $0x58] sm:$0xff]
      %v2291 = vld [vmem:[#allocation3 + $0x60] sm:$0xff]
      %v2292 = vld [vmem:[#allocation3 + $0x68] sm:$0xff]
      %v2293 = vld [vmem:[#allocation3 + $0x70] sm:$0xff]
      %v2294 = vld [vmem:[#allocation3 + $0x78] sm:$0xff]
      %v2295 = vld [vmem:[#allocation2] sm:$0xf]
      %v2296 = vld [vmem:[#allocation2 + $0x4] sm:$0xf]
      %v2297 = vld [vmem:[#allocation2 + $0x8] sm:$0xf]
      %v2298 = vld [vmem:[#allocation2 + $0xc] sm:$0xf]
      %v2299 = vld [vmem:[#allocation2 + $0x10] sm:$0xf]
      %v2300 = vld [vmem:[#allocation2 + $0x14] sm:$0xf]
      %v2301 = vld [vmem:[#allocation2 + $0x18] sm:$0xf]
      %v2302 = vld [vmem:[#allocation2 + $0x1c] sm:$0xf]
      %v2303 = vld [vmem:[#allocation2 + $0x20] sm:$0xf]
      %v2304 = vld [vmem:[#allocation2 + $0x24] sm:$0xf]
      %v2305 = vld [vmem:[#allocation2 + $0x28] sm:$0xf]
      %v2306 = vld [vmem:[#allocation2 + $0x2c] sm:$0xf]
      %v2307 = vld [vmem:[#allocation2 + $0x30] sm:$0xf]
      %v2308 = vld [vmem:[#allocation2 + $0x34] sm:$0xf]
      %v2309 = vld [vmem:[#allocation2 + $0x38] sm:$0xf]
      %v2310 = vld [vmem:[#allocation2 + $0x3c] sm:$0xf]
      %s2311 = scalar_lea.vmem %s1, 12
      %v2312 = vld [vmem:[%s2311] sm:$0x3]
      %v2329 = vunpack.c.l.b16 %v2295
      %v2330 = vunpack.c.l.b16 %v2296
      %v2331 = vunpack.c.l.b16 %v2297
      %v2332 = vunpack.c.l.b16 %v2298
      %v2333 = vunpack.c.l.b16 %v2299
      %v2334 = vunpack.c.l.b16 %v2300
      %v2335 = vunpack.c.l.b16 %v2301
      %v2336 = vunpack.c.l.b16 %v2302
      %v2337 = vunpack.c.l.b16 %v2303
      %v2338 = vunpack.c.l.b16 %v2304
      %v2339 = vunpack.c.l.b16 %v2305
      %v2340 = vunpack.c.l.b16 %v2306
      %v2341 = vunpack.c.l.b16 %v2307
      %v2342 = vunpack.c.l.b16 %v2308
      %v2343 = vunpack.c.l.b16 %v2309
      %v2344 = vunpack.c.l.b16 %v2310
      %v2345 = vpack.c.b16 %v2330, %v2329
      %v2346 = vpack.c.b16 %v2332, %v2331
      %v2347 = vpack.c.b16 %v2334, %v2333
      %v2348 = vpack.c.b16 %v2336, %v2335
      %v2349 = vpack.c.b16 %v2338, %v2337
      %v2350 = vpack.c.b16 %v2340, %v2339
      %v2351 = vpack.c.b16 %v2342, %v2341
      %v2352 = vpack.c.b16 %v2344, %v2343
      %v2354 = vsel %vm413, %v2345, 0
      %v2357 = vsel %vm413, %v2346, 0
      %v2360 = vsel %vm413, %v2347, 0
      %v2363 = vsel %vm413, %v2348, 0
      %v2366 = vsel %vm413, %v2349, 0
      %v2369 = vsel %vm413, %v2350, 0
      %v2372 = vsel %vm413, %v2351, 0
      %v2375 = vsel %vm413, %v2352, 0
      %v2378 = vsel %vm438, %v2312, 0
      %2380 = vmatpush.bf16.msra.mxu0 0
      %2381 = vmatpush.bf16.msra.mxu0 0
      %2382 = vmatpush.bf16.msra.mxu0 0
      %2383 = vmatpush.bf16.msra.mxu0 0
      %2384 = vmatpush.bf16.msra.mxu0 0
      %2385 = vmatpush.bf16.msra.mxu0 0
      %2386 = vmatpush.bf16.msra.mxu0 0
      %2387 = vmatpush.bf16.msra.mxu0 %v2378
      %2388 = vmatmul.bf16.gmra.mxu0 %v2354
      %v2389 = vpop.f32.mrf.mxu0
      %v2390 = vadd.f32 0.0, %v2389
      %v2391 = vpop.f32.mrf.mxu0
      %v2392 = vadd.f32 0.0, %v2391
      %2393 = vmatmul.bf16.gmra.mxu0 %v2357
      %v2394 = vpop.f32.mrf.mxu0
      %v2395 = vadd.f32 0.0, %v2394
      %v2396 = vpop.f32.mrf.mxu0
      %v2397 = vadd.f32 0.0, %v2396
      %2398 = vmatmul.bf16.gmra.mxu0 %v2360
      %v2399 = vpop.f32.mrf.mxu0
      %v2400 = vadd.f32 0.0, %v2399
      %v2401 = vpop.f32.mrf.mxu0
      %v2402 = vadd.f32 0.0, %v2401
      %2403 = vmatmul.bf16.gmra.mxu0 %v2363
      %v2404 = vpop.f32.mrf.mxu0
      %v2405 = vadd.f32 0.0, %v2404
      %v2406 = vpop.f32.mrf.mxu0
      %v2407 = vadd.f32 0.0, %v2406
      %2408 = vmatmul.bf16.gmra.mxu0 %v2366
      %v2409 = vpop.f32.mrf.mxu0
      %v2410 = vadd.f32 0.0, %v2409
      %v2411 = vpop.f32.mrf.mxu0
      %v2412 = vadd.f32 0.0, %v2411
      %2413 = vmatmul.bf16.gmra.mxu0 %v2369
      %v2414 = vpop.f32.mrf.mxu0
      %v2415 = vadd.f32 0.0, %v2414
      %v2416 = vpop.f32.mrf.mxu0
      %v2417 = vadd.f32 0.0, %v2416
      %2418 = vmatmul.bf16.gmra.mxu0 %v2372
      %v2419 = vpop.f32.mrf.mxu0
      %v2420 = vadd.f32 0.0, %v2419
      %v2421 = vpop.f32.mrf.mxu0
      %v2422 = vadd.f32 0.0, %v2421
      %2423 = vmatmul.bf16.gmra.mxu0 %v2375
      %v2424 = vpop.f32.mrf.mxu0
      %v2425 = vadd.f32 0.0, %v2424
      %v2426 = vpop.f32.mrf.mxu0
      %v2427 = vadd.f32 0.0, %v2426
      %2428 = vdwg.mxu0
      %v2429 = vadd.f32 %v2279, %v2390
      %v2430 = vadd.f32 %v2280, %v2392
      %v2431 = vadd.f32 %v2281, %v2395
      %v2432 = vadd.f32 %v2282, %v2397
      %v2433 = vadd.f32 %v2283, %v2400
      %v2434 = vadd.f32 %v2284, %v2402
      %v2435 = vadd.f32 %v2285, %v2405
      %v2436 = vadd.f32 %v2286, %v2407
      %v2437 = vadd.f32 %v2287, %v2410
      %v2438 = vadd.f32 %v2288, %v2412
      %v2439 = vadd.f32 %v2289, %v2415
      %v2440 = vadd.f32 %v2290, %v2417
      %v2441 = vadd.f32 %v2291, %v2420
      %v2442 = vadd.f32 %v2292, %v2422
      %v2443 = vadd.f32 %v2293, %v2425
      %v2444 = vadd.f32 %v2294, %v2427
      %2445 = vst [vmem:[#allocation3] sm:$0xff] %v2429
      %2446 = vst [vmem:[#allocation3 + $0x8] sm:$0xff] %v2430
      %2447 = vst [vmem:[#allocation3 + $0x10] sm:$0xff] %v2431
      %2448 = vst [vmem:[#allocation3 + $0x18] sm:$0xff] %v2432
      %2449 = vst [vmem:[#allocation3 + $0x20] sm:$0xff] %v2433
      %2450 = vst [vmem:[#allocation3 + $0x28] sm:$0xff] %v2434
      %2451 = vst [vmem:[#allocation3 + $0x30] sm:$0xff] %v2435
      %2452 = vst [vmem:[#allocation3 + $0x38] sm:$0xff] %v2436
      %2453 = vst [vmem:[#allocation3 + $0x40] sm:$0xff] %v2437
      %2454 = vst [vmem:[#allocation3 + $0x48] sm:$0xff] %v2438
      %2455 = vst [vmem:[#allocation3 + $0x50] sm:$0xff] %v2439
      %2456 = vst [vmem:[#allocation3 + $0x58] sm:$0xff] %v2440
      %2457 = vst [vmem:[#allocation3 + $0x60] sm:$0xff] %v2441
      %2458 = vst [vmem:[#allocation3 + $0x68] sm:$0xff] %v2442
      %2459 = vst [vmem:[#allocation3 + $0x70] sm:$0xff] %v2443
      %2460 = vst [vmem:[#allocation3 + $0x78] sm:$0xff] %v2444
      %v2461 = vld [vmem:[%s295] sm:$0xf]
      %v2462 = vld [vmem:[%s295 + $0x4] sm:$0xf]
      %v2463 = vld [vmem:[%s295 + $0x8] sm:$0x1]
      %v2465 = vshrl.u32 %v2461, 16
      %v2467 = vrot.slane %v2465, 4
      %v2468 = vshll.u32 %v2461, 16
      %v2470 = vrot.slane %v2468, 5
      %v2471 = vor.u32 %v2467, %v2470
      %v2472 = vrot.slane %v2471, 4
      %v2474 = vshll.u32 %v2462, 16
      %v2476 = vrot.slane %v2474, 5
      %v2477 = vsel %vm528, %v2472, %v2476
      %v2478 = vshrl.u32 %v2462, 16
      %v2480 = vrot.slane %v2478, 4
      %v2481 = vor.u32 %v2480, %v2476
      %v2482 = vrot.slane %v2481, 4
      %v2484 = vshll.u32 %v2463, 16
      %v2486 = vrot.slane %v2484, 5
      %v2487 = vsel %vm528, %v2482, %v2486
      %2490 = vst.msk [vmem:[#allocation2] sm:$0xf] %vm281, %v2477
      %2491 = vst.msk [vmem:[#allocation2 + $0x4] sm:$0xf] %vm281, %v2487
      %v2492 = vld [vmem:[%s303] sm:$0xf]
      %v2493 = vld [vmem:[%s303 + $0x4] sm:$0xf]
      %v2494 = vld [vmem:[%s303 + $0x8] sm:$0x1]
      %v2496 = vshrl.u32 %v2492, 16
      %v2498 = vrot.slane %v2496, 4
      %v2499 = vshll.u32 %v2492, 16
      %v2501 = vrot.slane %v2499, 5
      %v2502 = vor.u32 %v2498, %v2501
      %v2503 = vrot.slane %v2502, 4
      %v2505 = vshll.u32 %v2493, 16
      %v2507 = vrot.slane %v2505, 5
      %v2508 = vsel %vm528, %v2503, %v2507
      %v2509 = vshrl.u32 %v2493, 16
      %v2511 = vrot.slane %v2509, 4
      %v2512 = vor.u32 %v2511, %v2507
      %v2513 = vrot.slane %v2512, 4
      %v2515 = vshll.u32 %v2494, 16
      %v2517 = vrot.slane %v2515, 5
      %v2518 = vsel %vm528, %v2513, %v2517
      %2521 = vst.msk [vmem:[#allocation2 + $0x8] sm:$0xf] %vm281, %v2508
      %2522 = vst.msk [vmem:[#allocation2 + $0xc] sm:$0xf] %vm281, %v2518
      %v2523 = vld [vmem:[%s311] sm:$0xf]
      %v2524 = vld [vmem:[%s311 + $0x4] sm:$0xf]
      %v2525 = vld [vmem:[%s311 + $0x8] sm:$0x1]
      %v2527 = vshrl.u32 %v2523, 16
      %v2529 = vrot.slane %v2527, 4
      %v2530 = vshll.u32 %v2523, 16
      %v2532 = vrot.slane %v2530, 5
      %v2533 = vor.u32 %v2529, %v2532
      %v2534 = vrot.slane %v2533, 4
      %v2536 = vshll.u32 %v2524, 16
      %v2538 = vrot.slane %v2536, 5
      %v2539 = vsel %vm528, %v2534, %v2538
      %v2540 = vshrl.u32 %v2524, 16
      %v2542 = vrot.slane %v2540, 4
      %v2543 = vor.u32 %v2542, %v2538
      %v2544 = vrot.slane %v2543, 4
      %v2546 = vshll.u32 %v2525, 16
      %v2548 = vrot.slane %v2546, 5
      %v2549 = vsel %vm528, %v2544, %v2548
      %2552 = vst.msk [vmem:[#allocation2 + $0x10] sm:$0xf] %vm281, %v2539
      %2553 = vst.msk [vmem:[#allocation2 + $0x14] sm:$0xf] %vm281, %v2549
      %v2554 = vld [vmem:[%s319] sm:$0xf]
      %v2555 = vld [vmem:[%s319 + $0x4] sm:$0xf]
      %v2556 = vld [vmem:[%s319 + $0x8] sm:$0x1]
      %v2558 = vshrl.u32 %v2554, 16
      %v2560 = vrot.slane %v2558, 4
      %v2561 = vshll.u32 %v2554, 16
      %v2563 = vrot.slane %v2561, 5
      %v2564 = vor.u32 %v2560, %v2563
      %v2565 = vrot.slane %v2564, 4
      %v2567 = vshll.u32 %v2555, 16
      %v2569 = vrot.slane %v2567, 5
      %v2570 = vsel %vm528, %v2565, %v2569
      %v2571 = vshrl.u32 %v2555, 16
      %v2573 = vrot.slane %v2571, 4
      %v2574 = vor.u32 %v2573, %v2569
      %v2575 = vrot.slane %v2574, 4
      %v2577 = vshll.u32 %v2556, 16
      %v2579 = vrot.slane %v2577, 5
      %v2580 = vsel %vm528, %v2575, %v2579
      %2583 = vst.msk [vmem:[#allocation2 + $0x18] sm:$0xf] %vm281, %v2570
      %2584 = vst.msk [vmem:[#allocation2 + $0x1c] sm:$0xf] %vm281, %v2580
      %v2585 = vld [vmem:[%s327] sm:$0xf]
      %v2586 = vld [vmem:[%s327 + $0x4] sm:$0xf]
      %v2587 = vld [vmem:[%s327 + $0x8] sm:$0x1]
      %v2589 = vshrl.u32 %v2585, 16
      %v2591 = vrot.slane %v2589, 4
      %v2592 = vshll.u32 %v2585, 16
      %v2594 = vrot.slane %v2592, 5
      %v2595 = vor.u32 %v2591, %v2594
      %v2596 = vrot.slane %v2595, 4
      %v2598 = vshll.u32 %v2586, 16
      %v2600 = vrot.slane %v2598, 5
      %v2601 = vsel %vm528, %v2596, %v2600
      %v2602 = vshrl.u32 %v2586, 16
      %v2604 = vrot.slane %v2602, 4
      %v2605 = vor.u32 %v2604, %v2600
      %v2606 = vrot.slane %v2605, 4
      %v2608 = vshll.u32 %v2587, 16
      %v2610 = vrot.slane %v2608, 5
      %v2611 = vsel %vm528, %v2606, %v2610
      %2614 = vst.msk [vmem:[#allocation2 + $0x20] sm:$0xf] %vm281, %v2601
      %2615 = vst.msk [vmem:[#allocation2 + $0x24] sm:$0xf] %vm281, %v2611
      %v2616 = vld [vmem:[%s335] sm:$0xf]
      %v2617 = vld [vmem:[%s335 + $0x4] sm:$0xf]
      %v2618 = vld [vmem:[%s335 + $0x8] sm:$0x1]
      %v2620 = vshrl.u32 %v2616, 16
      %v2622 = vrot.slane %v2620, 4
      %v2623 = vshll.u32 %v2616, 16
      %v2625 = vrot.slane %v2623, 5
      %v2626 = vor.u32 %v2622, %v2625
      %v2627 = vrot.slane %v2626, 4
      %v2629 = vshll.u32 %v2617, 16
      %v2631 = vrot.slane %v2629, 5
      %v2632 = vsel %vm528, %v2627, %v2631
      %v2633 = vshrl.u32 %v2617, 16
      %v2635 = vrot.slane %v2633, 4
      %v2636 = vor.u32 %v2635, %v2631
      %v2637 = vrot.slane %v2636, 4
      %v2639 = vshll.u32 %v2618, 16
      %v2641 = vrot.slane %v2639, 5
      %v2642 = vsel %vm528, %v2637, %v2641
      %2645 = vst.msk [vmem:[#allocation2 + $0x28] sm:$0xf] %vm281, %v2632
      %2646 = vst.msk [vmem:[#allocation2 + $0x2c] sm:$0xf] %vm281, %v2642
      %v2647 = vld [vmem:[%s1308] sm:$0xf]
      %v2648 = vld [vmem:[%s1308 + $0x4] sm:$0xf]
      %v2649 = vld [vmem:[%s1308 + $0x8] sm:$0x1]
      %v2651 = vshrl.u32 %v2647, 16
      %v2653 = vrot.slane %v2651, 4
      %v2654 = vshll.u32 %v2647, 16
      %v2656 = vrot.slane %v2654, 5
      %v2657 = vor.u32 %v2653, %v2656
      %v2658 = vrot.slane %v2657, 4
      %v2660 = vshll.u32 %v2648, 16
      %v2662 = vrot.slane %v2660, 5
      %v2663 = vsel %vm528, %v2658, %v2662
      %v2664 = vshrl.u32 %v2648, 16
      %v2666 = vrot.slane %v2664, 4
      %v2667 = vor.u32 %v2666, %v2662
      %v2668 = vrot.slane %v2667, 4
      %v2670 = vshll.u32 %v2649, 16
      %v2672 = vrot.slane %v2670, 5
      %v2673 = vsel %vm528, %v2668, %v2672
      %2676 = vst.msk [vmem:[#allocation2 + $0x30] sm:$0xf] %vm281, %v2663
      %2677 = vst.msk [vmem:[#allocation2 + $0x34] sm:$0xf] %vm281, %v2673
      %v2678 = vld [vmem:[%s2274] sm:$0xf]
      %v2679 = vld [vmem:[%s2274 + $0x4] sm:$0xf]
      %v2680 = vld [vmem:[%s2274 + $0x8] sm:$0x1]
      %v2682 = vshrl.u32 %v2678, 16
      %v2684 = vrot.slane %v2682, 4
      %v2685 = vshll.u32 %v2678, 16
      %v2687 = vrot.slane %v2685, 5
      %v2688 = vor.u32 %v2684, %v2687
      %v2689 = vrot.slane %v2688, 4
      %v2691 = vshll.u32 %v2679, 16
      %v2693 = vrot.slane %v2691, 5
      %v2694 = vsel %vm528, %v2689, %v2693
      %v2695 = vshrl.u32 %v2679, 16
      %v2697 = vrot.slane %v2695, 4
      %v2698 = vor.u32 %v2697, %v2693
      %v2699 = vrot.slane %v2698, 4
      %v2701 = vshll.u32 %v2680, 16
      %v2703 = vrot.slane %v2701, 5
      %v2704 = vsel %vm528, %v2699, %v2703
      %2707 = vst.msk [vmem:[#allocation2 + $0x38] sm:$0xf] %vm281, %v2694
      %2708 = vst.msk [vmem:[#allocation2 + $0x3c] sm:$0xf] %vm281, %v2704
      %v2709 = vld [vmem:[#allocation3] sm:$0xff]
      %v2710 = vld [vmem:[#allocation3 + $0x8] sm:$0xff]
      %v2711 = vld [vmem:[#allocation3 + $0x10] sm:$0xff]
      %v2712 = vld [vmem:[#allocation3 + $0x18] sm:$0xff]
      %v2713 = vld [vmem:[#allocation3 + $0x20] sm:$0xff]
      %v2714 = vld [vmem:[#allocation3 + $0x28] sm:$0xff]
      %v2715 = vld [vmem:[#allocation3 + $0x30] sm:$0xff]
      %v2716 = vld [vmem:[#allocation3 + $0x38] sm:$0xff]
      %v2717 = vld [vmem:[#allocation3 + $0x40] sm:$0xff]
      %v2718 = vld [vmem:[#allocation3 + $0x48] sm:$0xff]
      %v2719 = vld [vmem:[#allocation3 + $0x50] sm:$0xff]
      %v2720 = vld [vmem:[#allocation3 + $0x58] sm:$0xff]
      %v2721 = vld [vmem:[#allocation3 + $0x60] sm:$0xff]
      %v2722 = vld [vmem:[#allocation3 + $0x68] sm:$0xff]
      %v2723 = vld [vmem:[#allocation3 + $0x70] sm:$0xff]
      %v2724 = vld [vmem:[#allocation3 + $0x78] sm:$0xff]
      %v2725 = vld [vmem:[#allocation2] sm:$0xf]
      %v2726 = vld [vmem:[#allocation2 + $0x4] sm:$0xf]
      %v2727 = vld [vmem:[#allocation2 + $0x8] sm:$0xf]
      %v2728 = vld [vmem:[#allocation2 + $0xc] sm:$0xf]
      %v2729 = vld [vmem:[#allocation2 + $0x10] sm:$0xf]
      %v2730 = vld [vmem:[#allocation2 + $0x14] sm:$0xf]
      %v2731 = vld [vmem:[#allocation2 + $0x18] sm:$0xf]
      %v2732 = vld [vmem:[#allocation2 + $0x1c] sm:$0xf]
      %v2733 = vld [vmem:[#allocation2 + $0x20] sm:$0xf]
      %v2734 = vld [vmem:[#allocation2 + $0x24] sm:$0xf]
      %v2735 = vld [vmem:[#allocation2 + $0x28] sm:$0xf]
      %v2736 = vld [vmem:[#allocation2 + $0x2c] sm:$0xf]
      %v2737 = vld [vmem:[#allocation2 + $0x30] sm:$0xf]
      %v2738 = vld [vmem:[#allocation2 + $0x34] sm:$0xf]
      %v2739 = vld [vmem:[#allocation2 + $0x38] sm:$0xf]
      %v2740 = vld [vmem:[#allocation2 + $0x3c] sm:$0xf]
      %s2741 = scalar_lea.vmem %s1, 14
      %v2742 = vld [vmem:[%s2741] sm:$0x3]
      %v2759 = vunpack.c.l.b16 %v2725
      %v2760 = vunpack.c.l.b16 %v2726
      %v2761 = vunpack.c.l.b16 %v2727
      %v2762 = vunpack.c.l.b16 %v2728
      %v2763 = vunpack.c.l.b16 %v2729
      %v2764 = vunpack.c.l.b16 %v2730
      %v2765 = vunpack.c.l.b16 %v2731
      %v2766 = vunpack.c.l.b16 %v2732
      %v2767 = vunpack.c.l.b16 %v2733
      %v2768 = vunpack.c.l.b16 %v2734
      %v2769 = vunpack.c.l.b16 %v2735
      %v2770 = vunpack.c.l.b16 %v2736
      %v2771 = vunpack.c.l.b16 %v2737
      %v2772 = vunpack.c.l.b16 %v2738
      %v2773 = vunpack.c.l.b16 %v2739
      %v2774 = vunpack.c.l.b16 %v2740
      %v2775 = vpack.c.b16 %v2760, %v2759
      %v2776 = vpack.c.b16 %v2762, %v2761
      %v2777 = vpack.c.b16 %v2764, %v2763
      %v2778 = vpack.c.b16 %v2766, %v2765
      %v2779 = vpack.c.b16 %v2768, %v2767
      %v2780 = vpack.c.b16 %v2770, %v2769
      %v2781 = vpack.c.b16 %v2772, %v2771
      %v2782 = vpack.c.b16 %v2774, %v2773
      %v2784 = vsel %vm413, %v2775, 0
      %v2787 = vsel %vm413, %v2776, 0
      %v2790 = vsel %vm413, %v2777, 0
      %v2793 = vsel %vm413, %v2778, 0
      %v2796 = vsel %vm413, %v2779, 0
      %v2799 = vsel %vm413, %v2780, 0
      %v2802 = vsel %vm413, %v2781, 0
      %v2805 = vsel %vm413, %v2782, 0
      %v2808 = vsel %vm438, %v2742, 0
      %2810 = vmatpush.bf16.msra.mxu0 0
      %2811 = vmatpush.bf16.msra.mxu0 0
      %2812 = vmatpush.bf16.msra.mxu0 0
      %2813 = vmatpush.bf16.msra.mxu0 0
      %2814 = vmatpush.bf16.msra.mxu0 0
      %2815 = vmatpush.bf16.msra.mxu0 0
      %2816 = vmatpush.bf16.msra.mxu0 0
      %2817 = vmatpush.bf16.msra.mxu0 %v2808
      %2818 = vmatmul.bf16.gmra.mxu0 %v2784
      %v2819 = vpop.f32.mrf.mxu0
      %v2820 = vadd.f32 0.0, %v2819
      %v2821 = vpop.f32.mrf.mxu0
      %v2822 = vadd.f32 0.0, %v2821
      %2823 = vmatmul.bf16.gmra.mxu0 %v2787
      %v2824 = vpop.f32.mrf.mxu0
      %v2825 = vadd.f32 0.0, %v2824
      %v2826 = vpop.f32.mrf.mxu0
      %v2827 = vadd.f32 0.0, %v2826
      %2828 = vmatmul.bf16.gmra.mxu0 %v2790
      %v2829 = vpop.f32.mrf.mxu0
      %v2830 = vadd.f32 0.0, %v2829
      %v2831 = vpop.f32.mrf.mxu0
      %v2832 = vadd.f32 0.0, %v2831
      %2833 = vmatmul.bf16.gmra.mxu0 %v2793
      %v2834 = vpop.f32.mrf.mxu0
      %v2835 = vadd.f32 0.0, %v2834
      %v2836 = vpop.f32.mrf.mxu0
      %v2837 = vadd.f32 0.0, %v2836
      %2838 = vmatmul.bf16.gmra.mxu0 %v2796
      %v2839 = vpop.f32.mrf.mxu0
      %v2840 = vadd.f32 0.0, %v2839
      %v2841 = vpop.f32.mrf.mxu0
      %v2842 = vadd.f32 0.0, %v2841
      %2843 = vmatmul.bf16.gmra.mxu0 %v2799
      %v2844 = vpop.f32.mrf.mxu0
      %v2845 = vadd.f32 0.0, %v2844
      %v2846 = vpop.f32.mrf.mxu0
      %v2847 = vadd.f32 0.0, %v2846
      %2848 = vmatmul.bf16.gmra.mxu0 %v2802
      %v2849 = vpop.f32.mrf.mxu0
      %v2850 = vadd.f32 0.0, %v2849
      %v2851 = vpop.f32.mrf.mxu0
      %v2852 = vadd.f32 0.0, %v2851
      %2853 = vmatmul.bf16.gmra.mxu0 %v2805
      %v2854 = vpop.f32.mrf.mxu0
      %v2855 = vadd.f32 0.0, %v2854
      %v2856 = vpop.f32.mrf.mxu0
      %v2857 = vadd.f32 0.0, %v2856
      %2858 = vdwg.mxu0
      %v2859 = vadd.f32 %v2709, %v2820
      %v2860 = vadd.f32 %v2710, %v2822
      %v2861 = vadd.f32 %v2711, %v2825
      %v2862 = vadd.f32 %v2712, %v2827
      %v2863 = vadd.f32 %v2713, %v2830
      %v2864 = vadd.f32 %v2714, %v2832
      %v2865 = vadd.f32 %v2715, %v2835
      %v2866 = vadd.f32 %v2716, %v2837
      %v2867 = vadd.f32 %v2717, %v2840
      %v2868 = vadd.f32 %v2718, %v2842
      %v2869 = vadd.f32 %v2719, %v2845
      %v2870 = vadd.f32 %v2720, %v2847
      %v2871 = vadd.f32 %v2721, %v2850
      %v2872 = vadd.f32 %v2722, %v2852
      %v2873 = vadd.f32 %v2723, %v2855
      %v2874 = vadd.f32 %v2724, %v2857
      %2875 = vst [vmem:[#allocation3] sm:$0xff] %v2859
      %2876 = vst [vmem:[#allocation3 + $0x8] sm:$0xff] %v2860
      %2877 = vst [vmem:[#allocation3 + $0x10] sm:$0xff] %v2861
      %2878 = vst [vmem:[#allocation3 + $0x18] sm:$0xff] %v2862
      %2879 = vst [vmem:[#allocation3 + $0x20] sm:$0xff] %v2863
      %2880 = vst [vmem:[#allocation3 + $0x28] sm:$0xff] %v2864
      %2881 = vst [vmem:[#allocation3 + $0x30] sm:$0xff] %v2865
      %2882 = vst [vmem:[#allocation3 + $0x38] sm:$0xff] %v2866
      %2883 = vst [vmem:[#allocation3 + $0x40] sm:$0xff] %v2867
      %2884 = vst [vmem:[#allocation3 + $0x48] sm:$0xff] %v2868
      %2885 = vst [vmem:[#allocation3 + $0x50] sm:$0xff] %v2869
      %2886 = vst [vmem:[#allocation3 + $0x58] sm:$0xff] %v2870
      %2887 = vst [vmem:[#allocation3 + $0x60] sm:$0xff] %v2871
      %2888 = vst [vmem:[#allocation3 + $0x68] sm:$0xff] %v2872
      %2889 = vst [vmem:[#allocation3 + $0x70] sm:$0xff] %v2873
      %2890 = vst [vmem:[#allocation3 + $0x78] sm:$0xff] %v2874
      %v2891 = vld [vmem:[%s295] sm:$0xe]
      %v2892 = vld [vmem:[%s295 + $0x4] sm:$0xf]
      %v2893 = vld [vmem:[%s295 + $0x8] sm:$0x1]
      %v2897 = vrot.slane %v2891, 5
      %v2898 = vrot.slane %v2897, 4
      %v2899 = vrot.slane %v2892, 5
      %v2900 = vsel %vm964, %v2898, %v2899
      %v2901 = vrot.slane %v2899, 4
      %v2902 = vrot.slane %v2893, 5
      %v2903 = vsel %vm964, %v2901, %v2902
      %2906 = vst.msk [vmem:[#allocation2] sm:$0xf] %vm281, %v2900
      %2907 = vst.msk [vmem:[#allocation2 + $0x4] sm:$0xf] %vm281, %v2903
      %v2908 = vld [vmem:[%s303] sm:$0xe]
      %v2909 = vld [vmem:[%s303 + $0x4] sm:$0xf]
      %v2910 = vld [vmem:[%s303 + $0x8] sm:$0x1]
      %v2914 = vrot.slane %v2908, 5
      %v2915 = vrot.slane %v2914, 4
      %v2916 = vrot.slane %v2909, 5
      %v2917 = vsel %vm964, %v2915, %v2916
      %v2918 = vrot.slane %v2916, 4
      %v2919 = vrot.slane %v2910, 5
      %v2920 = vsel %vm964, %v2918, %v2919
      %2923 = vst.msk [vmem:[#allocation2 + $0x8] sm:$0xf] %vm281, %v2917
      %2924 = vst.msk [vmem:[#allocation2 + $0xc] sm:$0xf] %vm281, %v2920
      %v2925 = vld [vmem:[%s311] sm:$0xe]
      %v2926 = vld [vmem:[%s311 + $0x4] sm:$0xf]
      %v2927 = vld [vmem:[%s311 + $0x8] sm:$0x1]
      %v2931 = vrot.slane %v2925, 5
      %v2932 = vrot.slane %v2931, 4
      %v2933 = vrot.slane %v2926, 5
      %v2934 = vsel %vm964, %v2932, %v2933
      %v2935 = vrot.slane %v2933, 4
      %v2936 = vrot.slane %v2927, 5
      %v2937 = vsel %vm964, %v2935, %v2936
      %2940 = vst.msk [vmem:[#allocation2 + $0x10] sm:$0xf] %vm281, %v2934
      %2941 = vst.msk [vmem:[#allocation2 + $0x14] sm:$0xf] %vm281, %v2937
      %v2942 = vld [vmem:[%s319] sm:$0xe]
      %v2943 = vld [vmem:[%s319 + $0x4] sm:$0xf]
      %v2944 = vld [vmem:[%s319 + $0x8] sm:$0x1]
      %v2948 = vrot.slane %v2942, 5
      %v2949 = vrot.slane %v2948, 4
      %v2950 = vrot.slane %v2943, 5
      %v2951 = vsel %vm964, %v2949, %v2950
      %v2952 = vrot.slane %v2950, 4
      %v2953 = vrot.slane %v2944, 5
      %v2954 = vsel %vm964, %v2952, %v2953
      %2957 = vst.msk [vmem:[#allocation2 + $0x18] sm:$0xf] %vm281, %v2951
      %2958 = vst.msk [vmem:[#allocation2 + $0x1c] sm:$0xf] %vm281, %v2954
      %v2959 = vld [vmem:[%s327] sm:$0xe]
      %v2960 = vld [vmem:[%s327 + $0x4] sm:$0xf]
      %v2961 = vld [vmem:[%s327 + $0x8] sm:$0x1]
      %v2965 = vrot.slane %v2959, 5
      %v2966 = vrot.slane %v2965, 4
      %v2967 = vrot.slane %v2960, 5
      %v2968 = vsel %vm964, %v2966, %v2967
      %v2969 = vrot.slane %v2967, 4
      %v2970 = vrot.slane %v2961, 5
      %v2971 = vsel %vm964, %v2969, %v2970
      %2974 = vst.msk [vmem:[#allocation2 + $0x20] sm:$0xf] %vm281, %v2968
      %2975 = vst.msk [vmem:[#allocation2 + $0x24] sm:$0xf] %vm281, %v2971
      %v2976 = vld [vmem:[%s335] sm:$0xe]
      %v2977 = vld [vmem:[%s335 + $0x4] sm:$0xf]
      %v2978 = vld [vmem:[%s335 + $0x8] sm:$0x1]
      %v2982 = vrot.slane %v2976, 5
      %v2983 = vrot.slane %v2982, 4
      %v2984 = vrot.slane %v2977, 5
      %v2985 = vsel %vm964, %v2983, %v2984
      %v2986 = vrot.slane %v2984, 4
      %v2987 = vrot.slane %v2978, 5
      %v2988 = vsel %vm964, %v2986, %v2987
      %2991 = vst.msk [vmem:[#allocation2 + $0x28] sm:$0xf] %vm281, %v2985
      %2992 = vst.msk [vmem:[#allocation2 + $0x2c] sm:$0xf] %vm281, %v2988
      %v2993 = vld [vmem:[%s1308] sm:$0xe]
      %v2994 = vld [vmem:[%s1308 + $0x4] sm:$0xf]
      %v2995 = vld [vmem:[%s1308 + $0x8] sm:$0x1]
      %v2999 = vrot.slane %v2993, 5
      %v3000 = vrot.slane %v2999, 4
      %v3001 = vrot.slane %v2994, 5
      %v3002 = vsel %vm964, %v3000, %v3001
      %v3003 = vrot.slane %v3001, 4
      %v3004 = vrot.slane %v2995, 5
      %v3005 = vsel %vm964, %v3003, %v3004
      %3008 = vst.msk [vmem:[#allocation2 + $0x30] sm:$0xf] %vm281, %v3002
      %3009 = vst.msk [vmem:[#allocation2 + $0x34] sm:$0xf] %vm281, %v3005
      %v3010 = vld [vmem:[%s2274] sm:$0xe]
      %v3011 = vld [vmem:[%s2274 + $0x4] sm:$0xf]
      %v3012 = vld [vmem:[%s2274 + $0x8] sm:$0x1]
      %v3016 = vrot.slane %v3010, 5
      %v3017 = vrot.slane %v3016, 4
      %v3018 = vrot.slane %v3011, 5
      %v3019 = vsel %vm964, %v3017, %v3018
      %v3020 = vrot.slane %v3018, 4
      %v3021 = vrot.slane %v3012, 5
      %v3022 = vsel %vm964, %v3020, %v3021
      %3025 = vst.msk [vmem:[#allocation2 + $0x38] sm:$0xf] %vm281, %v3019
      %3026 = vst.msk [vmem:[#allocation2 + $0x3c] sm:$0xf] %vm281, %v3022
      %v3027 = vld [vmem:[#allocation3] sm:$0xff]
      %v3028 = vld [vmem:[#allocation3 + $0x8] sm:$0xff]
      %v3029 = vld [vmem:[#allocation3 + $0x10] sm:$0xff]
      %v3030 = vld [vmem:[#allocation3 + $0x18] sm:$0xff]
      %v3031 = vld [vmem:[#allocation3 + $0x20] sm:$0xff]
      %v3032 = vld [vmem:[#allocation3 + $0x28] sm:$0xff]
      %v3033 = vld [vmem:[#allocation3 + $0x30] sm:$0xff]
      %v3034 = vld [vmem:[#allocation3 + $0x38] sm:$0xff]
      %v3035 = vld [vmem:[#allocation3 + $0x40] sm:$0xff]
      %v3036 = vld [vmem:[#allocation3 + $0x48] sm:$0xff]
      %v3037 = vld [vmem:[#allocation3 + $0x50] sm:$0xff]
      %v3038 = vld [vmem:[#allocation3 + $0x58] sm:$0xff]
      %v3039 = vld [vmem:[#allocation3 + $0x60] sm:$0xff]
      %v3040 = vld [vmem:[#allocation3 + $0x68] sm:$0xff]
      %v3041 = vld [vmem:[#allocation3 + $0x70] sm:$0xff]
      %v3042 = vld [vmem:[#allocation3 + $0x78] sm:$0xff]
      %v3043 = vld [vmem:[#allocation2] sm:$0xf]
      %v3044 = vld [vmem:[#allocation2 + $0x4] sm:$0xf]
      %v3045 = vld [vmem:[#allocation2 + $0x8] sm:$0xf]
      %v3046 = vld [vmem:[#allocation2 + $0xc] sm:$0xf]
      %v3047 = vld [vmem:[#allocation2 + $0x10] sm:$0xf]
      %v3048 = vld [vmem:[#allocation2 + $0x14] sm:$0xf]
      %v3049 = vld [vmem:[#allocation2 + $0x18] sm:$0xf]
      %v3050 = vld [vmem:[#allocation2 + $0x1c] sm:$0xf]
      %v3051 = vld [vmem:[#allocation2 + $0x20] sm:$0xf]
      %v3052 = vld [vmem:[#allocation2 + $0x24] sm:$0xf]
      %v3053 = vld [vmem:[#allocation2 + $0x28] sm:$0xf]
      %v3054 = vld [vmem:[#allocation2 + $0x2c] sm:$0xf]
      %v3055 = vld [vmem:[#allocation2 + $0x30] sm:$0xf]
      %v3056 = vld [vmem:[#allocation2 + $0x34] sm:$0xf]
      %v3057 = vld [vmem:[#allocation2 + $0x38] sm:$0xf]
      %v3058 = vld [vmem:[#allocation2 + $0x3c] sm:$0xf]
      %s3059 = scalar_lea.vmem %s1, 16
      %v3060 = vld [vmem:[%s3059] sm:$0x3]
      %v3077 = vunpack.c.l.b16 %v3043
      %v3078 = vunpack.c.l.b16 %v3044
      %v3079 = vunpack.c.l.b16 %v3045
      %v3080 = vunpack.c.l.b16 %v3046
      %v3081 = vunpack.c.l.b16 %v3047
      %v3082 = vunpack.c.l.b16 %v3048
      %v3083 = vunpack.c.l.b16 %v3049
      %v3084 = vunpack.c.l.b16 %v3050
      %v3085 = vunpack.c.l.b16 %v3051
      %v3086 = vunpack.c.l.b16 %v3052
      %v3087 = vunpack.c.l.b16 %v3053
      %v3088 = vunpack.c.l.b16 %v3054
      %v3089 = vunpack.c.l.b16 %v3055
      %v3090 = vunpack.c.l.b16 %v3056
      %v3091 = vunpack.c.l.b16 %v3057
      %v3092 = vunpack.c.l.b16 %v3058
      %v3093 = vpack.c.b16 %v3078, %v3077
      %v3094 = vpack.c.b16 %v3080, %v3079
      %v3095 = vpack.c.b16 %v3082, %v3081
      %v3096 = vpack.c.b16 %v3084, %v3083
      %v3097 = vpack.c.b16 %v3086, %v3085
      %v3098 = vpack.c.b16 %v3088, %v3087
      %v3099 = vpack.c.b16 %v3090, %v3089
      %v3100 = vpack.c.b16 %v3092, %v3091
      %v3102 = vsel %vm413, %v3093, 0
      %v3105 = vsel %vm413, %v3094, 0
      %v3108 = vsel %vm413, %v3095, 0
      %v3111 = vsel %vm413, %v3096, 0
      %v3114 = vsel %vm413, %v3097, 0
      %v3117 = vsel %vm413, %v3098, 0
      %v3120 = vsel %vm413, %v3099, 0
      %v3123 = vsel %vm413, %v3100, 0
      %v3126 = vsel %vm438, %v3060, 0
      %3128 = vmatpush.bf16.msra.mxu0 0
      %3129 = vmatpush.bf16.msra.mxu0 0
      %3130 = vmatpush.bf16.msra.mxu0 0
      %3131 = vmatpush.bf16.msra.mxu0 0
      %3132 = vmatpush.bf16.msra.mxu0 0
      %3133 = vmatpush.bf16.msra.mxu0 0
      %3134 = vmatpush.bf16.msra.mxu0 0
      %3135 = vmatpush.bf16.msra.mxu0 %v3126
      %3136 = vmatmul.bf16.gmra.mxu0 %v3102
      %v3137 = vpop.f32.mrf.mxu0
      %v3138 = vadd.f32 0.0, %v3137
      %v3139 = vpop.f32.mrf.mxu0
      %v3140 = vadd.f32 0.0, %v3139
      %3141 = vmatmul.bf16.gmra.mxu0 %v3105
      %v3142 = vpop.f32.mrf.mxu0
      %v3143 = vadd.f32 0.0, %v3142
      %v3144 = vpop.f32.mrf.mxu0
      %v3145 = vadd.f32 0.0, %v3144
      %3146 = vmatmul.bf16.gmra.mxu0 %v3108
      %v3147 = vpop.f32.mrf.mxu0
      %v3148 = vadd.f32 0.0, %v3147
      %v3149 = vpop.f32.mrf.mxu0
      %v3150 = vadd.f32 0.0, %v3149
      %3151 = vmatmul.bf16.gmra.mxu0 %v3111
      %v3152 = vpop.f32.mrf.mxu0
      %v3153 = vadd.f32 0.0, %v3152
      %v3154 = vpop.f32.mrf.mxu0
      %v3155 = vadd.f32 0.0, %v3154
      %3156 = vmatmul.bf16.gmra.mxu0 %v3114
      %v3157 = vpop.f32.mrf.mxu0
      %v3158 = vadd.f32 0.0, %v3157
      %v3159 = vpop.f32.mrf.mxu0
      %v3160 = vadd.f32 0.0, %v3159
      %3161 = vmatmul.bf16.gmra.mxu0 %v3117
      %v3162 = vpop.f32.mrf.mxu0
      %v3163 = vadd.f32 0.0, %v3162
      %v3164 = vpop.f32.mrf.mxu0
      %v3165 = vadd.f32 0.0, %v3164
      %3166 = vmatmul.bf16.gmra.mxu0 %v3120
      %v3167 = vpop.f32.mrf.mxu0
      %v3168 = vadd.f32 0.0, %v3167
      %v3169 = vpop.f32.mrf.mxu0
      %v3170 = vadd.f32 0.0, %v3169
      %3171 = vmatmul.bf16.gmra.mxu0 %v3123
      %v3172 = vpop.f32.mrf.mxu0
      %v3173 = vadd.f32 0.0, %v3172
      %v3174 = vpop.f32.mrf.mxu0
      %v3175 = vadd.f32 0.0, %v3174
      %3176 = vdwg.mxu0
      %v3177 = vadd.f32 %v3027, %v3138
      %v3178 = vadd.f32 %v3028, %v3140
      %v3179 = vadd.f32 %v3029, %v3143
      %v3180 = vadd.f32 %v3030, %v3145
      %v3181 = vadd.f32 %v3031, %v3148
      %v3182 = vadd.f32 %v3032, %v3150
      %v3183 = vadd.f32 %v3033, %v3153
      %v3184 = vadd.f32 %v3034, %v3155
      %v3185 = vadd.f32 %v3035, %v3158
      %v3186 = vadd.f32 %v3036, %v3160
      %v3187 = vadd.f32 %v3037, %v3163
      %v3188 = vadd.f32 %v3038, %v3165
      %v3189 = vadd.f32 %v3039, %v3168
      %v3190 = vadd.f32 %v3040, %v3170
      %v3191 = vadd.f32 %v3041, %v3173
      %v3192 = vadd.f32 %v3042, %v3175
      %3193 = vst [vmem:[#allocation3] sm:$0xff] %v3177
      %3194 = vst [vmem:[#allocation3 + $0x8] sm:$0xff] %v3178
      %3195 = vst [vmem:[#allocation3 + $0x10] sm:$0xff] %v3179
      %3196 = vst [vmem:[#allocation3 + $0x18] sm:$0xff] %v3180
      %3197 = vst [vmem:[#allocation3 + $0x20] sm:$0xff] %v3181
      %3198 = vst [vmem:[#allocation3 + $0x28] sm:$0xff] %v3182
      %3199 = vst [vmem:[#allocation3 + $0x30] sm:$0xff] %v3183
      %3200 = vst [vmem:[#allocation3 + $0x38] sm:$0xff] %v3184
      %3201 = vst [vmem:[#allocation3 + $0x40] sm:$0xff] %v3185
      %3202 = vst [vmem:[#allocation3 + $0x48] sm:$0xff] %v3186
      %3203 = vst [vmem:[#allocation3 + $0x50] sm:$0xff] %v3187
      %3204 = vst [vmem:[#allocation3 + $0x58] sm:$0xff] %v3188
      %3205 = vst [vmem:[#allocation3 + $0x60] sm:$0xff] %v3189
      %3206 = vst [vmem:[#allocation3 + $0x68] sm:$0xff] %v3190
      %3207 = vst [vmem:[#allocation3 + $0x70] sm:$0xff] %v3191
      %3208 = vst [vmem:[#allocation3 + $0x78] sm:$0xff] %v3192
      %v3209 = vld [vmem:[#allocation3] sm:$0xff]
      %v3210 = vld [vmem:[#allocation3 + $0x8] sm:$0xff]
      %v3211 = vld [vmem:[#allocation3 + $0x10] sm:$0xff]
      %v3212 = vld [vmem:[#allocation3 + $0x18] sm:$0xff]
      %v3213 = vld [vmem:[#allocation3 + $0x20] sm:$0xff]
      %v3214 = vld [vmem:[#allocation3 + $0x28] sm:$0xff]
      %v3215 = vld [vmem:[#allocation3 + $0x30] sm:$0xff]
      %v3216 = vld [vmem:[#allocation3 + $0x38] sm:$0xff]
      %v3217 = vld [vmem:[#allocation3 + $0x40] sm:$0xff]
      %v3218 = vld [vmem:[#allocation3 + $0x48] sm:$0xff]
      %v3219 = vld [vmem:[#allocation3 + $0x50] sm:$0xff]
      %v3220 = vld [vmem:[#allocation3 + $0x58] sm:$0xff]
      %v3221 = vld [vmem:[#allocation3 + $0x60] sm:$0xff]
      %v3222 = vld [vmem:[#allocation3 + $0x68] sm:$0xff]
      %v3223 = vld [vmem:[#allocation3 + $0x70] sm:$0xff]
      %v3224 = vld [vmem:[#allocation3 + $0x78] sm:$0xff]
      %3225 = vst [vmem:[%s242] sm:$0xff] %v3209
      %3226 = vst [vmem:[%s242 + $0x8] sm:$0xff] %v3210
      %3227 = vst [vmem:[%s242 + $0x10] sm:$0xff] %v3211
      %3228 = vst [vmem:[%s242 + $0x18] sm:$0xff] %v3212
      %3229 = vst [vmem:[%s242 + $0x20] sm:$0xff] %v3213
      %3230 = vst [vmem:[%s242 + $0x28] sm:$0xff] %v3214
      %3231 = vst [vmem:[%s242 + $0x30] sm:$0xff] %v3215
      %3232 = vst [vmem:[%s242 + $0x38] sm:$0xff] %v3216
      %3233 = vst [vmem:[%s242 + $0x40] sm:$0xff] %v3217
      %3234 = vst [vmem:[%s242 + $0x48] sm:$0xff] %v3218
      %3235 = vst [vmem:[%s242 + $0x50] sm:$0xff] %v3219
      %3236 = vst [vmem:[%s242 + $0x58] sm:$0xff] %v3220
      %3237 = vst [vmem:[%s242 + $0x60] sm:$0xff] %v3221
      %3238 = vst [vmem:[%s242 + $0x68] sm:$0xff] %v3222
      %3239 = vst [vmem:[%s242 + $0x70] sm:$0xff] %v3223
      %3240 = vst [vmem:[%s242 + $0x78] sm:$0xff] %v3224
      %v3241 = vadd.f32 %v3209, %v3210
      %v3242 = vadd.f32 %v3241, %v3211
      %v3243 = vadd.f32 %v3242, %v3212
      %v3244 = vadd.f32 %v3243, %v3213
      %v3245 = vadd.f32 %v3244, %v3214
      %v3246 = vadd.f32 %v3245, %v3215
      %v3247 = vadd.f32 %v3246, %v3216
      %v3248 = vadd.f32 %v3247, %v3217
      %v3249 = vadd.f32 %v3248, %v3218
      %v3250 = vadd.f32 %v3249, %v3219
      %v3251 = vadd.f32 %v3250, %v3220
      %v3252 = vadd.f32 %v3251, %v3221
      %v3253 = vadd.f32 %v3252, %v3222
      %v3254 = vadd.f32 %v3253, %v3223
      %v3255 = vadd.f32 %v3254, %v3224
      %v3256 = vrot.slane %v3255, 4
      %v3257 = vadd.f32 %v3255, %v3256
      %v3258 = vrot.slane %v3257, 2
      %v3259 = vadd.f32 %v3257, %v3258
      %v3260 = vrot.slane %v3259, 1
      %v3261 = vadd.f32 %v3259, %v3260
      %3262 = vst [vmem:[%s250] sm:$0x1] %v3261
      %v3263 = vmul.f32 %v3209, %v3209
      %v3264 = vmul.f32 %v3210, %v3210
      %v3265 = vmul.f32 %v3211, %v3211
      %v3266 = vmul.f32 %v3212, %v3212
      %v3267 = vmul.f32 %v3213, %v3213
      %v3268 = vmul.f32 %v3214, %v3214
      %v3269 = vmul.f32 %v3215, %v3215
      %v3270 = vmul.f32 %v3216, %v3216
      %v3271 = vmul.f32 %v3217, %v3217
      %v3272 = vmul.f32 %v3218, %v3218
      %v3273 = vmul.f32 %v3219, %v3219
      %v3274 = vmul.f32 %v3220, %v3220
      %v3275 = vmul.f32 %v3221, %v3221
      %v3276 = vmul.f32 %v3222, %v3222
      %v3277 = vmul.f32 %v3223, %v3223
      %v3278 = vmul.f32 %v3224, %v3224
      %v3279 = vadd.f32 %v3263, %v3264
      %v3280 = vadd.f32 %v3279, %v3265
      %v3281 = vadd.f32 %v3280, %v3266
      %v3282 = vadd.f32 %v3281, %v3267
      %v3283 = vadd.f32 %v3282, %v3268
      %v3284 = vadd.f32 %v3283, %v3269
      %v3285 = vadd.f32 %v3284, %v3270
      %v3286 = vadd.f32 %v3285, %v3271
      %v3287 = vadd.f32 %v3286, %v3272
      %v3288 = vadd.f32 %v3287, %v3273
      %v3289 = vadd.f32 %v3288, %v3274
      %v3290 = vadd.f32 %v3289, %v3275
      %v3291 = vadd.f32 %v3290, %v3276
      %v3292 = vadd.f32 %v3291, %v3277
      %v3293 = vadd.f32 %v3292, %v3278
      %v3294 = vrot.slane %v3293, 4
      %v3295 = vadd.f32 %v3293, %v3294
      %v3296 = vrot.slane %v3295, 2
      %v3297 = vadd.f32 %v3295, %v3296
      %v3298 = vrot.slane %v3297, 1
      %v3299 = vadd.f32 %v3297, %v3298
      %3300 = vst [vmem:[%s257] sm:$0x1] %v3299
      %s3301 = smul.u32 16, %s21
      %p3302 = scmp.lt.s32.totalorder %s20, 1
      %s3303 = scalar_select %p3302, %s20, 1
      %p3304 = scmp.lt.s32.totalorder %s3301, 31
      %s3305 = scalar_select %p3304, %s3301, 31
      %s3306 = smul.addr %s3303, 32
      %s3307 = sadd.s32 %s3305, %s3306
      %s3308 = smul.addr %s3307, 8
      %s3309 = scalar_lea.vmem %s2, %s3308
      %p3310 = scmp.lt.s32.totalorder %s20, 1
      %s3311 = scalar_select %p3310, %s20, 1
      %p3312 = scmp.lt.s32.totalorder %s21, 1
      %s3313 = scalar_select %p3312, %s21, 1
      %s3314 = smul.addr %s3311, 2
      %s3315 = sadd.s32 %s3313, %s3314
      %s3316 = scalar_lea.vmem %s3, %s3315
      %p3317 = scmp.lt.s32.totalorder %s20, 1
      %s3318 = scalar_select %p3317, %s20, 1
      %p3319 = scmp.lt.s32.totalorder %s21, 1
      %s3320 = scalar_select %p3319, %s21, 1
      %s3321 = smul.addr %s3318, 2
      %s3322 = sadd.s32 %s3320, %s3321
      %s3323 = scalar_lea.vmem %s4, %s3322
      // Predicated region
      $region29: #{con_block_forward.2} parent=27 // pred_check
        %p3324 = pneg %p95
      $region30: #{con_block_forward.2} parent=27 // pred_check_branch
        %3326 = sbr.rel (%p3324) target = $region32
      $region31: #{con_block_forward.2} parent=27 // pred_region
        %s3327 = smul.u32 16, %s21
      $region32: #{con_block_forward.2} parent=27 // pred_fallthru
        _
      // Predicated region
      $region33: #{con_block_forward.2} parent=27 // pred_check
        %p3328 = pneg %p123
      $region34: #{con_block_forward.2} parent=27 // pred_check_branch
        %3330 = sbr.rel (%p3328) target = $region36
      $region35: #{con_block_forward.2} parent=27 // pred_region
        _
      $region36: #{con_block_forward.2} parent=27 // pred_fallthru
        _
      // Predicated region
      $region37: #{con_block_forward.2} parent=27 // pred_check
        %p3331 = pneg %p151
      $region38: #{con_block_forward.2} parent=27 // pred_check_branch
        %3333 = sbr.rel (%p3331) target = $region40
      $region39: #{con_block_forward.2} parent=27 // pred_region
        _
      $region40: #{con_block_forward.2} parent=27 // pred_fallthru
        _
    $region28: #{con_block_forward.2} parent=5 // pred_fallthru
      _
    %p3334 = scmp.le.s32.totalorder 2, %s11
    // Predicated region
    $region41: #{con_block_forward.2} parent=5 // pred_check
      %p3335 = pneg %p3334
    $region42: #{con_block_forward.2} parent=5 // pred_check_branch
      %3337 = sbr.rel (%p3335) target = $region44
    $region43: #{con_block_forward.2} parent=5 // pred_region
      %s3338 = ssub.s32 %s11, 2
      // Predicated region
      $region45: #{con_block_forward.2} parent=43 // pred_check
        %p3339 = pneg %p101
      $region46: #{con_block_forward.2} parent=43 // pred_check_branch
        %3341 = sbr.rel (%p3339) target = $region48
      $region47: #{con_block_forward.2} parent=43 // pred_region
        %s3342 = smul.u32 16, %s23
        %p3343 = scmp.lt.s32.totalorder %s22, 1
        %s3344 = scalar_select %p3343, %s22, 1
        %p3345 = scmp.lt.s32.totalorder %s3342, 31
        %s3346 = scalar_select %p3345, %s3342, 31
        %s3347 = smul.addr %s3344, 32
        %s3348 = sadd.s32 %s3346, %s3347
        %s3349 = smul.addr %s3348, 8
        %s3350 = scalar_lea.vmem %s2, %s3349
      $region48: #{con_block_forward.2} parent=43 // pred_fallthru
        _
      // Predicated region
      $region49: #{con_block_forward.2} parent=43 // pred_check
        %p3351 = pneg %p129
      $region50: #{con_block_forward.2} parent=43 // pred_check_branch
        %3353 = sbr.rel (%p3351) target = $region52
      $region51: #{con_block_forward.2} parent=43 // pred_region
        %p3354 = scmp.lt.s32.totalorder %s22, 1
        %s3355 = scalar_select %p3354, %s22, 1
        %p3356 = scmp.lt.s32.totalorder %s23, 1
        %s3357 = scalar_select %p3356, %s23, 1
        %s3358 = smul.addr %s3355, 2
        %s3359 = sadd.s32 %s3357, %s3358
        %s3360 = scalar_lea.vmem %s3, %s3359
      $region52: #{con_block_forward.2} parent=43 // pred_fallthru
        _
      // Predicated region
      $region53: #{con_block_forward.2} parent=43 // pred_check
        %p3361 = pneg %p157
      $region54: #{con_block_forward.2} parent=43 // pred_check_branch
        %3363 = sbr.rel (%p3361) target = $region56
      $region55: #{con_block_forward.2} parent=43 // pred_region
        %p3364 = scmp.lt.s32.totalorder %s22, 1
        %s3365 = scalar_select %p3364, %s22, 1
        %p3366 = scmp.lt.s32.totalorder %s23, 1
        %s3367 = scalar_select %p3366, %s23, 1
        %s3368 = smul.addr %s3365, 2
        %s3369 = sadd.s32 %s3367, %s3368
        %s3370 = scalar_lea.vmem %s4, %s3369
      $region56: #{con_block_forward.2} parent=43 // pred_fallthru
        _
    $region44: #{con_block_forward.2} parent=5 // pred_fallthru
      _
  $region6: #{con_block_forward.2} parent=0 // loop_footer
    %s15 = sadd.s32 1, %s11
  $region7: #{con_block_forward.2} parent=0 // loop_footer_branch
    %10 = sbr.rel target = $region3
  $region8: #{con_block_forward.2} parent=0 // loop_exit
    _

</llo_original>
